<compile_context>
chip_gen: v5e
topology: v5e:2x2
jax: 0.10.0
libtpu: 0.0.40
codegen_flags: <defaults>
</compile_context>

<pallas_src>
import jax
import jax.numpy as jnp
from jax.experimental import pallas as pl
from jax.experimental.pallas import tpu as pltpu


# ----------------------------------------------------------------------------
# In-kernel helpers (traced into the single fused kernel).
# ----------------------------------------------------------------------------
def _leaky_relu(x, slope=0.2):
    return jnp.where(x >= 0.0, x, slope * x)


def _conv_taps(xp_f32, w_ref, b_ref, apply_act):
    """Stride-1 Conv1d on a padded channels-last tile.

    xp_f32: (L_pad, C_in) f32   w_ref: (K, C_in, C_out) bf16   b_ref: (1, C_out) f32
    Returns (L_pad - K + 1, C_out) f32.  bf16 MXU operands, f32 accumulation,
    bias + LeakyReLU in f32.
    """
    K = w_ref.shape[0]
    L_out = xp_f32.shape[0] - K + 1
    xb = xp_f32.astype(jnp.bfloat16)
    acc = jnp.dot(xb[0:L_out, :], w_ref[0], preferred_element_type=jnp.float32)
    for k in range(1, K):  # static unroll over the taps
        acc = acc + jnp.dot(xb[k:k + L_out, :], w_ref[k],
                            preferred_element_type=jnp.float32)
    acc = acc + b_ref[...]
    if apply_act:
        acc = _leaky_relu(acc)
    return acc


def _audio2pose_kernel(x_ref, s2_ref, s3_ref, s4_ref, s5_ref, s6_ref,
                       w1_ref, b1_ref, w2_ref, b2_ref, w3_ref, b3_ref,
                       w4_ref, b4_ref, w5_ref, b5_ref, w6_ref, b6_ref,
                       o_ref):
    # ---- encoder layer 1: input already reflect-padded + im2col'd -> one matmul
    x = x_ref[0]                                                    # (L1, 7*13) f32
    y = jnp.dot(x.astype(jnp.bfloat16), w1_ref[...],
                preferred_element_type=jnp.float32)
    y = _leaky_relu(y + b1_ref[...])                                # (L1, 64)

    # ---- encoder layer 2: [avgpool2 + reflect-pad2] as one structural matmul, then conv
    xp = jnp.dot(s2_ref[...], y, preferred_element_type=jnp.float32)
    y = _conv_taps(xp, w2_ref, b2_ref, True)                        # (., 128)

    # ---- encoder layer 3
    xp = jnp.dot(s3_ref[...], y, preferred_element_type=jnp.float32)
    y = _conv_taps(xp, w3_ref, b3_ref, True)                        # (., 256)

    # ---- decoder layer 1: [avgpool2 + upsample(x2) + reflect-pad3]; Dropout = identity (eval)
    xp = jnp.dot(s4_ref[...], y, preferred_element_type=jnp.float32)
    y = _conv_taps(xp, w4_ref, b4_ref, True)                        # (., 256)

    # ---- decoder layer 2: [upsample(x2) + reflect-pad3]; Dropout = identity (eval)
    xp = jnp.dot(s5_ref[...], y, preferred_element_type=jnp.float32)
    y = _conv_taps(xp, w5_ref, b5_ref, True)                        # (., 128)

    # ---- decoder final: [upsample(size=25) + reflect-pad3], no activation
    xp = jnp.dot(s6_ref[...], y, preferred_element_type=jnp.float32)
    y = _conv_taps(xp, w6_ref, b6_ref, False)                       # (25, pose_dim)

    o_ref[0] = y.astype(o_ref.dtype)


# ----------------------------------------------------------------------------
# Constant "structural" matrices (built at trace time, exact 0.5 / 1.0 entries).
# ----------------------------------------------------------------------------
def _reflect_indices(L, p):
    assert L > p, f"ReflectionPad1d({p}) requires length > {p}, got {L}"
    idx = []
    for i in range(L + 2 * p):
        t = i - p
        if t < 0:
            t = -t
        elif t >= L:
            t = 2 * L - 2 - t
        idx.append(t)
    return idx


def _pool_pad_matrix(L_in, pad):
    """AvgPool1d(2,2) then ReflectionPad1d(pad): (L_in//2 + 2*pad, L_in)."""
    Lp = L_in // 2
    refl = _reflect_indices(Lp, pad)
    m = [[0.0] * L_in for _ in refl]
    for i, r in enumerate(refl):
        m[i][2 * r] = 0.5
        m[i][2 * r + 1] = 0.5
    return jnp.array(m, jnp.float32)


def _pool_up2_pad_matrix(L_in, pad):
    """AvgPool1d(2,2) -> Upsample(x2, nearest) -> ReflectionPad1d(pad)."""
    Lp = L_in // 2
    Lu = 2 * Lp
    refl = _reflect_indices(Lu, pad)
    m = [[0.0] * L_in for _ in refl]
    for i, r in enumerate(refl):
        q = r // 2
        m[i][2 * q] = 0.5
        m[i][2 * q + 1] = 0.5
    return jnp.array(m, jnp.float32)


def _up2_pad_matrix(L_in, pad):
    """Upsample(x2, nearest) -> ReflectionPad1d(pad)."""
    Lu = 2 * L_in
    refl = _reflect_indices(Lu, pad)
    m = [[0.0] * L_in for _ in refl]
    for i, r in enumerate(refl):
        m[i][r // 2] = 1.0
    return jnp.array(m, jnp.float32)


def _upsize_pad_matrix(L_in, size, pad):
    """Upsample(size=size, nearest) -> ReflectionPad1d(pad)."""
    refl = _reflect_indices(size, pad)
    m = [[0.0] * L_in for _ in refl]
    for i, r in enumerate(refl):
        m[i][(r * L_in) // size] = 1.0
    return jnp.array(m, jnp.float32)


# ----------------------------------------------------------------------------
# Parameters (shapes from Audio2Pose.__init__, augmentation=False). Weights bf16.
# ----------------------------------------------------------------------------
def _init_conv(key, k, c_in, c_out):
    kw, kb = jax.random.split(key)
    bound = 1.0 / float(c_in * k) ** 0.5
    w = jax.random.uniform(kw, (k, c_in, c_out), jnp.float32, -bound, bound)
    b = jax.random.uniform(kb, (1, c_out), jnp.float32, -bound, bound)
    return w, b


def init_audio2pose_params(key, pose_dim):
    keys = jax.random.split(key, 6)
    w1, b1 = _init_conv(keys[0], 7, 13, 64)      # AudioEncoder [13, 64, 128, 256]
    w2, b2 = _init_conv(keys[1], 7, 64, 128)
    w3, b3 = _init_conv(keys[2], 7, 128, 256)
    w4, b4 = _init_conv(keys[3], 7, 256, 256)    # AudioDecoder [256, 256, 128, pose_dim]
    w5, b5 = _init_conv(keys[4], 7, 256, 128)
    w6, b6 = _init_conv(keys[5], 7, 128, pose_dim)
    return {
        # layer-1 weight pre-reshaped to (K*C_in, C_out) to match the im2col'd input
        "w1": w1.reshape(7 * 13, 64).astype(jnp.bfloat16), "b1": b1,
        "w2": w2.astype(jnp.bfloat16), "b2": b2,
        "w3": w3.astype(jnp.bfloat16), "b3": b3,
        "w4": w4.astype(jnp.bfloat16), "b4": b4,
        "w5": w5.astype(jnp.bfloat16), "b5": b5,
        "w6": w6.astype(jnp.bfloat16), "b6": b6,
    }


# ----------------------------------------------------------------------------
# Forward: one fused pallas_call, batch on a "parallel" grid axis.
# ----------------------------------------------------------------------------
def audio2pose_forward(params, audio_feat):
    """audio_feat: (B, C_audio, T) PyTorch NCL -> (B, pose_dim, 25) NCL."""
    B, _, T = audio_feat.shape
    K = 7
    assert T > 2, "ReflectionPad1d(2) requires T > 2"

    # Boundary prep on the raw (tiny) input: keep first 13 channels, NCL -> [B,L,C],
    # reflect-pad(2) and im2col the 7 taps (contraction axis K*13 = 91).
    x = jnp.transpose(audio_feat[:, :13, :], (0, 2, 1))            # (B, T, 13)
    xpad = jnp.pad(x, ((0, 0), (2, 2), (0, 0)), mode="reflect")    # (B, T+4, 13)
    L1 = T + 4 - K + 1
    cols = jnp.concatenate([xpad[:, k:k + L1, :] for k in range(K)],
                           axis=-1)                                # (B, L1, 91)

    # Structural (pool / upsample / reflect-pad) matrices fused per layer.
    s2 = _pool_pad_matrix(L1, 2)               # enc2: avgpool2 + pad2
    l2 = s2.shape[0] - K + 1
    s3 = _pool_pad_matrix(l2, 2)               # enc3: avgpool2 + pad2
    l3 = s3.shape[0] - K + 1
    s4 = _pool_up2_pad_matrix(l3, 3)           # dec1: avgpool2 + up(x2) + pad3
    l4 = s4.shape[0] - K + 1
    s5 = _up2_pad_matrix(l4, 3)                # dec2: up(x2) + pad3
    l5 = s5.shape[0] - K + 1
    s6 = _upsize_pad_matrix(l5, 25, 3)         # dec3: up(size=25) + pad3
    for s in (s2, s3, s4, s5, s6):
        assert s.shape[0] >= K, "padded length shorter than conv kernel size"

    pose_dim = params["b6"].shape[1]

    def spec2(a):   # constant 2-D operand: fetched once (index map constant across grid)
        return pl.BlockSpec(a.shape, lambda i: (0, 0))

    def spec3(a):   # constant 3-D weight
        return pl.BlockSpec(a.shape, lambda i: (0, 0, 0))

    in_specs = [
        pl.BlockSpec((1, L1, K * 13), lambda i: (i, 0, 0)),
        spec2(s2), spec2(s3), spec2(s4), spec2(s5), spec2(s6),
        spec2(params["w1"]), spec2(params["b1"]),
        spec3(params["w2"]), spec2(params["b2"]),
        spec3(params["w3"]), spec2(params["b3"]),
        spec3(params["w4"]), spec2(params["b4"]),
        spec3(params["w5"]), spec2(params["b5"]),
        spec3(params["w6"]), spec2(params["b6"]),
    ]

    out = pl.pallas_call(
        _audio2pose_kernel,
        grid=(B,),
        in_specs=in_specs,
        out_specs=pl.BlockSpec((1, 25, pose_dim), lambda i: (i, 0, 0)),
        out_shape=jax.ShapeDtypeStruct((B, 25, pose_dim), jnp.float32),
        compiler_params=pltpu.CompilerParams(dimension_semantics=("parallel",)),
    )(cols, s2, s3, s4, s5, s6,
      params["w1"], params["b1"], params["w2"], params["b2"],
      params["w3"], params["b3"], params["w4"], params["b4"],
      params["w5"], params["b5"], params["w6"], params["b6"])

    return jnp.transpose(out, (0, 2, 1))       # back to NCL: (B, pose_dim, 25)


if __name__ == "__main__":
    pose_dim = 24
    B, C_audio, T = 2, 16, 32                  # encoder keeps the first 13 channels

    key = jax.random.PRNGKey(0)
    k_param, k_in = jax.random.split(key)
    params = init_audio2pose_params(k_param, pose_dim)
    audio_feat = jax.random.normal(k_in, (B, C_audio, T), dtype=jnp.float32)

    fwd = jax.jit(audio2pose_forward)
    out = fwd(params, audio_feat)
    out = jax.block_until_ready(out)

    assert out.shape == (B, pose_dim, 25), out.shape
    assert bool(jnp.all(jnp.isfinite(out)))
    print("KERNEL_OK")
</pallas_src>

<mosaic_0001>
module attributes {stable_mosaic.version = 11 : i64} {
  func.func @_audio2pose_kernel(%arg0: i32, %arg1: memref<1x30x91xf32, #tpu.memory_space<vmem>>, %arg2: memref<19x30xf32, #tpu.memory_space<vmem>>, %arg3: memref<10x13xf32, #tpu.memory_space<vmem>>, %arg4: memref<10x4xf32, #tpu.memory_space<vmem>>, %arg5: memref<14x4xf32, #tpu.memory_space<vmem>>, %arg6: memref<31x8xf32, #tpu.memory_space<vmem>>, %arg7: memref<91x64xbf16, #tpu.memory_space<vmem>>, %arg8: memref<1x64xf32, #tpu.memory_space<vmem>>, %arg9: memref<7x64x128xbf16, #tpu.memory_space<vmem>>, %arg10: memref<1x128xf32, #tpu.memory_space<vmem>>, %arg11: memref<7x128x256xbf16, #tpu.memory_space<vmem>>, %arg12: memref<1x256xf32, #tpu.memory_space<vmem>>, %arg13: memref<7x256x256xbf16, #tpu.memory_space<vmem>>, %arg14: memref<1x256xf32, #tpu.memory_space<vmem>>, %arg15: memref<7x256x128xbf16, #tpu.memory_space<vmem>>, %arg16: memref<1x128xf32, #tpu.memory_space<vmem>>, %arg17: memref<7x128x24xbf16, #tpu.memory_space<vmem>>, %arg18: memref<1x24xf32, #tpu.memory_space<vmem>>, %arg19: memref<1x25x24xf32, #tpu.memory_space<vmem>>) attributes {dimension_semantics = [#tpu.dimension_semantics<parallel>], iteration_bounds = array<i64: 2>, scalar_prefetch = 0 : i64, scratch_operands = 0 : i64, tpu.core_type = #tpu.core_type<tc>, window_params = [{transform_indices = @transform_0, window_bounds = array<i64: 1, 30, 91>}, {pipeline_mode = #tpu.pipeline_mode<synchronous>, transform_indices = @transform_1, window_bounds = array<i64: 19, 30>}, {pipeline_mode = #tpu.pipeline_mode<synchronous>, transform_indices = @transform_2, window_bounds = array<i64: 10, 13>}, {pipeline_mode = #tpu.pipeline_mode<synchronous>, transform_indices = @transform_3, window_bounds = array<i64: 10, 4>}, {pipeline_mode = #tpu.pipeline_mode<synchronous>, transform_indices = @transform_4, window_bounds = array<i64: 14, 4>}, {pipeline_mode = #tpu.pipeline_mode<synchronous>, transform_indices = @transform_5, window_bounds = array<i64: 31, 8>}, {pipeline_mode = #tpu.pipeline_mode<synchronous>, transform_indices = @transform_6, window_bounds = array<i64: 91, 64>}, {pipeline_mode = #tpu.pipeline_mode<synchronous>, transform_indices = @transform_7, window_bounds = array<i64: 1, 64>}, {pipeline_mode = #tpu.pipeline_mode<synchronous>, transform_indices = @transform_8, window_bounds = array<i64: 7, 64, 128>}, {pipeline_mode = #tpu.pipeline_mode<synchronous>, transform_indices = @transform_9, window_bounds = array<i64: 1, 128>}, {pipeline_mode = #tpu.pipeline_mode<synchronous>, transform_indices = @transform_10, window_bounds = array<i64: 7, 128, 256>}, {pipeline_mode = #tpu.pipeline_mode<synchronous>, transform_indices = @transform_11, window_bounds = array<i64: 1, 256>}, {pipeline_mode = #tpu.pipeline_mode<synchronous>, transform_indices = @transform_12, window_bounds = array<i64: 7, 256, 256>}, {pipeline_mode = #tpu.pipeline_mode<synchronous>, transform_indices = @transform_13, window_bounds = array<i64: 1, 256>}, {pipeline_mode = #tpu.pipeline_mode<synchronous>, transform_indices = @transform_14, window_bounds = array<i64: 7, 256, 128>}, {pipeline_mode = #tpu.pipeline_mode<synchronous>, transform_indices = @transform_15, window_bounds = array<i64: 1, 128>}, {pipeline_mode = #tpu.pipeline_mode<synchronous>, transform_indices = @transform_16, window_bounds = array<i64: 7, 128, 24>}, {pipeline_mode = #tpu.pipeline_mode<synchronous>, transform_indices = @transform_17, window_bounds = array<i64: 1, 24>}, {transform_indices = @transform_18, window_bounds = array<i64: 1, 25, 24>}]} {
    %c0 = arith.constant 0 : index
    %c0_0 = arith.constant 0 : index
    %c0_1 = arith.constant 0 : index
    %0 = vector.load %arg1[%c0, %c0_0, %c0_1] : memref<1x30x91xf32, #tpu.memory_space<vmem>>, vector<1x30x91xf32>
    %1 = vector.shape_cast %0 : vector<1x30x91xf32> to vector<30x91xf32>
    %2 = arith.truncf %1 : vector<30x91xf32> to vector<30x91xbf16>
    %c0_2 = arith.constant 0 : index
    %c0_3 = arith.constant 0 : index
    %3 = vector.load %arg7[%c0_2, %c0_3] : memref<91x64xbf16, #tpu.memory_space<vmem>>, vector<91x64xbf16>
    %cst = arith.constant dense<0.000000e+00> : vector<30x64xf32>
    %4 = tpu.matmul %2, %3, %cst {dimension_numbers = #tpu.dot_dimension_numbers<[1], [0], [0], [1], [0, 0, 1, 1], [], []>} : vector<30x91xbf16>, vector<91x64xbf16>, vector<30x64xf32> -> vector<30x64xf32>
    %c0_4 = arith.constant 0 : index
    %c0_5 = arith.constant 0 : index
    %5 = vector.load %arg8[%c0_4, %c0_5] : memref<1x64xf32, #tpu.memory_space<vmem>>, vector<1x64xf32>
    %6 = vector.broadcast %5 : vector<1x64xf32> to vector<30x64xf32>
    %7 = arith.addf %4, %6 : vector<30x64xf32>
    %cst_6 = arith.constant 0.000000e+00 : f32
    %8 = vector.broadcast %cst_6 : f32 to vector<30x64xf32>
    %9 = arith.cmpf oge, %7, %8 : vector<30x64xf32>
    %cst_7 = arith.constant 2.000000e-01 : f32
    %10 = vector.broadcast %cst_7 : f32 to vector<30x64xf32>
    %11 = arith.mulf %10, %7 : vector<30x64xf32>
    %12 = arith.select %9, %7, %11 : vector<30x64xi1>, vector<30x64xf32>
    %c0_8 = arith.constant 0 : index
    %c0_9 = arith.constant 0 : index
    %13 = vector.load %arg2[%c0_8, %c0_9] : memref<19x30xf32, #tpu.memory_space<vmem>>, vector<19x30xf32>
    %cst_10 = arith.constant dense<0.000000e+00> : vector<19x64xf32>
    %14 = tpu.matmul %13, %12, %cst_10 {dimension_numbers = #tpu.dot_dimension_numbers<[1], [0], [0], [1], [0, 0, 1, 1], [], []>} : vector<19x30xf32>, vector<30x64xf32>, vector<19x64xf32> -> vector<19x64xf32>
    %15 = arith.truncf %14 : vector<19x64xf32> to vector<19x64xbf16>
    %16 = vector.extract_strided_slice %15 {offsets = [0, 0], sizes = [13, 64], strides = [1, 1]} : vector<19x64xbf16> to vector<13x64xbf16>
    %c0_11 = arith.constant 0 : index
    %c0_12 = arith.constant 0 : index
    %c0_13 = arith.constant 0 : index
    %17 = vector.load %arg9[%c0_11, %c0_12, %c0_13] : memref<7x64x128xbf16, #tpu.memory_space<vmem>>, vector<1x64x128xbf16>
    %18 = vector.shape_cast %17 : vector<1x64x128xbf16> to vector<64x128xbf16>
    %cst_14 = arith.constant dense<0.000000e+00> : vector<13x128xf32>
    %19 = tpu.matmul %16, %18, %cst_14 {dimension_numbers = #tpu.dot_dimension_numbers<[1], [0], [0], [1], [0, 0, 1, 1], [], []>} : vector<13x64xbf16>, vector<64x128xbf16>, vector<13x128xf32> -> vector<13x128xf32>
    %20 = vector.extract_strided_slice %15 {offsets = [1, 0], sizes = [13, 64], strides = [1, 1]} : vector<19x64xbf16> to vector<13x64xbf16>
    %c1 = arith.constant 1 : index
    %c0_15 = arith.constant 0 : index
    %c0_16 = arith.constant 0 : index
    %21 = vector.load %arg9[%c1, %c0_15, %c0_16] : memref<7x64x128xbf16, #tpu.memory_space<vmem>>, vector<1x64x128xbf16>
    %22 = vector.shape_cast %21 : vector<1x64x128xbf16> to vector<64x128xbf16>
    %cst_17 = arith.constant dense<0.000000e+00> : vector<13x128xf32>
    %23 = tpu.matmul %20, %22, %cst_17 {dimension_numbers = #tpu.dot_dimension_numbers<[1], [0], [0], [1], [0, 0, 1, 1], [], []>} : vector<13x64xbf16>, vector<64x128xbf16>, vector<13x128xf32> -> vector<13x128xf32>
    %24 = arith.addf %19, %23 : vector<13x128xf32>
    %25 = vector.extract_strided_slice %15 {offsets = [2, 0], sizes = [13, 64], strides = [1, 1]} : vector<19x64xbf16> to vector<13x64xbf16>
    %c2 = arith.constant 2 : index
    %c0_18 = arith.constant 0 : index
    %c0_19 = arith.constant 0 : index
    %26 = vector.load %arg9[%c2, %c0_18, %c0_19] : memref<7x64x128xbf16, #tpu.memory_space<vmem>>, vector<1x64x128xbf16>
    %27 = vector.shape_cast %26 : vector<1x64x128xbf16> to vector<64x128xbf16>
    %cst_20 = arith.constant dense<0.000000e+00> : vector<13x128xf32>
    %28 = tpu.matmul %25, %27, %cst_20 {dimension_numbers = #tpu.dot_dimension_numbers<[1], [0], [0], [1], [0, 0, 1, 1], [], []>} : vector<13x64xbf16>, vector<64x128xbf16>, vector<13x128xf32> -> vector<13x128xf32>
    %29 = arith.addf %24, %28 : vector<13x128xf32>
    %30 = vector.extract_strided_slice %15 {offsets = [3, 0], sizes = [13, 64], strides = [1, 1]} : vector<19x64xbf16> to vector<13x64xbf16>
    %c3 = arith.constant 3 : index
    %c0_21 = arith.constant 0 : index
    %c0_22 = arith.constant 0 : index
    %31 = vector.load %arg9[%c3, %c0_21, %c0_22] : memref<7x64x128xbf16, #tpu.memory_space<vmem>>, vector<1x64x128xbf16>
    %32 = vector.shape_cast %31 : vector<1x64x128xbf16> to vector<64x128xbf16>
    %cst_23 = arith.constant dense<0.000000e+00> : vector<13x128xf32>
    %33 = tpu.matmul %30, %32, %cst_23 {dimension_numbers = #tpu.dot_dimension_numbers<[1], [0], [0], [1], [0, 0, 1, 1], [], []>} : vector<13x64xbf16>, vector<64x128xbf16>, vector<13x128xf32> -> vector<13x128xf32>
    %34 = arith.addf %29, %33 : vector<13x128xf32>
    %35 = vector.extract_strided_slice %15 {offsets = [4, 0], sizes = [13, 64], strides = [1, 1]} : vector<19x64xbf16> to vector<13x64xbf16>
    %c4 = arith.constant 4 : index
    %c0_24 = arith.constant 0 : index
    %c0_25 = arith.constant 0 : index
    %36 = vector.load %arg9[%c4, %c0_24, %c0_25] : memref<7x64x128xbf16, #tpu.memory_space<vmem>>, vector<1x64x128xbf16>
    %37 = vector.shape_cast %36 : vector<1x64x128xbf16> to vector<64x128xbf16>
    %cst_26 = arith.constant dense<0.000000e+00> : vector<13x128xf32>
    %38 = tpu.matmul %35, %37, %cst_26 {dimension_numbers = #tpu.dot_dimension_numbers<[1], [0], [0], [1], [0, 0, 1, 1], [], []>} : vector<13x64xbf16>, vector<64x128xbf16>, vector<13x128xf32> -> vector<13x128xf32>
    %39 = arith.addf %34, %38 : vector<13x128xf32>
    %40 = vector.extract_strided_slice %15 {offsets = [5, 0], sizes = [13, 64], strides = [1, 1]} : vector<19x64xbf16> to vector<13x64xbf16>
    %c5 = arith.constant 5 : index
    %c0_27 = arith.constant 0 : index
    %c0_28 = arith.constant 0 : index
    %41 = vector.load %arg9[%c5, %c0_27, %c0_28] : memref<7x64x128xbf16, #tpu.memory_space<vmem>>, vector<1x64x128xbf16>
    %42 = vector.shape_cast %41 : vector<1x64x128xbf16> to vector<64x128xbf16>
    %cst_29 = arith.constant dense<0.000000e+00> : vector<13x128xf32>
    %43 = tpu.matmul %40, %42, %cst_29 {dimension_numbers = #tpu.dot_dimension_numbers<[1], [0], [0], [1], [0, 0, 1, 1], [], []>} : vector<13x64xbf16>, vector<64x128xbf16>, vector<13x128xf32> -> vector<13x128xf32>
    %44 = arith.addf %39, %43 : vector<13x128xf32>
    %45 = vector.extract_strided_slice %15 {offsets = [6, 0], sizes = [13, 64], strides = [1, 1]} : vector<19x64xbf16> to vector<13x64xbf16>
    %c6 = arith.constant 6 : index
    %c0_30 = arith.constant 0 : index
    %c0_31 = arith.constant 0 : index
    %46 = vector.load %arg9[%c6, %c0_30, %c0_31] : memref<7x64x128xbf16, #tpu.memory_space<vmem>>, vector<1x64x128xbf16>
    %47 = vector.shape_cast %46 : vector<1x64x128xbf16> to vector<64x128xbf16>
    %cst_32 = arith.constant dense<0.000000e+00> : vector<13x128xf32>
    %48 = tpu.matmul %45, %47, %cst_32 {dimension_numbers = #tpu.dot_dimension_numbers<[1], [0], [0], [1], [0, 0, 1, 1], [], []>} : vector<13x64xbf16>, vector<64x128xbf16>, vector<13x128xf32> -> vector<13x128xf32>
    %49 = arith.addf %44, %48 : vector<13x128xf32>
    %c0_33 = arith.constant 0 : index
    %c0_34 = arith.constant 0 : index
    %50 = vector.load %arg10[%c0_33, %c0_34] : memref<1x128xf32, #tpu.memory_space<vmem>>, vector<1x128xf32>
    %51 = vector.broadcast %50 : vector<1x128xf32> to vector<13x128xf32>
    %52 = arith.addf %49, %51 : vector<13x128xf32>
    %cst_35 = arith.constant 0.000000e+00 : f32
    %53 = vector.broadcast %cst_35 : f32 to vector<13x128xf32>
    %54 = arith.cmpf oge, %52, %53 : vector<13x128xf32>
    %cst_36 = arith.constant 2.000000e-01 : f32
    %55 = vector.broadcast %cst_36 : f32 to vector<13x128xf32>
    %56 = arith.mulf %55, %52 : vector<13x128xf32>
    %57 = arith.select %54, %52, %56 : vector<13x128xi1>, vector<13x128xf32>
    %c0_37 = arith.constant 0 : index
    %c0_38 = arith.constant 0 : index
    %58 = vector.load %arg3[%c0_37, %c0_38] : memref<10x13xf32, #tpu.memory_space<vmem>>, vector<10x13xf32>
    %cst_39 = arith.constant dense<0.000000e+00> : vector<10x128xf32>
    %59 = tpu.matmul %58, %57, %cst_39 {dimension_numbers = #tpu.dot_dimension_numbers<[1], [0], [0], [1], [0, 0, 1, 1], [], []>} : vector<10x13xf32>, vector<13x128xf32>, vector<10x128xf32> -> vector<10x128xf32>
    %60 = arith.truncf %59 : vector<10x128xf32> to vector<10x128xbf16>
    %61 = vector.extract_strided_slice %60 {offsets = [0, 0], sizes = [4, 128], strides = [1, 1]} : vector<10x128xbf16> to vector<4x128xbf16>
    %c0_40 = arith.constant 0 : index
    %c0_41 = arith.constant 0 : index
    %c0_42 = arith.constant 0 : index
    %62 = vector.load %arg11[%c0_40, %c0_41, %c0_42] : memref<7x128x256xbf16, #tpu.memory_space<vmem>>, vector<1x128x256xbf16>
    %63 = vector.shape_cast %62 : vector<1x128x256xbf16> to vector<128x256xbf16>
    %cst_43 = arith.constant dense<0.000000e+00> : vector<4x256xf32>
    %64 = tpu.matmul %61, %63, %cst_43 {dimension_numbers = #tpu.dot_dimension_numbers<[1], [0], [0], [1], [0, 0, 1, 1], [], []>} : vector<4x128xbf16>, vector<128x256xbf16>, vector<4x256xf32> -> vector<4x256xf32>
    %65 = vector.extract_strided_slice %60 {offsets = [1, 0], sizes = [4, 128], strides = [1, 1]} : vector<10x128xbf16> to vector<4x128xbf16>
    %c1_44 = arith.constant 1 : index
    %c0_45 = arith.constant 0 : index
    %c0_46 = arith.constant 0 : index
    %66 = vector.load %arg11[%c1_44, %c0_45, %c0_46] : memref<7x128x256xbf16, #tpu.memory_space<vmem>>, vector<1x128x256xbf16>
    %67 = vector.shape_cast %66 : vector<1x128x256xbf16> to vector<128x256xbf16>
    %cst_47 = arith.constant dense<0.000000e+00> : vector<4x256xf32>
    %68 = tpu.matmul %65, %67, %cst_47 {dimension_numbers = #tpu.dot_dimension_numbers<[1], [0], [0], [1], [0, 0, 1, 1], [], []>} : vector<4x128xbf16>, vector<128x256xbf16>, vector<4x256xf32> -> vector<4x256xf32>
    %69 = arith.addf %64, %68 : vector<4x256xf32>
    %70 = vector.extract_strided_slice %60 {offsets = [2, 0], sizes = [4, 128], strides = [1, 1]} : vector<10x128xbf16> to vector<4x128xbf16>
    %c2_48 = arith.constant 2 : index
    %c0_49 = arith.constant 0 : index
    %c0_50 = arith.constant 0 : index
    %71 = vector.load %arg11[%c2_48, %c0_49, %c0_50] : memref<7x128x256xbf16, #tpu.memory_space<vmem>>, vector<1x128x256xbf16>
    %72 = vector.shape_cast %71 : vector<1x128x256xbf16> to vector<128x256xbf16>
    %cst_51 = arith.constant dense<0.000000e+00> : vector<4x256xf32>
    %73 = tpu.matmul %70, %72, %cst_51 {dimension_numbers = #tpu.dot_dimension_numbers<[1], [0], [0], [1], [0, 0, 1, 1], [], []>} : vector<4x128xbf16>, vector<128x256xbf16>, vector<4x256xf32> -> vector<4x256xf32>
    %74 = arith.addf %69, %73 : vector<4x256xf32>
    %75 = vector.extract_strided_slice %60 {offsets = [3, 0], sizes = [4, 128], strides = [1, 1]} : vector<10x128xbf16> to vector<4x128xbf16>
    %c3_52 = arith.constant 3 : index
    %c0_53 = arith.constant 0 : index
    %c0_54 = arith.constant 0 : index
    %76 = vector.load %arg11[%c3_52, %c0_53, %c0_54] : memref<7x128x256xbf16, #tpu.memory_space<vmem>>, vector<1x128x256xbf16>
    %77 = vector.shape_cast %76 : vector<1x128x256xbf16> to vector<128x256xbf16>
    %cst_55 = arith.constant dense<0.000000e+00> : vector<4x256xf32>
    %78 = tpu.matmul %75, %77, %cst_55 {dimension_numbers = #tpu.dot_dimension_numbers<[1], [0], [0], [1], [0, 0, 1, 1], [], []>} : vector<4x128xbf16>, vector<128x256xbf16>, vector<4x256xf32> -> vector<4x256xf32>
    %79 = arith.addf %74, %78 : vector<4x256xf32>
    %80 = vector.extract_strided_slice %60 {offsets = [4, 0], sizes = [4, 128], strides = [1, 1]} : vector<10x128xbf16> to vector<4x128xbf16>
    %c4_56 = arith.constant 4 : index
    %c0_57 = arith.constant 0 : index
    %c0_58 = arith.constant 0 : index
    %81 = vector.load %arg11[%c4_56, %c0_57, %c0_58] : memref<7x128x256xbf16, #tpu.memory_space<vmem>>, vector<1x128x256xbf16>
    %82 = vector.shape_cast %81 : vector<1x128x256xbf16> to vector<128x256xbf16>
    %cst_59 = arith.constant dense<0.000000e+00> : vector<4x256xf32>
    %83 = tpu.matmul %80, %82, %cst_59 {dimension_numbers = #tpu.dot_dimension_numbers<[1], [0], [0], [1], [0, 0, 1, 1], [], []>} : vector<4x128xbf16>, vector<128x256xbf16>, vector<4x256xf32> -> vector<4x256xf32>
    %84 = arith.addf %79, %83 : vector<4x256xf32>
    %85 = vector.extract_strided_slice %60 {offsets = [5, 0], sizes = [4, 128], strides = [1, 1]} : vector<10x128xbf16> to vector<4x128xbf16>
    %c5_60 = arith.constant 5 : index
    %c0_61 = arith.constant 0 : index
    %c0_62 = arith.constant 0 : index
    %86 = vector.load %arg11[%c5_60, %c0_61, %c0_62] : memref<7x128x256xbf16, #tpu.memory_space<vmem>>, vector<1x128x256xbf16>
    %87 = vector.shape_cast %86 : vector<1x128x256xbf16> to vector<128x256xbf16>
    %cst_63 = arith.constant dense<0.000000e+00> : vector<4x256xf32>
    %88 = tpu.matmul %85, %87, %cst_63 {dimension_numbers = #tpu.dot_dimension_numbers<[1], [0], [0], [1], [0, 0, 1, 1], [], []>} : vector<4x128xbf16>, vector<128x256xbf16>, vector<4x256xf32> -> vector<4x256xf32>
    %89 = arith.addf %84, %88 : vector<4x256xf32>
    %90 = vector.extract_strided_slice %60 {offsets = [6, 0], sizes = [4, 128], strides = [1, 1]} : vector<10x128xbf16> to vector<4x128xbf16>
    %c6_64 = arith.constant 6 : index
    %c0_65 = arith.constant 0 : index
    %c0_66 = arith.constant 0 : index
    %91 = vector.load %arg11[%c6_64, %c0_65, %c0_66] : memref<7x128x256xbf16, #tpu.memory_space<vmem>>, vector<1x128x256xbf16>
    %92 = vector.shape_cast %91 : vector<1x128x256xbf16> to vector<128x256xbf16>
    %cst_67 = arith.constant dense<0.000000e+00> : vector<4x256xf32>
    %93 = tpu.matmul %90, %92, %cst_67 {dimension_numbers = #tpu.dot_dimension_numbers<[1], [0], [0], [1], [0, 0, 1, 1], [], []>} : vector<4x128xbf16>, vector<128x256xbf16>, vector<4x256xf32> -> vector<4x256xf32>
    %94 = arith.addf %89, %93 : vector<4x256xf32>
    %c0_68 = arith.constant 0 : index
    %c0_69 = arith.constant 0 : index
    %95 = vector.load %arg12[%c0_68, %c0_69] : memref<1x256xf32, #tpu.memory_space<vmem>>, vector<1x256xf32>
    %96 = vector.broadcast %95 : vector<1x256xf32> to vector<4x256xf32>
    %97 = arith.addf %94, %96 : vector<4x256xf32>
    %cst_70 = arith.constant 0.000000e+00 : f32
    %98 = vector.broadcast %cst_70 : f32 to vector<4x256xf32>
    %99 = arith.cmpf oge, %97, %98 : vector<4x256xf32>
    %cst_71 = arith.constant 2.000000e-01 : f32
    %100 = vector.broadcast %cst_71 : f32 to vector<4x256xf32>
    %101 = arith.mulf %100, %97 : vector<4x256xf32>
    %102 = arith.select %99, %97, %101 : vector<4x256xi1>, vector<4x256xf32>
    %c0_72 = arith.constant 0 : index
    %c0_73 = arith.constant 0 : index
    %103 = vector.load %arg4[%c0_72, %c0_73] : memref<10x4xf32, #tpu.memory_space<vmem>>, vector<10x4xf32>
    %cst_74 = arith.constant dense<0.000000e+00> : vector<10x256xf32>
    %104 = tpu.matmul %103, %102, %cst_74 {dimension_numbers = #tpu.dot_dimension_numbers<[1], [0], [0], [1], [0, 0, 1, 1], [], []>} : vector<10x4xf32>, vector<4x256xf32>, vector<10x256xf32> -> vector<10x256xf32>
    %105 = arith.truncf %104 : vector<10x256xf32> to vector<10x256xbf16>
    %106 = vector.extract_strided_slice %105 {offsets = [0, 0], sizes = [4, 256], strides = [1, 1]} : vector<10x256xbf16> to vector<4x256xbf16>
    %c0_75 = arith.constant 0 : index
    %c0_76 = arith.constant 0 : index
    %c0_77 = arith.constant 0 : index
    %107 = vector.load %arg13[%c0_75, %c0_76, %c0_77] : memref<7x256x256xbf16, #tpu.memory_space<vmem>>, vector<1x256x256xbf16>
    %108 = vector.shape_cast %107 : vector<1x256x256xbf16> to vector<256x256xbf16>
    %cst_78 = arith.constant dense<0.000000e+00> : vector<4x256xf32>
    %109 = tpu.matmul %106, %108, %cst_78 {dimension_numbers = #tpu.dot_dimension_numbers<[1], [0], [0], [1], [0, 0, 1, 1], [], []>} : vector<4x256xbf16>, vector<256x256xbf16>, vector<4x256xf32> -> vector<4x256xf32>
    %110 = vector.extract_strided_slice %105 {offsets = [1, 0], sizes = [4, 256], strides = [1, 1]} : vector<10x256xbf16> to vector<4x256xbf16>
    %c1_79 = arith.constant 1 : index
    %c0_80 = arith.constant 0 : index
    %c0_81 = arith.constant 0 : index
    %111 = vector.load %arg13[%c1_79, %c0_80, %c0_81] : memref<7x256x256xbf16, #tpu.memory_space<vmem>>, vector<1x256x256xbf16>
    %112 = vector.shape_cast %111 : vector<1x256x256xbf16> to vector<256x256xbf16>
    %cst_82 = arith.constant dense<0.000000e+00> : vector<4x256xf32>
    %113 = tpu.matmul %110, %112, %cst_82 {dimension_numbers = #tpu.dot_dimension_numbers<[1], [0], [0], [1], [0, 0, 1, 1], [], []>} : vector<4x256xbf16>, vector<256x256xbf16>, vector<4x256xf32> -> vector<4x256xf32>
    %114 = arith.addf %109, %113 : vector<4x256xf32>
    %115 = vector.extract_strided_slice %105 {offsets = [2, 0], sizes = [4, 256], strides = [1, 1]} : vector<10x256xbf16> to vector<4x256xbf16>
    %c2_83 = arith.constant 2 : index
    %c0_84 = arith.constant 0 : index
    %c0_85 = arith.constant 0 : index
    %116 = vector.load %arg13[%c2_83, %c0_84, %c0_85] : memref<7x256x256xbf16, #tpu.memory_space<vmem>>, vector<1x256x256xbf16>
    %117 = vector.shape_cast %116 : vector<1x256x256xbf16> to vector<256x256xbf16>
    %cst_86 = arith.constant dense<0.000000e+00> : vector<4x256xf32>
    %118 = tpu.matmul %115, %117, %cst_86 {dimension_numbers = #tpu.dot_dimension_numbers<[1], [0], [0], [1], [0, 0, 1, 1], [], []>} : vector<4x256xbf16>, vector<256x256xbf16>, vector<4x256xf32> -> vector<4x256xf32>
    %119 = arith.addf %114, %118 : vector<4x256xf32>
    %120 = vector.extract_strided_slice %105 {offsets = [3, 0], sizes = [4, 256], strides = [1, 1]} : vector<10x256xbf16> to vector<4x256xbf16>
    %c3_87 = arith.constant 3 : index
    %c0_88 = arith.constant 0 : index
    %c0_89 = arith.constant 0 : index
    %121 = vector.load %arg13[%c3_87, %c0_88, %c0_89] : memref<7x256x256xbf16, #tpu.memory_space<vmem>>, vector<1x256x256xbf16>
    %122 = vector.shape_cast %121 : vector<1x256x256xbf16> to vector<256x256xbf16>
    %cst_90 = arith.constant dense<0.000000e+00> : vector<4x256xf32>
    %123 = tpu.matmul %120, %122, %cst_90 {dimension_numbers = #tpu.dot_dimension_numbers<[1], [0], [0], [1], [0, 0, 1, 1], [], []>} : vector<4x256xbf16>, vector<256x256xbf16>, vector<4x256xf32> -> vector<4x256xf32>
    %124 = arith.addf %119, %123 : vector<4x256xf32>
    %125 = vector.extract_strided_slice %105 {offsets = [4, 0], sizes = [4, 256], strides = [1, 1]} : vector<10x256xbf16> to vector<4x256xbf16>
    %c4_91 = arith.constant 4 : index
    %c0_92 = arith.constant 0 : index
    %c0_93 = arith.constant 0 : index
    %126 = vector.load %arg13[%c4_91, %c0_92, %c0_93] : memref<7x256x256xbf16, #tpu.memory_space<vmem>>, vector<1x256x256xbf16>
    %127 = vector.shape_cast %126 : vector<1x256x256xbf16> to vector<256x256xbf16>
    %cst_94 = arith.constant dense<0.000000e+00> : vector<4x256xf32>
    %128 = tpu.matmul %125, %127, %cst_94 {dimension_numbers = #tpu.dot_dimension_numbers<[1], [0], [0], [1], [0, 0, 1, 1], [], []>} : vector<4x256xbf16>, vector<256x256xbf16>, vector<4x256xf32> -> vector<4x256xf32>
    %129 = arith.addf %124, %128 : vector<4x256xf32>
    %130 = vector.extract_strided_slice %105 {offsets = [5, 0], sizes = [4, 256], strides = [1, 1]} : vector<10x256xbf16> to vector<4x256xbf16>
    %c5_95 = arith.constant 5 : index
    %c0_96 = arith.constant 0 : index
    %c0_97 = arith.constant 0 : index
    %131 = vector.load %arg13[%c5_95, %c0_96, %c0_97] : memref<7x256x256xbf16, #tpu.memory_space<vmem>>, vector<1x256x256xbf16>
    %132 = vector.shape_cast %131 : vector<1x256x256xbf16> to vector<256x256xbf16>
    %cst_98 = arith.constant dense<0.000000e+00> : vector<4x256xf32>
    %133 = tpu.matmul %130, %132, %cst_98 {dimension_numbers = #tpu.dot_dimension_numbers<[1], [0], [0], [1], [0, 0, 1, 1], [], []>} : vector<4x256xbf16>, vector<256x256xbf16>, vector<4x256xf32> -> vector<4x256xf32>
    %134 = arith.addf %129, %133 : vector<4x256xf32>
    %135 = vector.extract_strided_slice %105 {offsets = [6, 0], sizes = [4, 256], strides = [1, 1]} : vector<10x256xbf16> to vector<4x256xbf16>
    %c6_99 = arith.constant 6 : index
    %c0_100 = arith.constant 0 : index
    %c0_101 = arith.constant 0 : index
    %136 = vector.load %arg13[%c6_99, %c0_100, %c0_101] : memref<7x256x256xbf16, #tpu.memory_space<vmem>>, vector<1x256x256xbf16>
    %137 = vector.shape_cast %136 : vector<1x256x256xbf16> to vector<256x256xbf16>
    %cst_102 = arith.constant dense<0.000000e+00> : vector<4x256xf32>
    %138 = tpu.matmul %135, %137, %cst_102 {dimension_numbers = #tpu.dot_dimension_numbers<[1], [0], [0], [1], [0, 0, 1, 1], [], []>} : vector<4x256xbf16>, vector<256x256xbf16>, vector<4x256xf32> -> vector<4x256xf32>
    %139 = arith.addf %134, %138 : vector<4x256xf32>
    %c0_103 = arith.constant 0 : index
    %c0_104 = arith.constant 0 : index
    %140 = vector.load %arg14[%c0_103, %c0_104] : memref<1x256xf32, #tpu.memory_space<vmem>>, vector<1x256xf32>
    %141 = vector.broadcast %140 : vector<1x256xf32> to vector<4x256xf32>
    %142 = arith.addf %139, %141 : vector<4x256xf32>
    %cst_105 = arith.constant 0.000000e+00 : f32
    %143 = vector.broadcast %cst_105 : f32 to vector<4x256xf32>
    %144 = arith.cmpf oge, %142, %143 : vector<4x256xf32>
    %cst_106 = arith.constant 2.000000e-01 : f32
    %145 = vector.broadcast %cst_106 : f32 to vector<4x256xf32>
    %146 = arith.mulf %145, %142 : vector<4x256xf32>
    %147 = arith.select %144, %142, %146 : vector<4x256xi1>, vector<4x256xf32>
    %c0_107 = arith.constant 0 : index
    %c0_108 = arith.constant 0 : index
    %148 = vector.load %arg5[%c0_107, %c0_108] : memref<14x4xf32, #tpu.memory_space<vmem>>, vector<14x4xf32>
    %cst_109 = arith.constant dense<0.000000e+00> : vector<14x256xf32>
    %149 = tpu.matmul %148, %147, %cst_109 {dimension_numbers = #tpu.dot_dimension_numbers<[1], [0], [0], [1], [0, 0, 1, 1], [], []>} : vector<14x4xf32>, vector<4x256xf32>, vector<14x256xf32> -> vector<14x256xf32>
    %150 = arith.truncf %149 : vector<14x256xf32> to vector<14x256xbf16>
    %151 = vector.extract_strided_slice %150 {offsets = [0, 0], sizes = [8, 256], strides = [1, 1]} : vector<14x256xbf16> to vector<8x256xbf16>
    %c0_110 = arith.constant 0 : index
    %c0_111 = arith.constant 0 : index
    %c0_112 = arith.constant 0 : index
    %152 = vector.load %arg15[%c0_110, %c0_111, %c0_112] : memref<7x256x128xbf16, #tpu.memory_space<vmem>>, vector<1x256x128xbf16>
    %153 = vector.shape_cast %152 : vector<1x256x128xbf16> to vector<256x128xbf16>
    %cst_113 = arith.constant dense<0.000000e+00> : vector<8x128xf32>
    %154 = tpu.matmul %151, %153, %cst_113 {dimension_numbers = #tpu.dot_dimension_numbers<[1], [0], [0], [1], [0, 0, 1, 1], [], []>} : vector<8x256xbf16>, vector<256x128xbf16>, vector<8x128xf32> -> vector<8x128xf32>
    %155 = vector.extract_strided_slice %150 {offsets = [1, 0], sizes = [8, 256], strides = [1, 1]} : vector<14x256xbf16> to vector<8x256xbf16>
    %c1_114 = arith.constant 1 : index
    %c0_115 = arith.constant 0 : index
    %c0_116 = arith.constant 0 : index
    %156 = vector.load %arg15[%c1_114, %c0_115, %c0_116] : memref<7x256x128xbf16, #tpu.memory_space<vmem>>, vector<1x256x128xbf16>
    %157 = vector.shape_cast %156 : vector<1x256x128xbf16> to vector<256x128xbf16>
    %cst_117 = arith.constant dense<0.000000e+00> : vector<8x128xf32>
    %158 = tpu.matmul %155, %157, %cst_117 {dimension_numbers = #tpu.dot_dimension_numbers<[1], [0], [0], [1], [0, 0, 1, 1], [], []>} : vector<8x256xbf16>, vector<256x128xbf16>, vector<8x128xf32> -> vector<8x128xf32>
    %159 = arith.addf %154, %158 : vector<8x128xf32>
    %160 = vector.extract_strided_slice %150 {offsets = [2, 0], sizes = [8, 256], strides = [1, 1]} : vector<14x256xbf16> to vector<8x256xbf16>
    %c2_118 = arith.constant 2 : index
    %c0_119 = arith.constant 0 : index
    %c0_120 = arith.constant 0 : index
    %161 = vector.load %arg15[%c2_118, %c0_119, %c0_120] : memref<7x256x128xbf16, #tpu.memory_space<vmem>>, vector<1x256x128xbf16>
    %162 = vector.shape_cast %161 : vector<1x256x128xbf16> to vector<256x128xbf16>
    %cst_121 = arith.constant dense<0.000000e+00> : vector<8x128xf32>
    %163 = tpu.matmul %160, %162, %cst_121 {dimension_numbers = #tpu.dot_dimension_numbers<[1], [0], [0], [1], [0, 0, 1, 1], [], []>} : vector<8x256xbf16>, vector<256x128xbf16>, vector<8x128xf32> -> vector<8x128xf32>
    %164 = arith.addf %159, %163 : vector<8x128xf32>
    %165 = vector.extract_strided_slice %150 {offsets = [3, 0], sizes = [8, 256], strides = [1, 1]} : vector<14x256xbf16> to vector<8x256xbf16>
    %c3_122 = arith.constant 3 : index
    %c0_123 = arith.constant 0 : index
    %c0_124 = arith.constant 0 : index
    %166 = vector.load %arg15[%c3_122, %c0_123, %c0_124] : memref<7x256x128xbf16, #tpu.memory_space<vmem>>, vector<1x256x128xbf16>
    %167 = vector.shape_cast %166 : vector<1x256x128xbf16> to vector<256x128xbf16>
    %cst_125 = arith.constant dense<0.000000e+00> : vector<8x128xf32>
    %168 = tpu.matmul %165, %167, %cst_125 {dimension_numbers = #tpu.dot_dimension_numbers<[1], [0], [0], [1], [0, 0, 1, 1], [], []>} : vector<8x256xbf16>, vector<256x128xbf16>, vector<8x128xf32> -> vector<8x128xf32>
    %169 = arith.addf %164, %168 : vector<8x128xf32>
    %170 = vector.extract_strided_slice %150 {offsets = [4, 0], sizes = [8, 256], strides = [1, 1]} : vector<14x256xbf16> to vector<8x256xbf16>
    %c4_126 = arith.constant 4 : index
    %c0_127 = arith.constant 0 : index
    %c0_128 = arith.constant 0 : index
    %171 = vector.load %arg15[%c4_126, %c0_127, %c0_128] : memref<7x256x128xbf16, #tpu.memory_space<vmem>>, vector<1x256x128xbf16>
    %172 = vector.shape_cast %171 : vector<1x256x128xbf16> to vector<256x128xbf16>
    %cst_129 = arith.constant dense<0.000000e+00> : vector<8x128xf32>
    %173 = tpu.matmul %170, %172, %cst_129 {dimension_numbers = #tpu.dot_dimension_numbers<[1], [0], [0], [1], [0, 0, 1, 1], [], []>} : vector<8x256xbf16>, vector<256x128xbf16>, vector<8x128xf32> -> vector<8x128xf32>
    %174 = arith.addf %169, %173 : vector<8x128xf32>
    %175 = vector.extract_strided_slice %150 {offsets = [5, 0], sizes = [8, 256], strides = [1, 1]} : vector<14x256xbf16> to vector<8x256xbf16>
    %c5_130 = arith.constant 5 : index
    %c0_131 = arith.constant 0 : index
    %c0_132 = arith.constant 0 : index
    %176 = vector.load %arg15[%c5_130, %c0_131, %c0_132] : memref<7x256x128xbf16, #tpu.memory_space<vmem>>, vector<1x256x128xbf16>
    %177 = vector.shape_cast %176 : vector<1x256x128xbf16> to vector<256x128xbf16>
    %cst_133 = arith.constant dense<0.000000e+00> : vector<8x128xf32>
    %178 = tpu.matmul %175, %177, %cst_133 {dimension_numbers = #tpu.dot_dimension_numbers<[1], [0], [0], [1], [0, 0, 1, 1], [], []>} : vector<8x256xbf16>, vector<256x128xbf16>, vector<8x128xf32> -> vector<8x128xf32>
    %179 = arith.addf %174, %178 : vector<8x128xf32>
    %180 = vector.extract_strided_slice %150 {offsets = [6, 0], sizes = [8, 256], strides = [1, 1]} : vector<14x256xbf16> to vector<8x256xbf16>
    %c6_134 = arith.constant 6 : index
    %c0_135 = arith.constant 0 : index
    %c0_136 = arith.constant 0 : index
    %181 = vector.load %arg15[%c6_134, %c0_135, %c0_136] : memref<7x256x128xbf16, #tpu.memory_space<vmem>>, vector<1x256x128xbf16>
    %182 = vector.shape_cast %181 : vector<1x256x128xbf16> to vector<256x128xbf16>
    %cst_137 = arith.constant dense<0.000000e+00> : vector<8x128xf32>
    %183 = tpu.matmul %180, %182, %cst_137 {dimension_numbers = #tpu.dot_dimension_numbers<[1], [0], [0], [1], [0, 0, 1, 1], [], []>} : vector<8x256xbf16>, vector<256x128xbf16>, vector<8x128xf32> -> vector<8x128xf32>
    %184 = arith.addf %179, %183 : vector<8x128xf32>
    %c0_138 = arith.constant 0 : index
    %c0_139 = arith.constant 0 : index
    %185 = vector.load %arg16[%c0_138, %c0_139] : memref<1x128xf32, #tpu.memory_space<vmem>>, vector<1x128xf32>
    %186 = vector.broadcast %185 : vector<1x128xf32> to vector<8x128xf32>
    %187 = arith.addf %184, %186 : vector<8x128xf32>
    %cst_140 = arith.constant 0.000000e+00 : f32
    %188 = vector.broadcast %cst_140 : f32 to vector<8x128xf32>
    %189 = arith.cmpf oge, %187, %188 : vector<8x128xf32>
    %cst_141 = arith.constant 2.000000e-01 : f32
    %190 = vector.broadcast %cst_141 : f32 to vector<8x128xf32>
    %191 = arith.mulf %190, %187 : vector<8x128xf32>
    %192 = arith.select %189, %187, %191 : vector<8x128xi1>, vector<8x128xf32>
    %c0_142 = arith.constant 0 : index
    %c0_143 = arith.constant 0 : index
    %193 = vector.load %arg6[%c0_142, %c0_143] : memref<31x8xf32, #tpu.memory_space<vmem>>, vector<31x8xf32>
    %cst_144 = arith.constant dense<0.000000e+00> : vector<31x128xf32>
    %194 = tpu.matmul %193, %192, %cst_144 {dimension_numbers = #tpu.dot_dimension_numbers<[1], [0], [0], [1], [0, 0, 1, 1], [], []>} : vector<31x8xf32>, vector<8x128xf32>, vector<31x128xf32> -> vector<31x128xf32>
    %195 = arith.truncf %194 : vector<31x128xf32> to vector<31x128xbf16>
    %196 = vector.extract_strided_slice %195 {offsets = [0, 0], sizes = [25, 128], strides = [1, 1]} : vector<31x128xbf16> to vector<25x128xbf16>
    %c0_145 = arith.constant 0 : index
    %c0_146 = arith.constant 0 : index
    %c0_147 = arith.constant 0 : index
    %197 = vector.load %arg17[%c0_145, %c0_146, %c0_147] : memref<7x128x24xbf16, #tpu.memory_space<vmem>>, vector<1x128x24xbf16>
    %198 = vector.shape_cast %197 : vector<1x128x24xbf16> to vector<128x24xbf16>
    %cst_148 = arith.constant dense<0.000000e+00> : vector<25x24xf32>
    %199 = tpu.matmul %196, %198, %cst_148 {dimension_numbers = #tpu.dot_dimension_numbers<[1], [0], [0], [1], [0, 0, 1, 1], [], []>} : vector<25x128xbf16>, vector<128x24xbf16>, vector<25x24xf32> -> vector<25x24xf32>
    %200 = vector.extract_strided_slice %195 {offsets = [1, 0], sizes = [25, 128], strides = [1, 1]} : vector<31x128xbf16> to vector<25x128xbf16>
    %c1_149 = arith.constant 1 : index
    %c0_150 = arith.constant 0 : index
    %c0_151 = arith.constant 0 : index
    %201 = vector.load %arg17[%c1_149, %c0_150, %c0_151] : memref<7x128x24xbf16, #tpu.memory_space<vmem>>, vector<1x128x24xbf16>
    %202 = vector.shape_cast %201 : vector<1x128x24xbf16> to vector<128x24xbf16>
    %cst_152 = arith.constant dense<0.000000e+00> : vector<25x24xf32>
    %203 = tpu.matmul %200, %202, %cst_152 {dimension_numbers = #tpu.dot_dimension_numbers<[1], [0], [0], [1], [0, 0, 1, 1], [], []>} : vector<25x128xbf16>, vector<128x24xbf16>, vector<25x24xf32> -> vector<25x24xf32>
    %204 = arith.addf %199, %203 : vector<25x24xf32>
    %205 = vector.extract_strided_slice %195 {offsets = [2, 0], sizes = [25, 128], strides = [1, 1]} : vector<31x128xbf16> to vector<25x128xbf16>
    %c2_153 = arith.constant 2 : index
    %c0_154 = arith.constant 0 : index
    %c0_155 = arith.constant 0 : index
    %206 = vector.load %arg17[%c2_153, %c0_154, %c0_155] : memref<7x128x24xbf16, #tpu.memory_space<vmem>>, vector<1x128x24xbf16>
    %207 = vector.shape_cast %206 : vector<1x128x24xbf16> to vector<128x24xbf16>
    %cst_156 = arith.constant dense<0.000000e+00> : vector<25x24xf32>
    %208 = tpu.matmul %205, %207, %cst_156 {dimension_numbers = #tpu.dot_dimension_numbers<[1], [0], [0], [1], [0, 0, 1, 1], [], []>} : vector<25x128xbf16>, vector<128x24xbf16>, vector<25x24xf32> -> vector<25x24xf32>
    %209 = arith.addf %204, %208 : vector<25x24xf32>
    %210 = vector.extract_strided_slice %195 {offsets = [3, 0], sizes = [25, 128], strides = [1, 1]} : vector<31x128xbf16> to vector<25x128xbf16>
    %c3_157 = arith.constant 3 : index
    %c0_158 = arith.constant 0 : index
    %c0_159 = arith.constant 0 : index
    %211 = vector.load %arg17[%c3_157, %c0_158, %c0_159] : memref<7x128x24xbf16, #tpu.memory_space<vmem>>, vector<1x128x24xbf16>
    %212 = vector.shape_cast %211 : vector<1x128x24xbf16> to vector<128x24xbf16>
    %cst_160 = arith.constant dense<0.000000e+00> : vector<25x24xf32>
    %213 = tpu.matmul %210, %212, %cst_160 {dimension_numbers = #tpu.dot_dimension_numbers<[1], [0], [0], [1], [0, 0, 1, 1], [], []>} : vector<25x128xbf16>, vector<128x24xbf16>, vector<25x24xf32> -> vector<25x24xf32>
    %214 = arith.addf %209, %213 : vector<25x24xf32>
    %215 = vector.extract_strided_slice %195 {offsets = [4, 0], sizes = [25, 128], strides = [1, 1]} : vector<31x128xbf16> to vector<25x128xbf16>
    %c4_161 = arith.constant 4 : index
    %c0_162 = arith.constant 0 : index
    %c0_163 = arith.constant 0 : index
    %216 = vector.load %arg17[%c4_161, %c0_162, %c0_163] : memref<7x128x24xbf16, #tpu.memory_space<vmem>>, vector<1x128x24xbf16>
    %217 = vector.shape_cast %216 : vector<1x128x24xbf16> to vector<128x24xbf16>
    %cst_164 = arith.constant dense<0.000000e+00> : vector<25x24xf32>
    %218 = tpu.matmul %215, %217, %cst_164 {dimension_numbers = #tpu.dot_dimension_numbers<[1], [0], [0], [1], [0, 0, 1, 1], [], []>} : vector<25x128xbf16>, vector<128x24xbf16>, vector<25x24xf32> -> vector<25x24xf32>
    %219 = arith.addf %214, %218 : vector<25x24xf32>
    %220 = vector.extract_strided_slice %195 {offsets = [5, 0], sizes = [25, 128], strides = [1, 1]} : vector<31x128xbf16> to vector<25x128xbf16>
    %c5_165 = arith.constant 5 : index
    %c0_166 = arith.constant 0 : index
    %c0_167 = arith.constant 0 : index
    %221 = vector.load %arg17[%c5_165, %c0_166, %c0_167] : memref<7x128x24xbf16, #tpu.memory_space<vmem>>, vector<1x128x24xbf16>
    %222 = vector.shape_cast %221 : vector<1x128x24xbf16> to vector<128x24xbf16>
    %cst_168 = arith.constant dense<0.000000e+00> : vector<25x24xf32>
    %223 = tpu.matmul %220, %222, %cst_168 {dimension_numbers = #tpu.dot_dimension_numbers<[1], [0], [0], [1], [0, 0, 1, 1], [], []>} : vector<25x128xbf16>, vector<128x24xbf16>, vector<25x24xf32> -> vector<25x24xf32>
    %224 = arith.addf %219, %223 : vector<25x24xf32>
    %225 = vector.extract_strided_slice %195 {offsets = [6, 0], sizes = [25, 128], strides = [1, 1]} : vector<31x128xbf16> to vector<25x128xbf16>
    %c6_169 = arith.constant 6 : index
    %c0_170 = arith.constant 0 : index
    %c0_171 = arith.constant 0 : index
    %226 = vector.load %arg17[%c6_169, %c0_170, %c0_171] : memref<7x128x24xbf16, #tpu.memory_space<vmem>>, vector<1x128x24xbf16>
    %227 = vector.shape_cast %226 : vector<1x128x24xbf16> to vector<128x24xbf16>
    %cst_172 = arith.constant dense<0.000000e+00> : vector<25x24xf32>
    %228 = tpu.matmul %225, %227, %cst_172 {dimension_numbers = #tpu.dot_dimension_numbers<[1], [0], [0], [1], [0, 0, 1, 1], [], []>} : vector<25x128xbf16>, vector<128x24xbf16>, vector<25x24xf32> -> vector<25x24xf32>
    %229 = arith.addf %224, %228 : vector<25x24xf32>
    %c0_173 = arith.constant 0 : index
    %c0_174 = arith.constant 0 : index
    %230 = vector.load %arg18[%c0_173, %c0_174] : memref<1x24xf32, #tpu.memory_space<vmem>>, vector<1x24xf32>
    %231 = vector.broadcast %230 : vector<1x24xf32> to vector<25x24xf32>
    %232 = arith.addf %229, %231 : vector<25x24xf32>
    %c0_175 = arith.constant 0 : index
    %c0_176 = arith.constant 0 : index
    %c0_177 = arith.constant 0 : index
    %233 = vector.load %arg19[%c0_175, %c0_176, %c0_177] : memref<1x25x24xf32, #tpu.memory_space<vmem>>, vector<1x25x24xf32>
    %234 = vector.shape_cast %233 : vector<1x25x24xf32> to vector<25x24xf32>
    %235 = vector.shape_cast %232 : vector<25x24xf32> to vector<1x25x24xf32>
    tpu.vector_store %arg19[%c0_175, %c0_176, %c0_177], %235 {strides = array<i32>} : memref<1x25x24xf32, #tpu.memory_space<vmem>>, vector<1x25x24xf32>,
    return
  }
  func.func @transform_0(%arg0: i32) -> (i32, i32, i32) {
    %c0_i32 = arith.constant 0 : i32
    %c0_i32_0 = arith.constant 0 : i32
    %c0_i32_1 = arith.constant 0 : i32
    return %arg0, %c0_i32, %c0_i32_0 : i32, i32, i32
  }
  func.func @transform_1(%arg0: i32) -> (i32, i32) {
    %c0_i32 = arith.constant 0 : i32
    %c0_i32_0 = arith.constant 0 : i32
    %c0_i32_1 = arith.constant 0 : i32
    return %c0_i32, %c0_i32_0 : i32, i32
  }
  func.func @transform_2(%arg0: i32) -> (i32, i32) {
    %c0_i32 = arith.constant 0 : i32
    %c0_i32_0 = arith.constant 0 : i32
    %c0_i32_1 = arith.constant 0 : i32
    return %c0_i32, %c0_i32_0 : i32, i32
  }
  func.func @transform_3(%arg0: i32) -> (i32, i32) {
    %c0_i32 = arith.constant 0 : i32
    %c0_i32_0 = arith.constant 0 : i32
    %c0_i32_1 = arith.constant 0 : i32
    return %c0_i32, %c0_i32_0 : i32, i32
  }
  func.func @transform_4(%arg0: i32) -> (i32, i32) {
    %c0_i32 = arith.constant 0 : i32
    %c0_i32_0 = arith.constant 0 : i32
    %c0_i32_1 = arith.constant 0 : i32
    return %c0_i32, %c0_i32_0 : i32, i32
  }
  func.func @transform_5(%arg0: i32) -> (i32, i32) {
    %c0_i32 = arith.constant 0 : i32
    %c0_i32_0 = arith.constant 0 : i32
    %c0_i32_1 = arith.constant 0 : i32
    return %c0_i32, %c0_i32_0 : i32, i32
  }
  func.func @transform_6(%arg0: i32) -> (i32, i32) {
    %c0_i32 = arith.constant 0 : i32
    %c0_i32_0 = arith.constant 0 : i32
    %c0_i32_1 = arith.constant 0 : i32
    return %c0_i32, %c0_i32_0 : i32, i32
  }
  func.func @transform_7(%arg0: i32) -> (i32, i32) {
    %c0_i32 = arith.constant 0 : i32
    %c0_i32_0 = arith.constant 0 : i32
    %c0_i32_1 = arith.constant 0 : i32
    return %c0_i32, %c0_i32_0 : i32, i32
  }
  func.func @transform_8(%arg0: i32) -> (i32, i32, i32) {
    %c0_i32 = arith.constant 0 : i32
    %c0_i32_0 = arith.constant 0 : i32
    %c0_i32_1 = arith.constant 0 : i32
    %c0_i32_2 = arith.constant 0 : i32
    return %c0_i32, %c0_i32_0, %c0_i32_1 : i32, i32, i32
  }
  func.func @transform_9(%arg0: i32) -> (i32, i32) {
    %c0_i32 = arith.constant 0 : i32
    %c0_i32_0 = arith.constant 0 : i32
    %c0_i32_1 = arith.constant 0 : i32
    return %c0_i32, %c0_i32_0 : i32, i32
  }
  func.func @transform_10(%arg0: i32) -> (i32, i32, i32) {
    %c0_i32 = arith.constant 0 : i32
    %c0_i32_0 = arith.constant 0 : i32
    %c0_i32_1 = arith.constant 0 : i32
    %c0_i32_2 = arith.constant 0 : i32
    return %c0_i32, %c0_i32_0, %c0_i32_1 : i32, i32, i32
  }
  func.func @transform_11(%arg0: i32) -> (i32, i32) {
    %c0_i32 = arith.constant 0 : i32
    %c0_i32_0 = arith.constant 0 : i32
    %c0_i32_1 = arith.constant 0 : i32
    return %c0_i32, %c0_i32_0 : i32, i32
  }
  func.func @transform_12(%arg0: i32) -> (i32, i32, i32) {
    %c0_i32 = arith.constant 0 : i32
    %c0_i32_0 = arith.constant 0 : i32
    %c0_i32_1 = arith.constant 0 : i32
    %c0_i32_2 = arith.constant 0 : i32
    return %c0_i32, %c0_i32_0, %c0_i32_1 : i32, i32, i32
  }
  func.func @transform_13(%arg0: i32) -> (i32, i32) {
    %c0_i32 = arith.constant 0 : i32
    %c0_i32_0 = arith.constant 0 : i32
    %c0_i32_1 = arith.constant 0 : i32
    return %c0_i32, %c0_i32_0 : i32, i32
  }
  func.func @transform_14(%arg0: i32) -> (i32, i32, i32) {
    %c0_i32 = arith.constant 0 : i32
    %c0_i32_0 = arith.constant 0 : i32
    %c0_i32_1 = arith.constant 0 : i32
    %c0_i32_2 = arith.constant 0 : i32
    return %c0_i32, %c0_i32_0, %c0_i32_1 : i32, i32, i32
  }
  func.func @transform_15(%arg0: i32) -> (i32, i32) {
    %c0_i32 = arith.constant 0 : i32
    %c0_i32_0 = arith.constant 0 : i32
    %c0_i32_1 = arith.constant 0 : i32
    return %c0_i32, %c0_i32_0 : i32, i32
  }
  func.func @transform_16(%arg0: i32) -> (i32, i32, i32) {
    %c0_i32 = arith.constant 0 : i32
    %c0_i32_0 = arith.constant 0 : i32
    %c0_i32_1 = arith.constant 0 : i32
    %c0_i32_2 = arith.constant 0 : i32
    return %c0_i32, %c0_i32_0, %c0_i32_1 : i32, i32, i32
  }
  func.func @transform_17(%arg0: i32) -> (i32, i32) {
    %c0_i32 = arith.constant 0 : i32
    %c0_i32_0 = arith.constant 0 : i32
    %c0_i32_1 = arith.constant 0 : i32
    return %c0_i32, %c0_i32_0 : i32, i32
  }
  func.func @transform_18(%arg0: i32) -> (i32, i32, i32) {
    %c0_i32 = arith.constant 0 : i32
    %c0_i32_0 = arith.constant 0 : i32
    %c0_i32_1 = arith.constant 0 : i32
    return %arg0, %c0_i32, %c0_i32_0 : i32, i32, i32
  }
}

</mosaic_0001>

<llo_original>
// kernel: audio2pose_forward.1
$region0: #{audio2pose_forward.1}
  #allocation0 [shape = 'u32[]', space=smem, size = 0x4, offset = 0x4, fixed_abs, tag = 'smem constant byte address 0x4 - core index']
  #allocation1 [shape = 'u32[72,128]{1,0:T(1,128)}', space=vmem, size = 0x9000, scoped, tag = 'internal scratch']
  %s0 = inlined_call_operand.vmem [shape: f32[2,30,91], index: 0, kind: input, shape index: {}]
  %s1 = inlined_call_operand.vmem [shape: f32[19,30], index: 1, kind: input, shape index: {}]
  %s2 = inlined_call_operand.vmem [shape: f32[10,13], index: 2, kind: input, shape index: {}]
  %s3 = inlined_call_operand.vmem [shape: f32[10,4], index: 3, kind: input, shape index: {}]
  %s4 = inlined_call_operand.vmem [shape: f32[14,4], index: 4, kind: input, shape index: {}]
  %s5 = inlined_call_operand.vmem [shape: f32[31,8], index: 5, kind: input, shape index: {}]
  %s6 = inlined_call_operand.vmem [shape: bf16[91,64], index: 6, kind: input, shape index: {}]
  %s7 = inlined_call_operand.vmem [shape: f32[1,64], index: 7, kind: input, shape index: {}]
  %s8 = inlined_call_operand.vmem [shape: bf16[7,64,128], index: 8, kind: input, shape index: {}]
  %s9 = inlined_call_operand.vmem [shape: f32[1,128], index: 9, kind: input, shape index: {}]
  %s10 = inlined_call_operand.vmem [shape: bf16[7,128,256], index: 10, kind: input, shape index: {}]
  %s11 = inlined_call_operand.vmem [shape: f32[1,256], index: 11, kind: input, shape index: {}]
  %s12 = inlined_call_operand.hbm [shape: bf16[7,256,256], index: 12, kind: input, shape index: {}]
  %s13 = inlined_call_operand.vmem [shape: f32[1,256], index: 13, kind: input, shape index: {}]
  %s14 = inlined_call_operand.hbm [shape: bf16[7,256,128], index: 14, kind: input, shape index: {}]
  %s15 = inlined_call_operand.vmem [shape: f32[1,128], index: 15, kind: input, shape index: {}]
  %s16 = inlined_call_operand.vmem [shape: bf16[7,128,24], index: 16, kind: input, shape index: {}]
  %s17 = inlined_call_operand.vmem [shape: f32[1,24], index: 17, kind: input, shape index: {}]
  %s18 = inlined_call_operand.vmem [shape: f32[2,25,24], index: 18, kind: output, shape index: {}]
  %s19 = sld [smem:[#allocation0]]
  $region113: #{audio2pose_forward.1} parent=0
    _
  %s21 = ssub.s32 1, %s19
  %s22 = scalar_select 0, %s21, %s19
  $region1: #{audio2pose_forward.1} parent=0
    #allocation2 [shape = 'u8[917504]{0}', space=vmem, size = 0xe0000, scoped, tag = 'input window, operand 12, single buffered']
    #allocation3 [shape = 's32[2]{0}', space=sflag, size = 0x8, scoped, tag = 'scoped memory for audio2pose_forward.1']
    #allocation4 [shape = 'u8[458752]{0}', space=vmem, size = 0x70000, scoped, tag = 'input window, operand 14, single buffered']
    #allocation5 [shape = 's32[1]{0}', space=sflag, size = 0x4, scoped, tag = 'scoped memory for audio2pose_forward.1']
    %23 = vsyncpa [#allocation3], 0
    %24 = vsyncpa [#allocation5], 0
    loop: start=0, step=1, limit=4
    $region2: #{audio2pose_forward.1} parent=1 // loop_pre_header
      _
    $region3: #{audio2pose_forward.1} parent=1 // loop_header
      %s26 = sphi 0, %s30
      %p27 = scmp.ge.s32.totalorder %s26, 4
      %s36 = sphi 0, %s38
      %s39 = sphi 0, %s36
      %s40 = sphi 0, %s39
      %s56 = sphi 0, %s40
      %s60 = sphi 0, %s60
      %s62 = sphi 0, %s60
      %s63 = sphi 0, %s62
      %s77 = sphi 0, %s63
      %s81 = sphi 0, %s81
      %s83 = sphi 0, %s81
      %s84 = sphi 0, %s83
      %s98 = sphi 0, %s84
      %s102 = sphi 0, %s102
      %s104 = sphi 0, %s102
      %s105 = sphi 0, %s104
      %s119 = sphi 0, %s105
      %s123 = sphi 0, %s123
      %s125 = sphi 0, %s123
      %s126 = sphi 0, %s125
      %s140 = sphi 0, %s126
      %s144 = sphi 0, %s144
      %s146 = sphi 0, %s144
      %s147 = sphi 0, %s146
      %s161 = sphi 0, %s147
      %s165 = sphi 0, %s165
      %s167 = sphi 0, %s165
      %s168 = sphi 0, %s167
      %s182 = sphi 0, %s168
      %s186 = sphi 0, %s186
      %s188 = sphi 0, %s186
      %s189 = sphi 0, %s188
      %s203 = sphi 0, %s189
      %s207 = sphi 0, %s207
      %s209 = sphi 0, %s207
      %s210 = sphi 0, %s209
      %s224 = sphi 0, %s210
      %s228 = sphi 0, %s228
      %s230 = sphi 0, %s228
      %s231 = sphi 0, %s230
      %s245 = sphi 0, %s231
      %s249 = sphi 0, %s249
      %s251 = sphi 0, %s249
      %s252 = sphi 0, %s251
      %s266 = sphi 0, %s252
      %s270 = sphi 0, %s270
      %s272 = sphi 0, %s270
      %s273 = sphi 0, %s272
      %s287 = sphi 0, %s273
      %s291 = sphi 0, %s291
      %s293 = sphi 0, %s291
      %s294 = sphi 0, %s293
      %s308 = sphi 0, %s294
      %s312 = sphi 0, %s312
      %s314 = sphi 0, %s312
      %s315 = sphi 0, %s314
      %s329 = sphi 0, %s315
      %s333 = sphi 0, %s333
      %s335 = sphi 0, %s333
      %s336 = sphi 0, %s335
      %s350 = sphi 0, %s336
      %s354 = sphi 0, %s354
      %s356 = sphi 0, %s354
      %s357 = sphi 0, %s356
      %s371 = sphi 0, %s357
      %s375 = sphi 0, %s375
      %s377 = sphi 0, %s375
      %s378 = sphi 0, %s377
      %s392 = sphi 0, %s378
      %s396 = sphi 0, %s396
      %s398 = sphi 0, %s396
      %s399 = sphi 0, %s398
      %s413 = sphi 0, %s399
      %s419 = sphi 0, %s421
      %s422 = sphi 0, %s419
      %s423 = sphi 0, %s422
      %s439 = sphi 0, %s423
    $region4: #{audio2pose_forward.1} parent=1 // loop_header_branch
      %29 = sbr.rel (%p27) target = $region8
    $region5: #{audio2pose_forward.1} parent=1 // loop_body
      %s31 = ssub.s32 %s26, 1
      %s32 = ssub.s32 %s26, 2
      %s33 = sadd.s32 %s26, 1
      %s34 = ssub.s32 %s26, %s33
      %p35 = scmp.eq.s32.totalorder %s34, 0
      %s37 = sadd.s32 %s36, 1
      %s38 = scalar_select %p35, %s36, %s37
      %p41 = pneg %p35
      %p42 = scmp.eq.s32.totalorder %s26, 1
      %p43 = por %p41, %p42
      %p44 = scmp.ne.s32.totalorder %s36, %s39
      %p45 = scmp.eq.s32.totalorder %s26, 0
      %p46 = por %p44, %p45
      %p47 = scmp.ne.s32.totalorder %s36, %s39
      %p48 = scmp.eq.s32.totalorder %s31, 1
      %p49 = por %p47, %p48
      %p50 = scmp.ne.s32.totalorder %s39, %s40
      %p51 = scmp.eq.s32.totalorder %s31, 0
      %p52 = por %p50, %p51
      %p53 = scmp.ne.s32.totalorder %s39, %s40
      %p54 = scmp.eq.s32.totalorder %s32, 1
      %p55 = por %p53, %p54
      %p57 = scmp.ne.s32.totalorder %s40, %s56
      %p58 = scmp.eq.s32.totalorder %s32, 0
      %p59 = por %p57, %p58
      %s61 = sadd.s32 %s60, 1
      %p64 = scmp.eq.s32.totalorder %s26, 1
      %p65 = scmp.ne.s32.totalorder %s60, %s62
      %p66 = scmp.eq.s32.totalorder %s26, 0
      %p67 = por %p65, %p66
      %p68 = scmp.ne.s32.totalorder %s60, %s62
      %p69 = scmp.eq.s32.totalorder %s31, 1
      %p70 = por %p68, %p69
      %p71 = scmp.ne.s32.totalorder %s62, %s63
      %p72 = scmp.eq.s32.totalorder %s31, 0
      %p73 = por %p71, %p72
      %p74 = scmp.ne.s32.totalorder %s62, %s63
      %p75 = scmp.eq.s32.totalorder %s32, 1
      %p76 = por %p74, %p75
      %p78 = scmp.ne.s32.totalorder %s63, %s77
      %p79 = scmp.eq.s32.totalorder %s32, 0
      %p80 = por %p78, %p79
      %s82 = sadd.s32 %s81, 1
      %p85 = scmp.eq.s32.totalorder %s26, 1
      %p86 = scmp.ne.s32.totalorder %s81, %s83
      %p87 = scmp.eq.s32.totalorder %s26, 0
      %p88 = por %p86, %p87
      %p89 = scmp.ne.s32.totalorder %s81, %s83
      %p90 = scmp.eq.s32.totalorder %s31, 1
      %p91 = por %p89, %p90
      %p92 = scmp.ne.s32.totalorder %s83, %s84
      %p93 = scmp.eq.s32.totalorder %s31, 0
      %p94 = por %p92, %p93
      %p95 = scmp.ne.s32.totalorder %s83, %s84
      %p96 = scmp.eq.s32.totalorder %s32, 1
      %p97 = por %p95, %p96
      %p99 = scmp.ne.s32.totalorder %s84, %s98
      %p100 = scmp.eq.s32.totalorder %s32, 0
      %p101 = por %p99, %p100
      %s103 = sadd.s32 %s102, 1
      %p106 = scmp.eq.s32.totalorder %s26, 1
      %p107 = scmp.ne.s32.totalorder %s102, %s104
      %p108 = scmp.eq.s32.totalorder %s26, 0
      %p109 = por %p107, %p108
      %p110 = scmp.ne.s32.totalorder %s102, %s104
      %p111 = scmp.eq.s32.totalorder %s31, 1
      %p112 = por %p110, %p111
      %p113 = scmp.ne.s32.totalorder %s104, %s105
      %p114 = scmp.eq.s32.totalorder %s31, 0
      %p115 = por %p113, %p114
      %p116 = scmp.ne.s32.totalorder %s104, %s105
      %p117 = scmp.eq.s32.totalorder %s32, 1
      %p118 = por %p116, %p117
      %p120 = scmp.ne.s32.totalorder %s105, %s119
      %p121 = scmp.eq.s32.totalorder %s32, 0
      %p122 = por %p120, %p121
      %s124 = sadd.s32 %s123, 1
      %p127 = scmp.eq.s32.totalorder %s26, 1
      %p128 = scmp.ne.s32.totalorder %s123, %s125
      %p129 = scmp.eq.s32.totalorder %s26, 0
      %p130 = por %p128, %p129
      %p131 = scmp.ne.s32.totalorder %s123, %s125
      %p132 = scmp.eq.s32.totalorder %s31, 1
      %p133 = por %p131, %p132
      %p134 = scmp.ne.s32.totalorder %s125, %s126
      %p135 = scmp.eq.s32.totalorder %s31, 0
      %p136 = por %p134, %p135
      %p137 = scmp.ne.s32.totalorder %s125, %s126
      %p138 = scmp.eq.s32.totalorder %s32, 1
      %p139 = por %p137, %p138
      %p141 = scmp.ne.s32.totalorder %s126, %s140
      %p142 = scmp.eq.s32.totalorder %s32, 0
      %p143 = por %p141, %p142
      %s145 = sadd.s32 %s144, 1
      %p148 = scmp.eq.s32.totalorder %s26, 1
      %p149 = scmp.ne.s32.totalorder %s144, %s146
      %p150 = scmp.eq.s32.totalorder %s26, 0
      %p151 = por %p149, %p150
      %p152 = scmp.ne.s32.totalorder %s144, %s146
      %p153 = scmp.eq.s32.totalorder %s31, 1
      %p154 = por %p152, %p153
      %p155 = scmp.ne.s32.totalorder %s146, %s147
      %p156 = scmp.eq.s32.totalorder %s31, 0
      %p157 = por %p155, %p156
      %p158 = scmp.ne.s32.totalorder %s146, %s147
      %p159 = scmp.eq.s32.totalorder %s32, 1
      %p160 = por %p158, %p159
      %p162 = scmp.ne.s32.totalorder %s147, %s161
      %p163 = scmp.eq.s32.totalorder %s32, 0
      %p164 = por %p162, %p163
      %s166 = sadd.s32 %s165, 1
      %p169 = scmp.eq.s32.totalorder %s26, 1
      %p170 = scmp.ne.s32.totalorder %s165, %s167
      %p171 = scmp.eq.s32.totalorder %s26, 0
      %p172 = por %p170, %p171
      %p173 = scmp.ne.s32.totalorder %s165, %s167
      %p174 = scmp.eq.s32.totalorder %s31, 1
      %p175 = por %p173, %p174
      %p176 = scmp.ne.s32.totalorder %s167, %s168
      %p177 = scmp.eq.s32.totalorder %s31, 0
      %p178 = por %p176, %p177
      %p179 = scmp.ne.s32.totalorder %s167, %s168
      %p180 = scmp.eq.s32.totalorder %s32, 1
      %p181 = por %p179, %p180
      %p183 = scmp.ne.s32.totalorder %s168, %s182
      %p184 = scmp.eq.s32.totalorder %s32, 0
      %p185 = por %p183, %p184
      %s187 = sadd.s32 %s186, 1
      %p190 = scmp.eq.s32.totalorder %s26, 1
      %p191 = scmp.ne.s32.totalorder %s186, %s188
      %p192 = scmp.eq.s32.totalorder %s26, 0
      %p193 = por %p191, %p192
      %p194 = scmp.ne.s32.totalorder %s186, %s188
      %p195 = scmp.eq.s32.totalorder %s31, 1
      %p196 = por %p194, %p195
      %p197 = scmp.ne.s32.totalorder %s188, %s189
      %p198 = scmp.eq.s32.totalorder %s31, 0
      %p199 = por %p197, %p198
      %p200 = scmp.ne.s32.totalorder %s188, %s189
      %p201 = scmp.eq.s32.totalorder %s32, 1
      %p202 = por %p200, %p201
      %p204 = scmp.ne.s32.totalorder %s189, %s203
      %p205 = scmp.eq.s32.totalorder %s32, 0
      %p206 = por %p204, %p205
      %s208 = sadd.s32 %s207, 1
      %p211 = scmp.eq.s32.totalorder %s26, 1
      %p212 = scmp.ne.s32.totalorder %s207, %s209
      %p213 = scmp.eq.s32.totalorder %s26, 0
      %p214 = por %p212, %p213
      %p215 = scmp.ne.s32.totalorder %s207, %s209
      %p216 = scmp.eq.s32.totalorder %s31, 1
      %p217 = por %p215, %p216
      %p218 = scmp.ne.s32.totalorder %s209, %s210
      %p219 = scmp.eq.s32.totalorder %s31, 0
      %p220 = por %p218, %p219
      %p221 = scmp.ne.s32.totalorder %s209, %s210
      %p222 = scmp.eq.s32.totalorder %s32, 1
      %p223 = por %p221, %p222
      %p225 = scmp.ne.s32.totalorder %s210, %s224
      %p226 = scmp.eq.s32.totalorder %s32, 0
      %p227 = por %p225, %p226
      %s229 = sadd.s32 %s228, 1
      %p232 = scmp.eq.s32.totalorder %s26, 1
      %p233 = scmp.ne.s32.totalorder %s228, %s230
      %p234 = scmp.eq.s32.totalorder %s26, 0
      %p235 = por %p233, %p234
      %p236 = scmp.ne.s32.totalorder %s228, %s230
      %p237 = scmp.eq.s32.totalorder %s31, 1
      %p238 = por %p236, %p237
      %p239 = scmp.ne.s32.totalorder %s230, %s231
      %p240 = scmp.eq.s32.totalorder %s31, 0
      %p241 = por %p239, %p240
      %p242 = scmp.ne.s32.totalorder %s230, %s231
      %p243 = scmp.eq.s32.totalorder %s32, 1
      %p244 = por %p242, %p243
      %p246 = scmp.ne.s32.totalorder %s231, %s245
      %p247 = scmp.eq.s32.totalorder %s32, 0
      %p248 = por %p246, %p247
      %s250 = sadd.s32 %s249, 1
      %p253 = scmp.eq.s32.totalorder %s26, 1
      %p254 = scmp.ne.s32.totalorder %s249, %s251
      %p255 = scmp.eq.s32.totalorder %s26, 0
      %p256 = por %p254, %p255
      %p257 = scmp.ne.s32.totalorder %s249, %s251
      %p258 = scmp.eq.s32.totalorder %s31, 1
      %p259 = por %p257, %p258
      %p260 = scmp.ne.s32.totalorder %s251, %s252
      %p261 = scmp.eq.s32.totalorder %s31, 0
      %p262 = por %p260, %p261
      %p263 = scmp.ne.s32.totalorder %s251, %s252
      %p264 = scmp.eq.s32.totalorder %s32, 1
      %p265 = por %p263, %p264
      %p267 = scmp.ne.s32.totalorder %s252, %s266
      %p268 = scmp.eq.s32.totalorder %s32, 0
      %p269 = por %p267, %p268
      %s271 = sadd.s32 %s270, 1
      %p274 = scmp.eq.s32.totalorder %s26, 1
      %p275 = scmp.ne.s32.totalorder %s270, %s272
      %p276 = scmp.eq.s32.totalorder %s26, 0
      %p277 = por %p275, %p276
      %p278 = scmp.ne.s32.totalorder %s270, %s272
      %p279 = scmp.eq.s32.totalorder %s31, 1
      %p280 = por %p278, %p279
      %p281 = scmp.ne.s32.totalorder %s272, %s273
      %p282 = scmp.eq.s32.totalorder %s31, 0
      %p283 = por %p281, %p282
      %p284 = scmp.ne.s32.totalorder %s272, %s273
      %p285 = scmp.eq.s32.totalorder %s32, 1
      %p286 = por %p284, %p285
      %p288 = scmp.ne.s32.totalorder %s273, %s287
      %p289 = scmp.eq.s32.totalorder %s32, 0
      %p290 = por %p288, %p289
      %s292 = sadd.s32 %s291, 1
      %p295 = scmp.eq.s32.totalorder %s26, 1
      %p296 = scmp.ne.s32.totalorder %s291, %s293
      %p297 = scmp.eq.s32.totalorder %s26, 0
      %p298 = por %p296, %p297
      %p299 = scmp.ne.s32.totalorder %s291, %s293
      %p300 = scmp.eq.s32.totalorder %s31, 1
      %p301 = por %p299, %p300
      %p302 = scmp.ne.s32.totalorder %s293, %s294
      %p303 = scmp.eq.s32.totalorder %s31, 0
      %p304 = por %p302, %p303
      %p305 = scmp.ne.s32.totalorder %s293, %s294
      %p306 = scmp.eq.s32.totalorder %s32, 1
      %p307 = por %p305, %p306
      %p309 = scmp.ne.s32.totalorder %s294, %s308
      %p310 = scmp.eq.s32.totalorder %s32, 0
      %p311 = por %p309, %p310
      %s313 = sadd.s32 %s312, 1
      %p316 = scmp.eq.s32.totalorder %s26, 1
      %p317 = scmp.ne.s32.totalorder %s312, %s314
      %p318 = scmp.eq.s32.totalorder %s26, 0
      %p319 = por %p317, %p318
      %p320 = scmp.ne.s32.totalorder %s312, %s314
      %p321 = scmp.eq.s32.totalorder %s31, 1
      %p322 = por %p320, %p321
      %p323 = scmp.ne.s32.totalorder %s314, %s315
      %p324 = scmp.eq.s32.totalorder %s31, 0
      %p325 = por %p323, %p324
      %p326 = scmp.ne.s32.totalorder %s314, %s315
      %p327 = scmp.eq.s32.totalorder %s32, 1
      %p328 = por %p326, %p327
      %p330 = scmp.ne.s32.totalorder %s315, %s329
      %p331 = scmp.eq.s32.totalorder %s32, 0
      %p332 = por %p330, %p331
      %s334 = sadd.s32 %s333, 1
      %p337 = scmp.eq.s32.totalorder %s26, 1
      %p338 = scmp.ne.s32.totalorder %s333, %s335
      %p339 = scmp.eq.s32.totalorder %s26, 0
      %p340 = por %p338, %p339
      %p341 = scmp.ne.s32.totalorder %s333, %s335
      %p342 = scmp.eq.s32.totalorder %s31, 1
      %p343 = por %p341, %p342
      %p344 = scmp.ne.s32.totalorder %s335, %s336
      %p345 = scmp.eq.s32.totalorder %s31, 0
      %p346 = por %p344, %p345
      %p347 = scmp.ne.s32.totalorder %s335, %s336
      %p348 = scmp.eq.s32.totalorder %s32, 1
      %p349 = por %p347, %p348
      %p351 = scmp.ne.s32.totalorder %s336, %s350
      %p352 = scmp.eq.s32.totalorder %s32, 0
      %p353 = por %p351, %p352
      %s355 = sadd.s32 %s354, 1
      %p358 = scmp.eq.s32.totalorder %s26, 1
      %p359 = scmp.ne.s32.totalorder %s354, %s356
      %p360 = scmp.eq.s32.totalorder %s26, 0
      %p361 = por %p359, %p360
      %p362 = scmp.ne.s32.totalorder %s354, %s356
      %p363 = scmp.eq.s32.totalorder %s31, 1
      %p364 = por %p362, %p363
      %p365 = scmp.ne.s32.totalorder %s356, %s357
      %p366 = scmp.eq.s32.totalorder %s31, 0
      %p367 = por %p365, %p366
      %p368 = scmp.ne.s32.totalorder %s356, %s357
      %p369 = scmp.eq.s32.totalorder %s32, 1
      %p370 = por %p368, %p369
      %p372 = scmp.ne.s32.totalorder %s357, %s371
      %p373 = scmp.eq.s32.totalorder %s32, 0
      %p374 = por %p372, %p373
      %s376 = sadd.s32 %s375, 1
      %p379 = scmp.eq.s32.totalorder %s26, 1
      %p380 = scmp.ne.s32.totalorder %s375, %s377
      %p381 = scmp.eq.s32.totalorder %s26, 0
      %p382 = por %p380, %p381
      %p383 = scmp.ne.s32.totalorder %s375, %s377
      %p384 = scmp.eq.s32.totalorder %s31, 1
      %p385 = por %p383, %p384
      %p386 = scmp.ne.s32.totalorder %s377, %s378
      %p387 = scmp.eq.s32.totalorder %s31, 0
      %p388 = por %p386, %p387
      %p389 = scmp.ne.s32.totalorder %s377, %s378
      %p390 = scmp.eq.s32.totalorder %s32, 1
      %p391 = por %p389, %p390
      %p393 = scmp.ne.s32.totalorder %s378, %s392
      %p394 = scmp.eq.s32.totalorder %s32, 0
      %p395 = por %p393, %p394
      %s397 = sadd.s32 %s396, 1
      %p400 = scmp.eq.s32.totalorder %s26, 1
      %p401 = scmp.ne.s32.totalorder %s396, %s398
      %p402 = scmp.eq.s32.totalorder %s26, 0
      %p403 = por %p401, %p402
      %p404 = scmp.ne.s32.totalorder %s396, %s398
      %p405 = scmp.eq.s32.totalorder %s31, 1
      %p406 = por %p404, %p405
      %p407 = scmp.ne.s32.totalorder %s398, %s399
      %p408 = scmp.eq.s32.totalorder %s31, 0
      %p409 = por %p407, %p408
      %p410 = scmp.ne.s32.totalorder %s398, %s399
      %p411 = scmp.eq.s32.totalorder %s32, 1
      %p412 = por %p410, %p411
      %p414 = scmp.ne.s32.totalorder %s399, %s413
      %p415 = scmp.eq.s32.totalorder %s32, 0
      %p416 = por %p414, %p415
      %s417 = ssub.s32 %s26, %s33
      %p418 = scmp.eq.s32.totalorder %s417, 0
      %s420 = sadd.s32 %s419, 1
      %s421 = scalar_select %p418, %s419, %s420
      %p424 = pneg %p418
      %p425 = scmp.eq.s32.totalorder %s26, 1
      %p426 = por %p424, %p425
      %p427 = scmp.ne.s32.totalorder %s419, %s422
      %p428 = scmp.eq.s32.totalorder %s26, 0
      %p429 = por %p427, %p428
      %p430 = scmp.ne.s32.totalorder %s419, %s422
      %p431 = scmp.eq.s32.totalorder %s31, 1
      %p432 = por %p430, %p431
      %p433 = scmp.ne.s32.totalorder %s422, %s423
      %p434 = scmp.eq.s32.totalorder %s31, 0
      %p435 = por %p433, %p434
      %p436 = scmp.ne.s32.totalorder %s422, %s423
      %p437 = scmp.eq.s32.totalorder %s32, 1
      %p438 = por %p436, %p437
      %p440 = scmp.ne.s32.totalorder %s423, %s439
      %p441 = scmp.eq.s32.totalorder %s32, 0
      %p442 = por %p440, %p441
      %p443 = scmp.le.s32.totalorder 1, %s26
      %p444 = scmp.lt.s32.totalorder %s26, 3
      %p445 = pnand %p443, %p444
      %p446 = pneg %p445
      // Predicated region
      $region9: #{audio2pose_forward.1} parent=5 // pred_check
        _
      $region10: #{audio2pose_forward.1} parent=5 // pred_check_branch
        %448 = sbr.rel (%p445) target = $region12
      $region11: #{audio2pose_forward.1} parent=5 // pred_region
        %s449 = ssub.s32 %s26, 1
        // Predicated region
        $region13: #{audio2pose_forward.1} parent=11 // pred_check
          %p450 = pneg %p73
        $region14: #{audio2pose_forward.1} parent=11 // pred_check_branch
          %452 = sbr.rel (%p450) target = $region16
        $region15: #{audio2pose_forward.1} parent=11 // pred_region
          _
        $region16: #{audio2pose_forward.1} parent=11 // pred_fallthru
          _
        // Predicated region
        $region17: #{audio2pose_forward.1} parent=11 // pred_check
          %p453 = pneg %p94
        $region18: #{audio2pose_forward.1} parent=11 // pred_check_branch
          %455 = sbr.rel (%p453) target = $region20
        $region19: #{audio2pose_forward.1} parent=11 // pred_region
          _
        $region20: #{audio2pose_forward.1} parent=11 // pred_fallthru
          _
        // Predicated region
        $region21: #{audio2pose_forward.1} parent=11 // pred_check
          %p456 = pneg %p115
        $region22: #{audio2pose_forward.1} parent=11 // pred_check_branch
          %458 = sbr.rel (%p456) target = $region24
        $region23: #{audio2pose_forward.1} parent=11 // pred_region
          _
        $region24: #{audio2pose_forward.1} parent=11 // pred_fallthru
          _
        // Predicated region
        $region25: #{audio2pose_forward.1} parent=11 // pred_check
          %p459 = pneg %p136
        $region26: #{audio2pose_forward.1} parent=11 // pred_check_branch
          %461 = sbr.rel (%p459) target = $region28
        $region27: #{audio2pose_forward.1} parent=11 // pred_region
          _
        $region28: #{audio2pose_forward.1} parent=11 // pred_fallthru
          _
        // Predicated region
        $region29: #{audio2pose_forward.1} parent=11 // pred_check
          %p462 = pneg %p157
        $region30: #{audio2pose_forward.1} parent=11 // pred_check_branch
          %464 = sbr.rel (%p462) target = $region32
        $region31: #{audio2pose_forward.1} parent=11 // pred_region
          _
        $region32: #{audio2pose_forward.1} parent=11 // pred_fallthru
          _
        // Predicated region
        $region33: #{audio2pose_forward.1} parent=11 // pred_check
          %p465 = pneg %p178
        $region34: #{audio2pose_forward.1} parent=11 // pred_check_branch
          %467 = sbr.rel (%p465) target = $region36
        $region35: #{audio2pose_forward.1} parent=11 // pred_region
          _
        $region36: #{audio2pose_forward.1} parent=11 // pred_fallthru
          _
        // Predicated region
        $region37: #{audio2pose_forward.1} parent=11 // pred_check
          %p468 = pneg %p199
        $region38: #{audio2pose_forward.1} parent=11 // pred_check_branch
          %470 = sbr.rel (%p468) target = $region40
        $region39: #{audio2pose_forward.1} parent=11 // pred_region
          _
        $region40: #{audio2pose_forward.1} parent=11 // pred_fallthru
          _
        // Predicated region
        $region41: #{audio2pose_forward.1} parent=11 // pred_check
          %p471 = pneg %p220
        $region42: #{audio2pose_forward.1} parent=11 // pred_check_branch
          %473 = sbr.rel (%p471) target = $region44
        $region43: #{audio2pose_forward.1} parent=11 // pred_region
          _
        $region44: #{audio2pose_forward.1} parent=11 // pred_fallthru
          _
        // Predicated region
        $region45: #{audio2pose_forward.1} parent=11 // pred_check
          %p474 = pneg %p241
        $region46: #{audio2pose_forward.1} parent=11 // pred_check_branch
          %476 = sbr.rel (%p474) target = $region48
        $region47: #{audio2pose_forward.1} parent=11 // pred_region
          _
        $region48: #{audio2pose_forward.1} parent=11 // pred_fallthru
          _
        // Predicated region
        $region49: #{audio2pose_forward.1} parent=11 // pred_check
          %p477 = pneg %p262
        $region50: #{audio2pose_forward.1} parent=11 // pred_check_branch
          %479 = sbr.rel (%p477) target = $region52
        $region51: #{audio2pose_forward.1} parent=11 // pred_region
          _
        $region52: #{audio2pose_forward.1} parent=11 // pred_fallthru
          _
        // Predicated region
        $region53: #{audio2pose_forward.1} parent=11 // pred_check
          %p480 = pneg %p283
        $region54: #{audio2pose_forward.1} parent=11 // pred_check_branch
          %482 = sbr.rel (%p480) target = $region56
        $region55: #{audio2pose_forward.1} parent=11 // pred_region
          _
        $region56: #{audio2pose_forward.1} parent=11 // pred_fallthru
          _
        // Predicated region
        $region57: #{audio2pose_forward.1} parent=11 // pred_check
          %p483 = pneg %p304
        $region58: #{audio2pose_forward.1} parent=11 // pred_check_branch
          %485 = sbr.rel (%p483) target = $region60
        $region59: #{audio2pose_forward.1} parent=11 // pred_region
          %487 = vsyncadd [#allocation3], 0
          %s488 = sshll.u32 %s12, 4
          %s489 = int_to_ptr.hbm [resolvable:$true] %s488
          %s490 = sshll.u32 [#allocation2], 4
          %s491 = int_to_ptr.vmem [resolvable:$true] %s490
          %496 = dma.hbm_to_vmem [thread:$0]  %s489, 28672, %s491, [#allocation3], 128, 128, 8
        $region60: #{audio2pose_forward.1} parent=11 // pred_fallthru
          _
        // Predicated region
        $region61: #{audio2pose_forward.1} parent=11 // pred_check
          %p497 = pneg %p325
        $region62: #{audio2pose_forward.1} parent=11 // pred_check_branch
          %499 = sbr.rel (%p497) target = $region64
        $region63: #{audio2pose_forward.1} parent=11 // pred_region
          _
        $region64: #{audio2pose_forward.1} parent=11 // pred_fallthru
          _
        // Predicated region
        $region65: #{audio2pose_forward.1} parent=11 // pred_check
          %p500 = pneg %p346
        $region66: #{audio2pose_forward.1} parent=11 // pred_check_branch
          %502 = sbr.rel (%p500) target = $region68
        $region67: #{audio2pose_forward.1} parent=11 // pred_region
          %504 = vsyncadd [#allocation5], 0
          %s505 = sshll.u32 %s14, 4
          %s506 = int_to_ptr.hbm [resolvable:$true] %s505
          %s507 = sshll.u32 [#allocation4], 4
          %s508 = int_to_ptr.vmem [resolvable:$true] %s507
          %513 = dma.hbm_to_vmem [thread:$0]  %s506, 14336, %s508, [#allocation5], 64, 64, 4
        $region68: #{audio2pose_forward.1} parent=11 // pred_fallthru
          _
        // Predicated region
        $region69: #{audio2pose_forward.1} parent=11 // pred_check
          %p514 = pneg %p367
        $region70: #{audio2pose_forward.1} parent=11 // pred_check_branch
          %516 = sbr.rel (%p514) target = $region72
        $region71: #{audio2pose_forward.1} parent=11 // pred_region
          _
        $region72: #{audio2pose_forward.1} parent=11 // pred_fallthru
          _
        // Predicated region
        $region73: #{audio2pose_forward.1} parent=11 // pred_check
          %p517 = pneg %p388
        $region74: #{audio2pose_forward.1} parent=11 // pred_check_branch
          %519 = sbr.rel (%p517) target = $region76
        $region75: #{audio2pose_forward.1} parent=11 // pred_region
          _
        $region76: #{audio2pose_forward.1} parent=11 // pred_fallthru
          _
        // Predicated region
        $region77: #{audio2pose_forward.1} parent=11 // pred_check
          %p520 = pneg %p409
        $region78: #{audio2pose_forward.1} parent=11 // pred_check_branch
          %522 = sbr.rel (%p520) target = $region80
        $region79: #{audio2pose_forward.1} parent=11 // pred_region
          _
        $region80: #{audio2pose_forward.1} parent=11 // pred_fallthru
          _
      $region12: #{audio2pose_forward.1} parent=5 // pred_fallthru
        _
      %p523 = scmp.lt.s32.totalorder %s26, 2
      // Predicated region
      $region81: #{audio2pose_forward.1} parent=5 // pred_check
        %p524 = pneg %p523
      $region82: #{audio2pose_forward.1} parent=5 // pred_check_branch
        %526 = sbr.rel (%p524) target = $region84
      $region83: #{audio2pose_forward.1} parent=5 // pred_region
        // Predicated region
        $region85: #{audio2pose_forward.1} parent=83 // pred_check
          %p527 = pneg %p46
        $region86: #{audio2pose_forward.1} parent=83 // pred_check_branch
          %529 = sbr.rel (%p527) target = $region88
        $region87: #{audio2pose_forward.1} parent=83 // pred_region
          %p530 = scmp.lt.s32.totalorder %s26, 1
          %s531 = scalar_select %p530, %s26, 1
          %s532 = smul.addr %s531, 4
          %s533 = smul.addr %s532, 8
          %s534 = scalar_lea.vmem %s0, %s533
        $region88: #{audio2pose_forward.1} parent=83 // pred_fallthru
          _
      $region84: #{audio2pose_forward.1} parent=5 // pred_fallthru
        _
      %p535 = scmp.le.s32.totalorder 1, %s26
      %p536 = scmp.lt.s32.totalorder %s26, 3
      %p537 = pnand %p535, %p536
      %p538 = pneg %p537
      // Predicated region
      $region89: #{audio2pose_forward.1} parent=5 // pred_check
        _
      $region90: #{audio2pose_forward.1} parent=5 // pred_check_branch
        %540 = sbr.rel (%p537) target = $region92
      $region91: #{audio2pose_forward.1} parent=5 // pred_region
        %s541 = ssub.s32 %s26, 1
        // Predicated region
        $region93: #{audio2pose_forward.1} parent=91 // pred_check
          %p542 = pneg %p304
        $region94: #{audio2pose_forward.1} parent=91 // pred_check_branch
          %544 = sbr.rel (%p542) target = $region96
        $region95: #{audio2pose_forward.1} parent=91 // pred_region
          %546 = dma.done [#allocation3], 28672
        $region96: #{audio2pose_forward.1} parent=91 // pred_fallthru
          _
        // Predicated region
        $region97: #{audio2pose_forward.1} parent=91 // pred_check
          %p547 = pneg %p346
        $region98: #{audio2pose_forward.1} parent=91 // pred_check_branch
          %549 = sbr.rel (%p547) target = $region100
        $region99: #{audio2pose_forward.1} parent=91 // pred_region
          %551 = dma.done [#allocation5], 14336
        $region100: #{audio2pose_forward.1} parent=91 // pred_fallthru
          _
        %p552 = scmp.lt.s32.totalorder %s31, 1
        %s553 = scalar_select %p552, %s31, 1
        %s554 = smul.addr %s553, 4
        %s555 = smul.addr %s554, 8
        %s556 = scalar_lea.vmem %s0, %s555
        %p557 = pneg %p52
        %p558 = pneg %p49
        %p559 = pneg %p73
        %p560 = pneg %p70
        %p561 = pneg %p94
        %p562 = pneg %p91
        %p563 = pneg %p115
        %p564 = pneg %p112
        %p565 = pneg %p136
        %p566 = pneg %p133
        %p567 = pneg %p157
        %p568 = pneg %p154
        %p569 = pneg %p178
        %p570 = pneg %p175
        %p571 = pneg %p199
        %p572 = pneg %p196
        %p573 = pneg %p220
        %p574 = pneg %p217
        %p575 = pneg %p241
        %p576 = pneg %p238
        %p577 = pneg %p262
        %p578 = pneg %p259
        %p579 = pneg %p283
        %p580 = pneg %p280
        %p581 = pneg %p304
        %p582 = pneg %p301
        %p583 = pneg %p325
        %p584 = pneg %p322
        %p585 = pneg %p346
        %p586 = pneg %p343
        %p587 = pneg %p367
        %p588 = pneg %p364
        %p589 = pneg %p388
        %p590 = pneg %p385
        %p591 = pneg %p409
        %p592 = pneg %p406
        %p593 = pneg %p435
        %p594 = pneg %p432
        %p595 = scmp.lt.s32.totalorder %s31, 1
        %s596 = scalar_select %p595, %s31, 1
        %s597 = smul.addr %s596, 4
        %s598 = smul.addr %s597, 8
        %s599 = scalar_lea.vmem %s18, %s598
        %p600 = scmp.lt.s32.totalorder %s31, 1
        %s601 = scalar_select %p600, %s31, 1
        %s602 = smul.addr %s601, 4
        %s603 = smul.addr %s602, 8
        %s604 = scalar_lea.vmem %s0, %s603
        %p605 = scmp.lt.s32.totalorder %s31, 1
        %s606 = scalar_select %p605, %s31, 1
        %s607 = smul.addr %s606, 4
        %s608 = smul.addr %s607, 8
        %s609 = scalar_lea.vmem %s18, %s608
        %v611 = vld [vmem:[%s604] sm:$0xff]
        %v612 = vld [vmem:[%s604 + $0x8] sm:$0xff]
        %v613 = vld [vmem:[%s604 + $0x10] sm:$0xff]
        %v614 = vld [vmem:[%s604 + $0x18] sm:$0x3f]
        %v615 = vpack.c.bf16 %v612, %v611
        %v616 = vpack.c.bf16 %v614, %v613
        %v617 = vld [vmem:[%s6] sm:$0xf]
        %v618 = vld [vmem:[%s6 + $0x4] sm:$0xf]
        %v619 = vld [vmem:[%s6 + $0x8] sm:$0xf]
        %v620 = vld [vmem:[%s6 + $0xc] sm:$0xf]
        %v621 = vld [vmem:[%s6 + $0x10] sm:$0xf]
        %v622 = vld [vmem:[%s6 + $0x14] sm:$0xf]
        %v623 = vld [vmem:[%s6 + $0x18] sm:$0xf]
        %v624 = vld [vmem:[%s6 + $0x1c] sm:$0xf]
        %v625 = vld [vmem:[%s6 + $0x20] sm:$0xf]
        %v626 = vld [vmem:[%s6 + $0x24] sm:$0xf]
        %v627 = vld [vmem:[%s6 + $0x28] sm:$0xf]
        %v628 = vld [vmem:[%s6 + $0x2c] sm:$0x3]
        %v629 = vld [vmem:[%s7] sm:$0x1]
        %v631 = vperm.slane %v629, 0
        %v645 = vunpack.c.l.b16 %v617
        %v646 = vunpack.c.l.b16 %v618
        %v647 = vunpack.c.l.b16 %v619
        %v648 = vunpack.c.l.b16 %v620
        %v649 = vunpack.c.l.b16 %v621
        %v650 = vunpack.c.l.b16 %v622
        %v651 = vunpack.c.l.b16 %v623
        %v652 = vunpack.c.l.b16 %v624
        %v653 = vunpack.c.l.b16 %v625
        %v654 = vunpack.c.l.b16 %v626
        %v655 = vunpack.c.l.b16 %v627
        %v656 = vunpack.c.l.b16 %v628
        %v657 = vpack.c.b16 %v646, %v645
        %v658 = vpack.c.b16 %v648, %v647
        %v659 = vpack.c.b16 %v650, %v649
        %v660 = vpack.c.b16 %v652, %v651
        %v661 = vpack.c.b16 %v654, %v653
        %v662 = vpack.c.b16 %v656, %v655
        %vm668 = vcmask 744448
        %v670 = vsel %vm668, %v615, 0
        %v673 = vsel %vm668, %v616, 0
        %vm675 = vcmask 1044480
        %vm676 = vcmask 1045504
        %v677 = vsel %vm675, 4294967295, 65535
        %v678 = vsel %vm676, %v677, 0
        %v680 = vand.u32 %v662, %v678
        %682 = vmatpush.bf16.msra.mxu0 0
        %683 = vmatpush.bf16.msra.mxu0 0
        %684 = vmatpush.bf16.msra.mxu0 %v680
        %685 = vmatpush.bf16.msra.mxu0 %v661
        %686 = vmatpush.bf16.msra.mxu0 %v660
        %687 = vmatpush.bf16.msra.mxu0 %v659
        %688 = vmatpush.bf16.msra.mxu0 %v658
        %689 = vmatpush.bf16.msra.mxu0 %v657
        %690 = vmatmul.bf16.gmra.mxu0 %v670
        %v691 = vpop.f32.mrf.mxu0
        %v692 = vadd.f32 %v631, %v691
        %v693 = vpop.f32.mrf.mxu0
        %v694 = vadd.f32 %v631, %v693
        %695 = vmatmul.bf16.gmra.mxu0 %v673
        %v696 = vpop.f32.mrf.mxu0
        %v697 = vadd.f32 %v631, %v696
        %v698 = vpop.f32.mrf.mxu0
        %v699 = vadd.f32 %v631, %v698
        %700 = vdwg.mxu0
        %vm701 = vcmp.ge.f32.partialorder %v692, 0.0
        %vm702 = vcmp.ge.f32.partialorder %v694, 0.0
        %vm703 = vcmp.ge.f32.partialorder %v697, 0.0
        %vm704 = vcmp.ge.f32.partialorder %v699, 0.0
        %v705 = vmul.f32 %v692, 0.2
        %v706 = vmul.f32 %v694, 0.2
        %v707 = vmul.f32 %v697, 0.2
        %v708 = vmul.f32 %v699, 0.2
        %v709 = vsel %vm701, %v692, %v705
        %v710 = vsel %vm702, %v694, %v706
        %v711 = vsel %vm703, %v697, %v707
        %v712 = vsel %vm704, %v699, %v708
        %v713 = vld [vmem:[%s1] sm:$0xff]
        %v714 = vld [vmem:[%s1 + $0x8] sm:$0xff]
        %v715 = vld [vmem:[%s1 + $0x10] sm:$0x7]
        %vm716 = vcmask 244736
        %v718 = vsel %vm716, %v713, 0
        %v721 = vsel %vm716, %v714, 0
        %v724 = vsel %vm716, %v715, 0
        %v727 = vsel %vm676, %v712, 0
        %729 = vmatpush.msra.mxu0 0.0
        %730 = vmatpush.msra.mxu0 0.0
        %731 = vmatpush.msra.mxu0 0.0
        %732 = vmatpush.msra.mxu0 0.0
        %733 = vmatpush.msra.mxu0 0.0
        %734 = vmatpush.msra.mxu0 0.0
        %735 = vmatpush.msra.mxu0 0.0
        %736 = vmatpush.msra.mxu0 0.0
        %737 = vmatpush.msra.mxu0 0.0
        %738 = vmatpush.msra.mxu0 0.0
        %739 = vmatpush.msra.mxu0 0.0
        %740 = vmatpush.msra.mxu0 0.0
        %741 = vmatpush.msra.mxu0 %v727
        %742 = vmatpush.msra.mxu0 %v711
        %743 = vmatpush.msra.mxu0 %v710
        %744 = vmatpush.msra.mxu0 %v709
        %745 = vmatmul.f32.gmra.mxu0 %v718
        %v746 = vpop.f32.mrf.mxu0
        %v747 = vadd.f32 0.0, %v746
        %748 = vmatmul.f32.gmra.mxu0 %v721
        %v749 = vpop.f32.mrf.mxu0
        %v750 = vadd.f32 0.0, %v749
        %751 = vmatmul.f32.gmra.mxu0 %v724
        %v752 = vpop.f32.mrf.mxu0
        %v753 = vadd.f32 0.0, %v752
        %754 = vdwg.mxu0
        %v755 = vpack.c.bf16 %v747, %v747
        %v756 = vpack.c.bf16 %v750, %v750
        %v757 = vpack.c.bf16 %v753, %v753
        %v758 = vld [vmem:[%s8] sm:$0xf]
        %v759 = vld [vmem:[%s8 + $0x4] sm:$0xf]
        %v760 = vld [vmem:[%s8 + $0x8] sm:$0xf]
        %v761 = vld [vmem:[%s8 + $0xc] sm:$0xf]
        %v762 = vld [vmem:[%s8 + $0x10] sm:$0xf]
        %v763 = vld [vmem:[%s8 + $0x14] sm:$0xf]
        %v764 = vld [vmem:[%s8 + $0x18] sm:$0xf]
        %v765 = vld [vmem:[%s8 + $0x1c] sm:$0xf]
        %s766 = scalar_lea.vmem %s8, 32
        %v767 = vld [vmem:[%s766] sm:$0xf]
        %v768 = vld [vmem:[%s766 + $0x4] sm:$0xf]
        %v769 = vld [vmem:[%s766 + $0x8] sm:$0xf]
        %v770 = vld [vmem:[%s766 + $0xc] sm:$0xf]
        %v771 = vld [vmem:[%s766 + $0x10] sm:$0xf]
        %v772 = vld [vmem:[%s766 + $0x14] sm:$0xf]
        %v773 = vld [vmem:[%s766 + $0x18] sm:$0xf]
        %v774 = vld [vmem:[%s766 + $0x1c] sm:$0xf]
        %v777 = vunpack.c.l.b16 %v755
        %v778 = vunpack.c.l.b16 %v756
        %v779 = vpack.c.b16 %v778, %v777
        %v781 = vshrl.u32 %v779, 16
        %v783 = vshll.u32 %v779, 16
        %v785 = vrot.slane %v783, 1
        %v786 = vor.u32 %v781, %v785
        %v795 = vunpack.c.l.b16 %v767
        %v796 = vunpack.c.l.b16 %v768
        %v797 = vunpack.c.l.b16 %v769
        %v798 = vunpack.c.l.b16 %v770
        %v799 = vunpack.c.l.b16 %v771
        %v800 = vunpack.c.l.b16 %v772
        %v801 = vunpack.c.l.b16 %v773
        %v802 = vunpack.c.l.b16 %v774
        %v803 = vpack.c.b16 %v796, %v795
        %v804 = vpack.c.b16 %v798, %v797
        %v805 = vpack.c.b16 %v800, %v799
        %v806 = vpack.c.b16 %v802, %v801
        %vm811 = vcmask 523264
        %v813 = vsel %vm811, %v786, 0
        %815 = vmatpush.bf16.msra.mxu0 0
        %816 = vmatpush.bf16.msra.mxu0 0
        %817 = vmatpush.bf16.msra.mxu0 0
        %818 = vmatpush.bf16.msra.mxu0 0
        %819 = vmatpush.bf16.msra.mxu0 %v806
        %820 = vmatpush.bf16.msra.mxu0 %v805
        %821 = vmatpush.bf16.msra.mxu0 %v804
        %822 = vmatpush.bf16.msra.mxu0 %v803
        %823 = vmatmul.bf16.gmra.mxu0 %v813
        %v824 = vpop.f32.mrf.mxu0
        %v825 = vadd.f32 0.0, %v824
        %v826 = vpop.f32.mrf.mxu0
        %v827 = vadd.f32 0.0, %v826
        %828 = vdwg.mxu0
        %v837 = vunpack.c.l.b16 %v758
        %v838 = vunpack.c.l.b16 %v759
        %v839 = vunpack.c.l.b16 %v760
        %v840 = vunpack.c.l.b16 %v761
        %v841 = vunpack.c.l.b16 %v762
        %v842 = vunpack.c.l.b16 %v763
        %v843 = vunpack.c.l.b16 %v764
        %v844 = vunpack.c.l.b16 %v765
        %v845 = vpack.c.b16 %v838, %v837
        %v846 = vpack.c.b16 %v840, %v839
        %v847 = vpack.c.b16 %v842, %v841
        %v848 = vpack.c.b16 %v844, %v843
        %v853 = vsel %vm811, %v779, 0
        %855 = vmatpush.bf16.msra.mxu0 0
        %856 = vmatpush.bf16.msra.mxu0 0
        %857 = vmatpush.bf16.msra.mxu0 0
        %858 = vmatpush.bf16.msra.mxu0 0
        %859 = vmatpush.bf16.msra.mxu0 %v848
        %860 = vmatpush.bf16.msra.mxu0 %v847
        %861 = vmatpush.bf16.msra.mxu0 %v846
        %862 = vmatpush.bf16.msra.mxu0 %v845
        %863 = vmatmul.bf16.gmra.mxu0 %v853
        %v864 = vpop.f32.mrf.mxu0
        %v865 = vadd.f32 %v825, %v864
        %v866 = vpop.f32.mrf.mxu0
        %v867 = vadd.f32 %v827, %v866
        %868 = vdwg.mxu0
        %s869 = scalar_lea.vmem %s8, 64
        %v870 = vld [vmem:[%s869] sm:$0xf]
        %v871 = vld [vmem:[%s869 + $0x4] sm:$0xf]
        %v872 = vld [vmem:[%s869 + $0x8] sm:$0xf]
        %v873 = vld [vmem:[%s869 + $0xc] sm:$0xf]
        %v874 = vld [vmem:[%s869 + $0x10] sm:$0xf]
        %v875 = vld [vmem:[%s869 + $0x14] sm:$0xf]
        %v876 = vld [vmem:[%s869 + $0x18] sm:$0xf]
        %v877 = vld [vmem:[%s869 + $0x1c] sm:$0xf]
        %v878 = vrot.slane %v779, 1
        %v887 = vunpack.c.l.b16 %v870
        %v888 = vunpack.c.l.b16 %v871
        %v889 = vunpack.c.l.b16 %v872
        %v890 = vunpack.c.l.b16 %v873
        %v891 = vunpack.c.l.b16 %v874
        %v892 = vunpack.c.l.b16 %v875
        %v893 = vunpack.c.l.b16 %v876
        %v894 = vunpack.c.l.b16 %v877
        %v895 = vpack.c.b16 %v888, %v887
        %v896 = vpack.c.b16 %v890, %v889
        %v897 = vpack.c.b16 %v892, %v891
        %v898 = vpack.c.b16 %v894, %v893
        %v904 = vsel %vm811, %v878, 0
        %906 = vmatpush.bf16.msra.mxu0 0
        %907 = vmatpush.bf16.msra.mxu0 0
        %908 = vmatpush.bf16.msra.mxu0 0
        %909 = vmatpush.bf16.msra.mxu0 0
        %910 = vmatpush.bf16.msra.mxu0 %v898
        %911 = vmatpush.bf16.msra.mxu0 %v897
        %912 = vmatpush.bf16.msra.mxu0 %v896
        %913 = vmatpush.bf16.msra.mxu0 %v895
        %914 = vmatmul.bf16.gmra.mxu0 %v904
        %v915 = vpop.f32.mrf.mxu0
        %v916 = vadd.f32 0.0, %v915
        %v917 = vpop.f32.mrf.mxu0
        %v918 = vadd.f32 0.0, %v917
        %919 = vdwg.mxu0
        %v920 = vadd.f32 %v865, %v916
        %v921 = vadd.f32 %v867, %v918
        %s922 = scalar_lea.vmem %s8, 96
        %v923 = vld [vmem:[%s922] sm:$0xf]
        %v924 = vld [vmem:[%s922 + $0x4] sm:$0xf]
        %v925 = vld [vmem:[%s922 + $0x8] sm:$0xf]
        %v926 = vld [vmem:[%s922 + $0xc] sm:$0xf]
        %v927 = vld [vmem:[%s922 + $0x10] sm:$0xf]
        %v928 = vld [vmem:[%s922 + $0x14] sm:$0xf]
        %v929 = vld [vmem:[%s922 + $0x18] sm:$0xf]
        %v930 = vld [vmem:[%s922 + $0x1c] sm:$0xf]
        %v931 = vrot.slane %v781, 1
        %v932 = vrot.slane %v783, 2
        %v933 = vor.u32 %v931, %v932
        %v942 = vunpack.c.l.b16 %v923
        %v943 = vunpack.c.l.b16 %v924
        %v944 = vunpack.c.l.b16 %v925
        %v945 = vunpack.c.l.b16 %v926
        %v946 = vunpack.c.l.b16 %v927
        %v947 = vunpack.c.l.b16 %v928
        %v948 = vunpack.c.l.b16 %v929
        %v949 = vunpack.c.l.b16 %v930
        %v950 = vpack.c.b16 %v943, %v942
        %v951 = vpack.c.b16 %v945, %v944
        %v952 = vpack.c.b16 %v947, %v946
        %v953 = vpack.c.b16 %v949, %v948
        %v959 = vsel %vm811, %v933, 0
        %961 = vmatpush.bf16.msra.mxu0 0
        %962 = vmatpush.bf16.msra.mxu0 0
        %963 = vmatpush.bf16.msra.mxu0 0
        %964 = vmatpush.bf16.msra.mxu0 0
        %965 = vmatpush.bf16.msra.mxu0 %v953
        %966 = vmatpush.bf16.msra.mxu0 %v952
        %967 = vmatpush.bf16.msra.mxu0 %v951
        %968 = vmatpush.bf16.msra.mxu0 %v950
        %969 = vmatmul.bf16.gmra.mxu0 %v959
        %v970 = vpop.f32.mrf.mxu0
        %v971 = vadd.f32 0.0, %v970
        %v972 = vpop.f32.mrf.mxu0
        %v973 = vadd.f32 0.0, %v972
        %974 = vdwg.mxu0
        %v975 = vadd.f32 %v920, %v971
        %v976 = vadd.f32 %v921, %v973
        %s977 = scalar_lea.vmem %s8, 128
        %v978 = vld [vmem:[%s977] sm:$0xf]
        %v979 = vld [vmem:[%s977 + $0x4] sm:$0xf]
        %v980 = vld [vmem:[%s977 + $0x8] sm:$0xf]
        %v981 = vld [vmem:[%s977 + $0xc] sm:$0xf]
        %v982 = vld [vmem:[%s977 + $0x10] sm:$0xf]
        %v983 = vld [vmem:[%s977 + $0x14] sm:$0xf]
        %v984 = vld [vmem:[%s977 + $0x18] sm:$0xf]
        %v985 = vld [vmem:[%s977 + $0x1c] sm:$0xf]
        %v987 = vunpack.c.l.b16 %v757
        %v988 = vpack.c.b16 %v987, %v987
        %vm989 = vcmask 1045504
        %v990 = vrot.slane %v779, 2
        %v991 = vrot.slane %v988, 2
        %v992 = vsel %vm989, %v990, %v991
        %v1001 = vunpack.c.l.b16 %v978
        %v1002 = vunpack.c.l.b16 %v979
        %v1003 = vunpack.c.l.b16 %v980
        %v1004 = vunpack.c.l.b16 %v981
        %v1005 = vunpack.c.l.b16 %v982
        %v1006 = vunpack.c.l.b16 %v983
        %v1007 = vunpack.c.l.b16 %v984
        %v1008 = vunpack.c.l.b16 %v985
        %v1009 = vpack.c.b16 %v1002, %v1001
        %v1010 = vpack.c.b16 %v1004, %v1003
        %v1011 = vpack.c.b16 %v1006, %v1005
        %v1012 = vpack.c.b16 %v1008, %v1007
        %v1018 = vsel %vm811, %v992, 0
        %1020 = vmatpush.bf16.msra.mxu0 0
        %1021 = vmatpush.bf16.msra.mxu0 0
        %1022 = vmatpush.bf16.msra.mxu0 0
        %1023 = vmatpush.bf16.msra.mxu0 0
        %1024 = vmatpush.bf16.msra.mxu0 %v1012
        %1025 = vmatpush.bf16.msra.mxu0 %v1011
        %1026 = vmatpush.bf16.msra.mxu0 %v1010
        %1027 = vmatpush.bf16.msra.mxu0 %v1009
        %1028 = vmatmul.bf16.gmra.mxu0 %v1018
        %v1029 = vpop.f32.mrf.mxu0
        %v1030 = vadd.f32 0.0, %v1029
        %v1031 = vpop.f32.mrf.mxu0
        %v1032 = vadd.f32 0.0, %v1031
        %1033 = vdwg.mxu0
        %v1034 = vadd.f32 %v975, %v1030
        %v1035 = vadd.f32 %v976, %v1032
        %s1036 = scalar_lea.vmem %s8, 160
        %v1037 = vld [vmem:[%s1036] sm:$0xf]
        %v1038 = vld [vmem:[%s1036 + $0x4] sm:$0xf]
        %v1039 = vld [vmem:[%s1036 + $0x8] sm:$0xf]
        %v1040 = vld [vmem:[%s1036 + $0xc] sm:$0xf]
        %v1041 = vld [vmem:[%s1036 + $0x10] sm:$0xf]
        %v1042 = vld [vmem:[%s1036 + $0x14] sm:$0xf]
        %v1043 = vld [vmem:[%s1036 + $0x18] sm:$0xf]
        %v1044 = vld [vmem:[%s1036 + $0x1c] sm:$0xf]
        %vm1045 = vsmask.f32 5376
        %v1046 = vrot.slane %v781, 2
        %v1047 = vrot.slane %v783, 3
        %v1048 = vor.u32 %v1046, %v1047
        %v1050 = vshrl.u32 %v988, 16
        %v1052 = vrot.slane %v1050, 2
        %v1053 = vshll.u32 %v988, 16
        %v1055 = vrot.slane %v1053, 3
        %v1056 = vor.u32 %v1052, %v1055
        %v1057 = vsel %vm1045, %v1048, %v1056
        %v1066 = vunpack.c.l.b16 %v1037
        %v1067 = vunpack.c.l.b16 %v1038
        %v1068 = vunpack.c.l.b16 %v1039
        %v1069 = vunpack.c.l.b16 %v1040
        %v1070 = vunpack.c.l.b16 %v1041
        %v1071 = vunpack.c.l.b16 %v1042
        %v1072 = vunpack.c.l.b16 %v1043
        %v1073 = vunpack.c.l.b16 %v1044
        %v1074 = vpack.c.b16 %v1067, %v1066
        %v1075 = vpack.c.b16 %v1069, %v1068
        %v1076 = vpack.c.b16 %v1071, %v1070
        %v1077 = vpack.c.b16 %v1073, %v1072
        %v1083 = vsel %vm811, %v1057, 0
        %1085 = vmatpush.bf16.msra.mxu0 0
        %1086 = vmatpush.bf16.msra.mxu0 0
        %1087 = vmatpush.bf16.msra.mxu0 0
        %1088 = vmatpush.bf16.msra.mxu0 0
        %1089 = vmatpush.bf16.msra.mxu0 %v1077
        %1090 = vmatpush.bf16.msra.mxu0 %v1076
        %1091 = vmatpush.bf16.msra.mxu0 %v1075
        %1092 = vmatpush.bf16.msra.mxu0 %v1074
        %1093 = vmatmul.bf16.gmra.mxu0 %v1083
        %v1094 = vpop.f32.mrf.mxu0
        %v1095 = vadd.f32 0.0, %v1094
        %v1096 = vpop.f32.mrf.mxu0
        %v1097 = vadd.f32 0.0, %v1096
        %1098 = vdwg.mxu0
        %v1099 = vadd.f32 %v1034, %v1095
        %v1100 = vadd.f32 %v1035, %v1097
        %s1101 = scalar_lea.vmem %s8, 192
        %v1102 = vld [vmem:[%s1101] sm:$0xf]
        %v1103 = vld [vmem:[%s1101 + $0x4] sm:$0xf]
        %v1104 = vld [vmem:[%s1101 + $0x8] sm:$0xf]
        %v1105 = vld [vmem:[%s1101 + $0xc] sm:$0xf]
        %v1106 = vld [vmem:[%s1101 + $0x10] sm:$0xf]
        %v1107 = vld [vmem:[%s1101 + $0x14] sm:$0xf]
        %v1108 = vld [vmem:[%s1101 + $0x18] sm:$0xf]
        %v1109 = vld [vmem:[%s1101 + $0x1c] sm:$0xf]
        %vm1110 = vcmask 1044480
        %v1111 = vrot.slane %v779, 3
        %v1112 = vrot.slane %v988, 3
        %v1113 = vsel %vm1110, %v1111, %v1112
        %v1122 = vunpack.c.l.b16 %v1102
        %v1123 = vunpack.c.l.b16 %v1103
        %v1124 = vunpack.c.l.b16 %v1104
        %v1125 = vunpack.c.l.b16 %v1105
        %v1126 = vunpack.c.l.b16 %v1106
        %v1127 = vunpack.c.l.b16 %v1107
        %v1128 = vunpack.c.l.b16 %v1108
        %v1129 = vunpack.c.l.b16 %v1109
        %v1130 = vpack.c.b16 %v1123, %v1122
        %v1131 = vpack.c.b16 %v1125, %v1124
        %v1132 = vpack.c.b16 %v1127, %v1126
        %v1133 = vpack.c.b16 %v1129, %v1128
        %v1139 = vsel %vm811, %v1113, 0
        %1141 = vmatpush.bf16.msra.mxu0 0
        %1142 = vmatpush.bf16.msra.mxu0 0
        %1143 = vmatpush.bf16.msra.mxu0 0
        %1144 = vmatpush.bf16.msra.mxu0 0
        %1145 = vmatpush.bf16.msra.mxu0 %v1133
        %1146 = vmatpush.bf16.msra.mxu0 %v1132
        %1147 = vmatpush.bf16.msra.mxu0 %v1131
        %1148 = vmatpush.bf16.msra.mxu0 %v1130
        %1149 = vmatmul.bf16.gmra.mxu0 %v1139
        %v1150 = vpop.f32.mrf.mxu0
        %v1151 = vadd.f32 0.0, %v1150
        %v1152 = vpop.f32.mrf.mxu0
        %v1153 = vadd.f32 0.0, %v1152
        %1154 = vdwg.mxu0
        %v1155 = vadd.f32 %v1099, %v1151
        %v1156 = vadd.f32 %v1100, %v1153
        %v1157 = vld [vmem:[%s9] sm:$0x1]
        %v1159 = vperm.slane %v1157, 0
        %v1161 = vadd.f32 %v1155, %v1159
        %v1162 = vadd.f32 %v1156, %v1159
        %vm1163 = vcmp.ge.f32.partialorder %v1161, 0.0
        %vm1164 = vcmp.ge.f32.partialorder %v1162, 0.0
        %v1165 = vmul.f32 %v1161, 0.2
        %v1166 = vmul.f32 %v1162, 0.2
        %v1167 = vsel %vm1163, %v1161, %v1165
        %v1168 = vsel %vm1164, %v1162, %v1166
        %v1169 = vld [vmem:[%s2] sm:$0xff]
        %v1170 = vld [vmem:[%s2 + $0x8] sm:$0x3]
        %vm1171 = vcmask 105472
        %v1173 = vsel %vm1171, %v1169, 0
        %v1176 = vsel %vm1171, %v1170, 0
        %v1179 = vsel %vm675, %v1168, 0
        %1181 = vmatpush.msra.mxu0 0.0
        %1182 = vmatpush.msra.mxu0 0.0
        %1183 = vmatpush.msra.mxu0 0.0
        %1184 = vmatpush.msra.mxu0 0.0
        %1185 = vmatpush.msra.mxu0 0.0
        %1186 = vmatpush.msra.mxu0 0.0
        %1187 = vmatpush.msra.mxu0 0.0
        %1188 = vmatpush.msra.mxu0 0.0
        %1189 = vmatpush.msra.mxu0 0.0
        %1190 = vmatpush.msra.mxu0 0.0
        %1191 = vmatpush.msra.mxu0 0.0
        %1192 = vmatpush.msra.mxu0 0.0
        %1193 = vmatpush.msra.mxu0 0.0
        %1194 = vmatpush.msra.mxu0 0.0
        %1195 = vmatpush.msra.mxu0 %v1179
        %1196 = vmatpush.msra.mxu0 %v1167
        %1197 = vmatmul.f32.gmra.mxu0 %v1173
        %v1198 = vpop.f32.mrf.mxu0
        %v1199 = vadd.f32 0.0, %v1198
        %1200 = vmatmul.f32.gmra.mxu0 %v1176
        %v1201 = vpop.f32.mrf.mxu0
        %v1202 = vadd.f32 0.0, %v1201
        %1203 = vdwg.mxu0
        %v1204 = vpack.c.bf16 %v1199, %v1199
        %v1205 = vpack.c.bf16 %v1202, %v1202
        %v1206 = vld [vmem:[%s10] sm:$0xff]
        %v1207 = vld [vmem:[%s10 + $0x8] sm:$0xff]
        %v1208 = vld [vmem:[%s10 + $0x10] sm:$0xff]
        %v1209 = vld [vmem:[%s10 + $0x18] sm:$0xff]
        %v1210 = vld [vmem:[%s10 + $0x20] sm:$0xff]
        %v1211 = vld [vmem:[%s10 + $0x28] sm:$0xff]
        %v1212 = vld [vmem:[%s10 + $0x30] sm:$0xff]
        %v1213 = vld [vmem:[%s10 + $0x38] sm:$0xff]
        %v1214 = vld [vmem:[%s10 + $0x40] sm:$0xff]
        %v1215 = vld [vmem:[%s10 + $0x48] sm:$0xff]
        %v1216 = vld [vmem:[%s10 + $0x50] sm:$0xff]
        %v1217 = vld [vmem:[%s10 + $0x58] sm:$0xff]
        %v1218 = vld [vmem:[%s10 + $0x60] sm:$0xff]
        %v1219 = vld [vmem:[%s10 + $0x68] sm:$0xff]
        %v1220 = vld [vmem:[%s10 + $0x70] sm:$0xff]
        %v1221 = vld [vmem:[%s10 + $0x78] sm:$0xff]
        %s1222 = scalar_lea.vmem %s10, 128
        %v1223 = vld [vmem:[%s1222] sm:$0xff]
        %v1224 = vld [vmem:[%s1222 + $0x8] sm:$0xff]
        %v1225 = vld [vmem:[%s1222 + $0x10] sm:$0xff]
        %v1226 = vld [vmem:[%s1222 + $0x18] sm:$0xff]
        %v1227 = vld [vmem:[%s1222 + $0x20] sm:$0xff]
        %v1228 = vld [vmem:[%s1222 + $0x28] sm:$0xff]
        %v1229 = vld [vmem:[%s1222 + $0x30] sm:$0xff]
        %v1230 = vld [vmem:[%s1222 + $0x38] sm:$0xff]
        %v1231 = vld [vmem:[%s1222 + $0x40] sm:$0xff]
        %v1232 = vld [vmem:[%s1222 + $0x48] sm:$0xff]
        %v1233 = vld [vmem:[%s1222 + $0x50] sm:$0xff]
        %v1234 = vld [vmem:[%s1222 + $0x58] sm:$0xff]
        %v1235 = vld [vmem:[%s1222 + $0x60] sm:$0xff]
        %v1236 = vld [vmem:[%s1222 + $0x68] sm:$0xff]
        %v1237 = vld [vmem:[%s1222 + $0x70] sm:$0xff]
        %v1238 = vld [vmem:[%s1222 + $0x78] sm:$0xff]
        %v1240 = vunpack.c.l.b16 %v1204
        %v1241 = vpack.c.b16 %v1240, %v1240
        %v1243 = vshrl.u32 %v1241, 16
        %v1245 = vshll.u32 %v1241, 16
        %v1247 = vrot.slane %v1245, 1
        %v1248 = vor.u32 %v1243, %v1247
        %v1266 = vunpack.c.l.b16 %v1223
        %v1267 = vunpack.c.h.b16 %v1223
        %v1268 = vunpack.c.l.b16 %v1224
        %v1269 = vunpack.c.h.b16 %v1224
        %v1270 = vunpack.c.l.b16 %v1225
        %v1271 = vunpack.c.h.b16 %v1225
        %v1272 = vunpack.c.l.b16 %v1226
        %v1273 = vunpack.c.h.b16 %v1226
        %v1274 = vunpack.c.l.b16 %v1227
        %v1275 = vunpack.c.h.b16 %v1227
        %v1276 = vunpack.c.l.b16 %v1228
        %v1277 = vunpack.c.h.b16 %v1228
        %v1278 = vunpack.c.l.b16 %v1229
        %v1279 = vunpack.c.h.b16 %v1229
        %v1280 = vunpack.c.l.b16 %v1230
        %v1281 = vunpack.c.h.b16 %v1230
        %v1282 = vunpack.c.l.b16 %v1231
        %v1283 = vunpack.c.h.b16 %v1231
        %v1284 = vunpack.c.l.b16 %v1232
        %v1285 = vunpack.c.h.b16 %v1232
        %v1286 = vunpack.c.l.b16 %v1233
        %v1287 = vunpack.c.h.b16 %v1233
        %v1288 = vunpack.c.l.b16 %v1234
        %v1289 = vunpack.c.h.b16 %v1234
        %v1290 = vunpack.c.l.b16 %v1235
        %v1291 = vunpack.c.h.b16 %v1235
        %v1292 = vunpack.c.l.b16 %v1236
        %v1293 = vunpack.c.h.b16 %v1236
        %v1294 = vunpack.c.l.b16 %v1237
        %v1295 = vunpack.c.h.b16 %v1237
        %v1296 = vunpack.c.l.b16 %v1238
        %v1297 = vunpack.c.h.b16 %v1238
        %v1298 = vpack.c.b16 %v1268, %v1266
        %v1299 = vpack.c.b16 %v1269, %v1267
        %v1300 = vpack.c.b16 %v1272, %v1270
        %v1301 = vpack.c.b16 %v1273, %v1271
        %v1302 = vpack.c.b16 %v1276, %v1274
        %v1303 = vpack.c.b16 %v1277, %v1275
        %v1304 = vpack.c.b16 %v1280, %v1278
        %v1305 = vpack.c.b16 %v1281, %v1279
        %v1306 = vpack.c.b16 %v1284, %v1282
        %v1307 = vpack.c.b16 %v1285, %v1283
        %v1308 = vpack.c.b16 %v1288, %v1286
        %v1309 = vpack.c.b16 %v1289, %v1287
        %v1310 = vpack.c.b16 %v1292, %v1290
        %v1311 = vpack.c.b16 %v1293, %v1291
        %v1312 = vpack.c.b16 %v1296, %v1294
        %v1313 = vpack.c.b16 %v1297, %v1295
        %1330 = vmatpush.bf16.msra.mxu0 %v1312
        %1331 = vmatpush.bf16.msra.mxu0 %v1310
        %1332 = vmatpush.bf16.msra.mxu0 %v1308
        %1333 = vmatpush.bf16.msra.mxu0 %v1306
        %1334 = vmatpush.bf16.msra.mxu0 %v1304
        %1335 = vmatpush.bf16.msra.mxu0 %v1302
        %1336 = vmatpush.bf16.msra.mxu0 %v1300
        %1337 = vmatpush.bf16.msra.mxu0 %v1298
        %1338 = vmatmul.bf16.gmra.mxu0 %v1248
        %v1339 = vpop.f32.mrf.mxu0
        %v1340 = vadd.f32 0.0, %v1339
        %v1341 = vpop.f32.mrf.mxu0
        %1342 = vdwg.mxu0
        %1343 = vmatpush.bf16.msra.mxu0 %v1313
        %1344 = vmatpush.bf16.msra.mxu0 %v1311
        %1345 = vmatpush.bf16.msra.mxu0 %v1309
        %1346 = vmatpush.bf16.msra.mxu0 %v1307
        %1347 = vmatpush.bf16.msra.mxu0 %v1305
        %1348 = vmatpush.bf16.msra.mxu0 %v1303
        %1349 = vmatpush.bf16.msra.mxu0 %v1301
        %1350 = vmatpush.bf16.msra.mxu0 %v1299
        %1351 = vmatmul.bf16.gmra.mxu0 %v1248
        %v1352 = vpop.f32.mrf.mxu0
        %v1353 = vadd.f32 0.0, %v1352
        %v1354 = vpop.f32.mrf.mxu0
        %1355 = vdwg.mxu0
        %v1372 = vunpack.c.l.b16 %v1206
        %v1373 = vunpack.c.h.b16 %v1206
        %v1374 = vunpack.c.l.b16 %v1207
        %v1375 = vunpack.c.h.b16 %v1207
        %v1376 = vunpack.c.l.b16 %v1208
        %v1377 = vunpack.c.h.b16 %v1208
        %v1378 = vunpack.c.l.b16 %v1209
        %v1379 = vunpack.c.h.b16 %v1209
        %v1380 = vunpack.c.l.b16 %v1210
        %v1381 = vunpack.c.h.b16 %v1210
        %v1382 = vunpack.c.l.b16 %v1211
        %v1383 = vunpack.c.h.b16 %v1211
        %v1384 = vunpack.c.l.b16 %v1212
        %v1385 = vunpack.c.h.b16 %v1212
        %v1386 = vunpack.c.l.b16 %v1213
        %v1387 = vunpack.c.h.b16 %v1213
        %v1388 = vunpack.c.l.b16 %v1214
        %v1389 = vunpack.c.h.b16 %v1214
        %v1390 = vunpack.c.l.b16 %v1215
        %v1391 = vunpack.c.h.b16 %v1215
        %v1392 = vunpack.c.l.b16 %v1216
        %v1393 = vunpack.c.h.b16 %v1216
        %v1394 = vunpack.c.l.b16 %v1217
        %v1395 = vunpack.c.h.b16 %v1217
        %v1396 = vunpack.c.l.b16 %v1218
        %v1397 = vunpack.c.h.b16 %v1218
        %v1398 = vunpack.c.l.b16 %v1219
        %v1399 = vunpack.c.h.b16 %v1219
        %v1400 = vunpack.c.l.b16 %v1220
        %v1401 = vunpack.c.h.b16 %v1220
        %v1402 = vunpack.c.l.b16 %v1221
        %v1403 = vunpack.c.h.b16 %v1221
        %v1404 = vpack.c.b16 %v1374, %v1372
        %v1405 = vpack.c.b16 %v1375, %v1373
        %v1406 = vpack.c.b16 %v1378, %v1376
        %v1407 = vpack.c.b16 %v1379, %v1377
        %v1408 = vpack.c.b16 %v1382, %v1380
        %v1409 = vpack.c.b16 %v1383, %v1381
        %v1410 = vpack.c.b16 %v1386, %v1384
        %v1411 = vpack.c.b16 %v1387, %v1385
        %v1412 = vpack.c.b16 %v1390, %v1388
        %v1413 = vpack.c.b16 %v1391, %v1389
        %v1414 = vpack.c.b16 %v1394, %v1392
        %v1415 = vpack.c.b16 %v1395, %v1393
        %v1416 = vpack.c.b16 %v1398, %v1396
        %v1417 = vpack.c.b16 %v1399, %v1397
        %v1418 = vpack.c.b16 %v1402, %v1400
        %v1419 = vpack.c.b16 %v1403, %v1401
        %1436 = vmatpush.bf16.msra.mxu0 %v1418
        %1437 = vmatpush.bf16.msra.mxu0 %v1416
        %1438 = vmatpush.bf16.msra.mxu0 %v1414
        %1439 = vmatpush.bf16.msra.mxu0 %v1412
        %1440 = vmatpush.bf16.msra.mxu0 %v1410
        %1441 = vmatpush.bf16.msra.mxu0 %v1408
        %1442 = vmatpush.bf16.msra.mxu0 %v1406
        %1443 = vmatpush.bf16.msra.mxu0 %v1404
        %1444 = vmatmul.bf16.gmra.mxu0 %v1204
        %v1445 = vpop.f32.mrf.mxu0
        %v1446 = vadd.f32 %v1340, %v1445
        %v1447 = vpop.f32.mrf.mxu0
        %1448 = vdwg.mxu0
        %1449 = vmatpush.bf16.msra.mxu0 %v1419
        %1450 = vmatpush.bf16.msra.mxu0 %v1417
        %1451 = vmatpush.bf16.msra.mxu0 %v1415
        %1452 = vmatpush.bf16.msra.mxu0 %v1413
        %1453 = vmatpush.bf16.msra.mxu0 %v1411
        %1454 = vmatpush.bf16.msra.mxu0 %v1409
        %1455 = vmatpush.bf16.msra.mxu0 %v1407
        %1456 = vmatpush.bf16.msra.mxu0 %v1405
        %1457 = vmatmul.bf16.gmra.mxu0 %v1204
        %v1458 = vpop.f32.mrf.mxu0
        %v1459 = vadd.f32 %v1353, %v1458
        %v1460 = vpop.f32.mrf.mxu0
        %1461 = vdwg.mxu0
        %s1462 = scalar_lea.vmem %s10, 256
        %v1463 = vld [vmem:[%s1462] sm:$0xff]
        %v1464 = vld [vmem:[%s1462 + $0x8] sm:$0xff]
        %v1465 = vld [vmem:[%s1462 + $0x10] sm:$0xff]
        %v1466 = vld [vmem:[%s1462 + $0x18] sm:$0xff]
        %v1467 = vld [vmem:[%s1462 + $0x20] sm:$0xff]
        %v1468 = vld [vmem:[%s1462 + $0x28] sm:$0xff]
        %v1469 = vld [vmem:[%s1462 + $0x30] sm:$0xff]
        %v1470 = vld [vmem:[%s1462 + $0x38] sm:$0xff]
        %v1471 = vld [vmem:[%s1462 + $0x40] sm:$0xff]
        %v1472 = vld [vmem:[%s1462 + $0x48] sm:$0xff]
        %v1473 = vld [vmem:[%s1462 + $0x50] sm:$0xff]
        %v1474 = vld [vmem:[%s1462 + $0x58] sm:$0xff]
        %v1475 = vld [vmem:[%s1462 + $0x60] sm:$0xff]
        %v1476 = vld [vmem:[%s1462 + $0x68] sm:$0xff]
        %v1477 = vld [vmem:[%s1462 + $0x70] sm:$0xff]
        %v1478 = vld [vmem:[%s1462 + $0x78] sm:$0xff]
        %v1479 = vrot.slane %v1241, 1
        %v1497 = vunpack.c.l.b16 %v1463
        %v1498 = vunpack.c.h.b16 %v1463
        %v1499 = vunpack.c.l.b16 %v1464
        %v1500 = vunpack.c.h.b16 %v1464
        %v1501 = vunpack.c.l.b16 %v1465
        %v1502 = vunpack.c.h.b16 %v1465
        %v1503 = vunpack.c.l.b16 %v1466
        %v1504 = vunpack.c.h.b16 %v1466
        %v1505 = vunpack.c.l.b16 %v1467
        %v1506 = vunpack.c.h.b16 %v1467
        %v1507 = vunpack.c.l.b16 %v1468
        %v1508 = vunpack.c.h.b16 %v1468
        %v1509 = vunpack.c.l.b16 %v1469
        %v1510 = vunpack.c.h.b16 %v1469
        %v1511 = vunpack.c.l.b16 %v1470
        %v1512 = vunpack.c.h.b16 %v1470
        %v1513 = vunpack.c.l.b16 %v1471
        %v1514 = vunpack.c.h.b16 %v1471
        %v1515 = vunpack.c.l.b16 %v1472
        %v1516 = vunpack.c.h.b16 %v1472
        %v1517 = vunpack.c.l.b16 %v1473
        %v1518 = vunpack.c.h.b16 %v1473
        %v1519 = vunpack.c.l.b16 %v1474
        %v1520 = vunpack.c.h.b16 %v1474
        %v1521 = vunpack.c.l.b16 %v1475
        %v1522 = vunpack.c.h.b16 %v1475
        %v1523 = vunpack.c.l.b16 %v1476
        %v1524 = vunpack.c.h.b16 %v1476
        %v1525 = vunpack.c.l.b16 %v1477
        %v1526 = vunpack.c.h.b16 %v1477
        %v1527 = vunpack.c.l.b16 %v1478
        %v1528 = vunpack.c.h.b16 %v1478
        %v1529 = vpack.c.b16 %v1499, %v1497
        %v1530 = vpack.c.b16 %v1500, %v1498
        %v1531 = vpack.c.b16 %v1503, %v1501
        %v1532 = vpack.c.b16 %v1504, %v1502
        %v1533 = vpack.c.b16 %v1507, %v1505
        %v1534 = vpack.c.b16 %v1508, %v1506
        %v1535 = vpack.c.b16 %v1511, %v1509
        %v1536 = vpack.c.b16 %v1512, %v1510
        %v1537 = vpack.c.b16 %v1515, %v1513
        %v1538 = vpack.c.b16 %v1516, %v1514
        %v1539 = vpack.c.b16 %v1519, %v1517
        %v1540 = vpack.c.b16 %v1520, %v1518
        %v1541 = vpack.c.b16 %v1523, %v1521
        %v1542 = vpack.c.b16 %v1524, %v1522
        %v1543 = vpack.c.b16 %v1527, %v1525
        %v1544 = vpack.c.b16 %v1528, %v1526
        %1561 = vmatpush.bf16.msra.mxu0 %v1543
        %1562 = vmatpush.bf16.msra.mxu0 %v1541
        %1563 = vmatpush.bf16.msra.mxu0 %v1539
        %1564 = vmatpush.bf16.msra.mxu0 %v1537
        %1565 = vmatpush.bf16.msra.mxu0 %v1535
        %1566 = vmatpush.bf16.msra.mxu0 %v1533
        %1567 = vmatpush.bf16.msra.mxu0 %v1531
        %1568 = vmatpush.bf16.msra.mxu0 %v1529
        %1569 = vmatmul.bf16.gmra.mxu0 %v1479
        %v1570 = vpop.f32.mrf.mxu0
        %v1571 = vadd.f32 0.0, %v1570
        %v1572 = vpop.f32.mrf.mxu0
        %1573 = vdwg.mxu0
        %1574 = vmatpush.bf16.msra.mxu0 %v1544
        %1575 = vmatpush.bf16.msra.mxu0 %v1542
        %1576 = vmatpush.bf16.msra.mxu0 %v1540
        %1577 = vmatpush.bf16.msra.mxu0 %v1538
        %1578 = vmatpush.bf16.msra.mxu0 %v1536
        %1579 = vmatpush.bf16.msra.mxu0 %v1534
        %1580 = vmatpush.bf16.msra.mxu0 %v1532
        %1581 = vmatpush.bf16.msra.mxu0 %v1530
        %1582 = vmatmul.bf16.gmra.mxu0 %v1479
        %v1583 = vpop.f32.mrf.mxu0
        %v1584 = vadd.f32 0.0, %v1583
        %v1585 = vpop.f32.mrf.mxu0
        %1586 = vdwg.mxu0
        %v1587 = vadd.f32 %v1446, %v1571
        %v1588 = vadd.f32 %v1459, %v1584
        %s1589 = scalar_lea.vmem %s10, 384
        %v1590 = vld [vmem:[%s1589] sm:$0xff]
        %v1591 = vld [vmem:[%s1589 + $0x8] sm:$0xff]
        %v1592 = vld [vmem:[%s1589 + $0x10] sm:$0xff]
        %v1593 = vld [vmem:[%s1589 + $0x18] sm:$0xff]
        %v1594 = vld [vmem:[%s1589 + $0x20] sm:$0xff]
        %v1595 = vld [vmem:[%s1589 + $0x28] sm:$0xff]
        %v1596 = vld [vmem:[%s1589 + $0x30] sm:$0xff]
        %v1597 = vld [vmem:[%s1589 + $0x38] sm:$0xff]
        %v1598 = vld [vmem:[%s1589 + $0x40] sm:$0xff]
        %v1599 = vld [vmem:[%s1589 + $0x48] sm:$0xff]
        %v1600 = vld [vmem:[%s1589 + $0x50] sm:$0xff]
        %v1601 = vld [vmem:[%s1589 + $0x58] sm:$0xff]
        %v1602 = vld [vmem:[%s1589 + $0x60] sm:$0xff]
        %v1603 = vld [vmem:[%s1589 + $0x68] sm:$0xff]
        %v1604 = vld [vmem:[%s1589 + $0x70] sm:$0xff]
        %v1605 = vld [vmem:[%s1589 + $0x78] sm:$0xff]
        %v1606 = vrot.slane %v1243, 1
        %v1607 = vrot.slane %v1245, 2
        %v1608 = vor.u32 %v1606, %v1607
        %v1626 = vunpack.c.l.b16 %v1590
        %v1627 = vunpack.c.h.b16 %v1590
        %v1628 = vunpack.c.l.b16 %v1591
        %v1629 = vunpack.c.h.b16 %v1591
        %v1630 = vunpack.c.l.b16 %v1592
        %v1631 = vunpack.c.h.b16 %v1592
        %v1632 = vunpack.c.l.b16 %v1593
        %v1633 = vunpack.c.h.b16 %v1593
        %v1634 = vunpack.c.l.b16 %v1594
        %v1635 = vunpack.c.h.b16 %v1594
        %v1636 = vunpack.c.l.b16 %v1595
        %v1637 = vunpack.c.h.b16 %v1595
        %v1638 = vunpack.c.l.b16 %v1596
        %v1639 = vunpack.c.h.b16 %v1596
        %v1640 = vunpack.c.l.b16 %v1597
        %v1641 = vunpack.c.h.b16 %v1597
        %v1642 = vunpack.c.l.b16 %v1598
        %v1643 = vunpack.c.h.b16 %v1598
        %v1644 = vunpack.c.l.b16 %v1599
        %v1645 = vunpack.c.h.b16 %v1599
        %v1646 = vunpack.c.l.b16 %v1600
        %v1647 = vunpack.c.h.b16 %v1600
        %v1648 = vunpack.c.l.b16 %v1601
        %v1649 = vunpack.c.h.b16 %v1601
        %v1650 = vunpack.c.l.b16 %v1602
        %v1651 = vunpack.c.h.b16 %v1602
        %v1652 = vunpack.c.l.b16 %v1603
        %v1653 = vunpack.c.h.b16 %v1603
        %v1654 = vunpack.c.l.b16 %v1604
        %v1655 = vunpack.c.h.b16 %v1604
        %v1656 = vunpack.c.l.b16 %v1605
        %v1657 = vunpack.c.h.b16 %v1605
        %v1658 = vpack.c.b16 %v1628, %v1626
        %v1659 = vpack.c.b16 %v1629, %v1627
        %v1660 = vpack.c.b16 %v1632, %v1630
        %v1661 = vpack.c.b16 %v1633, %v1631
        %v1662 = vpack.c.b16 %v1636, %v1634
        %v1663 = vpack.c.b16 %v1637, %v1635
        %v1664 = vpack.c.b16 %v1640, %v1638
        %v1665 = vpack.c.b16 %v1641, %v1639
        %v1666 = vpack.c.b16 %v1644, %v1642
        %v1667 = vpack.c.b16 %v1645, %v1643
        %v1668 = vpack.c.b16 %v1648, %v1646
        %v1669 = vpack.c.b16 %v1649, %v1647
        %v1670 = vpack.c.b16 %v1652, %v1650
        %v1671 = vpack.c.b16 %v1653, %v1651
        %v1672 = vpack.c.b16 %v1656, %v1654
        %v1673 = vpack.c.b16 %v1657, %v1655
        %1690 = vmatpush.bf16.msra.mxu0 %v1672
        %1691 = vmatpush.bf16.msra.mxu0 %v1670
        %1692 = vmatpush.bf16.msra.mxu0 %v1668
        %1693 = vmatpush.bf16.msra.mxu0 %v1666
        %1694 = vmatpush.bf16.msra.mxu0 %v1664
        %1695 = vmatpush.bf16.msra.mxu0 %v1662
        %1696 = vmatpush.bf16.msra.mxu0 %v1660
        %1697 = vmatpush.bf16.msra.mxu0 %v1658
        %1698 = vmatmul.bf16.gmra.mxu0 %v1608
        %v1699 = vpop.f32.mrf.mxu0
        %v1700 = vadd.f32 0.0, %v1699
        %v1701 = vpop.f32.mrf.mxu0
        %1702 = vdwg.mxu0
        %1703 = vmatpush.bf16.msra.mxu0 %v1673
        %1704 = vmatpush.bf16.msra.mxu0 %v1671
        %1705 = vmatpush.bf16.msra.mxu0 %v1669
        %1706 = vmatpush.bf16.msra.mxu0 %v1667
        %1707 = vmatpush.bf16.msra.mxu0 %v1665
        %1708 = vmatpush.bf16.msra.mxu0 %v1663
        %1709 = vmatpush.bf16.msra.mxu0 %v1661
        %1710 = vmatpush.bf16.msra.mxu0 %v1659
        %1711 = vmatmul.bf16.gmra.mxu0 %v1608
        %v1712 = vpop.f32.mrf.mxu0
        %v1713 = vadd.f32 0.0, %v1712
        %v1714 = vpop.f32.mrf.mxu0
        %1715 = vdwg.mxu0
        %v1716 = vadd.f32 %v1587, %v1700
        %v1717 = vadd.f32 %v1588, %v1713
        %s1718 = scalar_lea.vmem %s10, 512
        %v1719 = vld [vmem:[%s1718] sm:$0xff]
        %v1720 = vld [vmem:[%s1718 + $0x8] sm:$0xff]
        %v1721 = vld [vmem:[%s1718 + $0x10] sm:$0xff]
        %v1722 = vld [vmem:[%s1718 + $0x18] sm:$0xff]
        %v1723 = vld [vmem:[%s1718 + $0x20] sm:$0xff]
        %v1724 = vld [vmem:[%s1718 + $0x28] sm:$0xff]
        %v1725 = vld [vmem:[%s1718 + $0x30] sm:$0xff]
        %v1726 = vld [vmem:[%s1718 + $0x38] sm:$0xff]
        %v1727 = vld [vmem:[%s1718 + $0x40] sm:$0xff]
        %v1728 = vld [vmem:[%s1718 + $0x48] sm:$0xff]
        %v1729 = vld [vmem:[%s1718 + $0x50] sm:$0xff]
        %v1730 = vld [vmem:[%s1718 + $0x58] sm:$0xff]
        %v1731 = vld [vmem:[%s1718 + $0x60] sm:$0xff]
        %v1732 = vld [vmem:[%s1718 + $0x68] sm:$0xff]
        %v1733 = vld [vmem:[%s1718 + $0x70] sm:$0xff]
        %v1734 = vld [vmem:[%s1718 + $0x78] sm:$0xff]
        %v1735 = vrot.slane %v1241, 2
        %v1753 = vunpack.c.l.b16 %v1719
        %v1754 = vunpack.c.h.b16 %v1719
        %v1755 = vunpack.c.l.b16 %v1720
        %v1756 = vunpack.c.h.b16 %v1720
        %v1757 = vunpack.c.l.b16 %v1721
        %v1758 = vunpack.c.h.b16 %v1721
        %v1759 = vunpack.c.l.b16 %v1722
        %v1760 = vunpack.c.h.b16 %v1722
        %v1761 = vunpack.c.l.b16 %v1723
        %v1762 = vunpack.c.h.b16 %v1723
        %v1763 = vunpack.c.l.b16 %v1724
        %v1764 = vunpack.c.h.b16 %v1724
        %v1765 = vunpack.c.l.b16 %v1725
        %v1766 = vunpack.c.h.b16 %v1725
        %v1767 = vunpack.c.l.b16 %v1726
        %v1768 = vunpack.c.h.b16 %v1726
        %v1769 = vunpack.c.l.b16 %v1727
        %v1770 = vunpack.c.h.b16 %v1727
        %v1771 = vunpack.c.l.b16 %v1728
        %v1772 = vunpack.c.h.b16 %v1728
        %v1773 = vunpack.c.l.b16 %v1729
        %v1774 = vunpack.c.h.b16 %v1729
        %v1775 = vunpack.c.l.b16 %v1730
        %v1776 = vunpack.c.h.b16 %v1730
        %v1777 = vunpack.c.l.b16 %v1731
        %v1778 = vunpack.c.h.b16 %v1731
        %v1779 = vunpack.c.l.b16 %v1732
        %v1780 = vunpack.c.h.b16 %v1732
        %v1781 = vunpack.c.l.b16 %v1733
        %v1782 = vunpack.c.h.b16 %v1733
        %v1783 = vunpack.c.l.b16 %v1734
        %v1784 = vunpack.c.h.b16 %v1734
        %v1785 = vpack.c.b16 %v1755, %v1753
        %v1786 = vpack.c.b16 %v1756, %v1754
        %v1787 = vpack.c.b16 %v1759, %v1757
        %v1788 = vpack.c.b16 %v1760, %v1758
        %v1789 = vpack.c.b16 %v1763, %v1761
        %v1790 = vpack.c.b16 %v1764, %v1762
        %v1791 = vpack.c.b16 %v1767, %v1765
        %v1792 = vpack.c.b16 %v1768, %v1766
        %v1793 = vpack.c.b16 %v1771, %v1769
        %v1794 = vpack.c.b16 %v1772, %v1770
        %v1795 = vpack.c.b16 %v1775, %v1773
        %v1796 = vpack.c.b16 %v1776, %v1774
        %v1797 = vpack.c.b16 %v1779, %v1777
        %v1798 = vpack.c.b16 %v1780, %v1778
        %v1799 = vpack.c.b16 %v1783, %v1781
        %v1800 = vpack.c.b16 %v1784, %v1782
        %1817 = vmatpush.bf16.msra.mxu0 %v1799
        %1818 = vmatpush.bf16.msra.mxu0 %v1797
        %1819 = vmatpush.bf16.msra.mxu0 %v1795
        %1820 = vmatpush.bf16.msra.mxu0 %v1793
        %1821 = vmatpush.bf16.msra.mxu0 %v1791
        %1822 = vmatpush.bf16.msra.mxu0 %v1789
        %1823 = vmatpush.bf16.msra.mxu0 %v1787
        %1824 = vmatpush.bf16.msra.mxu0 %v1785
        %1825 = vmatmul.bf16.gmra.mxu0 %v1735
        %v1826 = vpop.f32.mrf.mxu0
        %v1827 = vadd.f32 0.0, %v1826
        %v1828 = vpop.f32.mrf.mxu0
        %1829 = vdwg.mxu0
        %1830 = vmatpush.bf16.msra.mxu0 %v1800
        %1831 = vmatpush.bf16.msra.mxu0 %v1798
        %1832 = vmatpush.bf16.msra.mxu0 %v1796
        %1833 = vmatpush.bf16.msra.mxu0 %v1794
        %1834 = vmatpush.bf16.msra.mxu0 %v1792
        %1835 = vmatpush.bf16.msra.mxu0 %v1790
        %1836 = vmatpush.bf16.msra.mxu0 %v1788
        %1837 = vmatpush.bf16.msra.mxu0 %v1786
        %1838 = vmatmul.bf16.gmra.mxu0 %v1735
        %v1839 = vpop.f32.mrf.mxu0
        %v1840 = vadd.f32 0.0, %v1839
        %v1841 = vpop.f32.mrf.mxu0
        %1842 = vdwg.mxu0
        %v1843 = vadd.f32 %v1716, %v1827
        %v1844 = vadd.f32 %v1717, %v1840
        %s1845 = scalar_lea.vmem %s10, 640
        %v1846 = vld [vmem:[%s1845] sm:$0xff]
        %v1847 = vld [vmem:[%s1845 + $0x8] sm:$0xff]
        %v1848 = vld [vmem:[%s1845 + $0x10] sm:$0xff]
        %v1849 = vld [vmem:[%s1845 + $0x18] sm:$0xff]
        %v1850 = vld [vmem:[%s1845 + $0x20] sm:$0xff]
        %v1851 = vld [vmem:[%s1845 + $0x28] sm:$0xff]
        %v1852 = vld [vmem:[%s1845 + $0x30] sm:$0xff]
        %v1853 = vld [vmem:[%s1845 + $0x38] sm:$0xff]
        %v1854 = vld [vmem:[%s1845 + $0x40] sm:$0xff]
        %v1855 = vld [vmem:[%s1845 + $0x48] sm:$0xff]
        %v1856 = vld [vmem:[%s1845 + $0x50] sm:$0xff]
        %v1857 = vld [vmem:[%s1845 + $0x58] sm:$0xff]
        %v1858 = vld [vmem:[%s1845 + $0x60] sm:$0xff]
        %v1859 = vld [vmem:[%s1845 + $0x68] sm:$0xff]
        %v1860 = vld [vmem:[%s1845 + $0x70] sm:$0xff]
        %v1861 = vld [vmem:[%s1845 + $0x78] sm:$0xff]
        %v1863 = vunpack.c.l.b16 %v1205
        %v1864 = vpack.c.b16 %v1863, %v1240
        %v1866 = vshrl.u32 %v1864, 16
        %v1868 = vrot.slane %v1866, 2
        %v1869 = vshll.u32 %v1864, 16
        %v1871 = vrot.slane %v1869, 3
        %v1872 = vor.u32 %v1868, %v1871
        %v1890 = vunpack.c.l.b16 %v1846
        %v1891 = vunpack.c.h.b16 %v1846
        %v1892 = vunpack.c.l.b16 %v1847
        %v1893 = vunpack.c.h.b16 %v1847
        %v1894 = vunpack.c.l.b16 %v1848
        %v1895 = vunpack.c.h.b16 %v1848
        %v1896 = vunpack.c.l.b16 %v1849
        %v1897 = vunpack.c.h.b16 %v1849
        %v1898 = vunpack.c.l.b16 %v1850
        %v1899 = vunpack.c.h.b16 %v1850
        %v1900 = vunpack.c.l.b16 %v1851
        %v1901 = vunpack.c.h.b16 %v1851
        %v1902 = vunpack.c.l.b16 %v1852
        %v1903 = vunpack.c.h.b16 %v1852
        %v1904 = vunpack.c.l.b16 %v1853
        %v1905 = vunpack.c.h.b16 %v1853
        %v1906 = vunpack.c.l.b16 %v1854
        %v1907 = vunpack.c.h.b16 %v1854
        %v1908 = vunpack.c.l.b16 %v1855
        %v1909 = vunpack.c.h.b16 %v1855
        %v1910 = vunpack.c.l.b16 %v1856
        %v1911 = vunpack.c.h.b16 %v1856
        %v1912 = vunpack.c.l.b16 %v1857
        %v1913 = vunpack.c.h.b16 %v1857
        %v1914 = vunpack.c.l.b16 %v1858
        %v1915 = vunpack.c.h.b16 %v1858
        %v1916 = vunpack.c.l.b16 %v1859
        %v1917 = vunpack.c.h.b16 %v1859
        %v1918 = vunpack.c.l.b16 %v1860
        %v1919 = vunpack.c.h.b16 %v1860
        %v1920 = vunpack.c.l.b16 %v1861
        %v1921 = vunpack.c.h.b16 %v1861
        %v1922 = vpack.c.b16 %v1892, %v1890
        %v1923 = vpack.c.b16 %v1893, %v1891
        %v1924 = vpack.c.b16 %v1896, %v1894
        %v1925 = vpack.c.b16 %v1897, %v1895
        %v1926 = vpack.c.b16 %v1900, %v1898
        %v1927 = vpack.c.b16 %v1901, %v1899
        %v1928 = vpack.c.b16 %v1904, %v1902
        %v1929 = vpack.c.b16 %v1905, %v1903
        %v1930 = vpack.c.b16 %v1908, %v1906
        %v1931 = vpack.c.b16 %v1909, %v1907
        %v1932 = vpack.c.b16 %v1912, %v1910
        %v1933 = vpack.c.b16 %v1913, %v1911
        %v1934 = vpack.c.b16 %v1916, %v1914
        %v1935 = vpack.c.b16 %v1917, %v1915
        %v1936 = vpack.c.b16 %v1920, %v1918
        %v1937 = vpack.c.b16 %v1921, %v1919
        %1954 = vmatpush.bf16.msra.mxu0 %v1936
        %1955 = vmatpush.bf16.msra.mxu0 %v1934
        %1956 = vmatpush.bf16.msra.mxu0 %v1932
        %1957 = vmatpush.bf16.msra.mxu0 %v1930
        %1958 = vmatpush.bf16.msra.mxu0 %v1928
        %1959 = vmatpush.bf16.msra.mxu0 %v1926
        %1960 = vmatpush.bf16.msra.mxu0 %v1924
        %1961 = vmatpush.bf16.msra.mxu0 %v1922
        %1962 = vmatmul.bf16.gmra.mxu0 %v1872
        %v1963 = vpop.f32.mrf.mxu0
        %v1964 = vadd.f32 0.0, %v1963
        %v1965 = vpop.f32.mrf.mxu0
        %1966 = vdwg.mxu0
        %1967 = vmatpush.bf16.msra.mxu0 %v1937
        %1968 = vmatpush.bf16.msra.mxu0 %v1935
        %1969 = vmatpush.bf16.msra.mxu0 %v1933
        %1970 = vmatpush.bf16.msra.mxu0 %v1931
        %1971 = vmatpush.bf16.msra.mxu0 %v1929
        %1972 = vmatpush.bf16.msra.mxu0 %v1927
        %1973 = vmatpush.bf16.msra.mxu0 %v1925
        %1974 = vmatpush.bf16.msra.mxu0 %v1923
        %1975 = vmatmul.bf16.gmra.mxu0 %v1872
        %v1976 = vpop.f32.mrf.mxu0
        %v1977 = vadd.f32 0.0, %v1976
        %v1978 = vpop.f32.mrf.mxu0
        %1979 = vdwg.mxu0
        %v1980 = vadd.f32 %v1843, %v1964
        %v1981 = vadd.f32 %v1844, %v1977
        %s1982 = scalar_lea.vmem %s10, 768
        %v1983 = vld [vmem:[%s1982] sm:$0xff]
        %v1984 = vld [vmem:[%s1982 + $0x8] sm:$0xff]
        %v1985 = vld [vmem:[%s1982 + $0x10] sm:$0xff]
        %v1986 = vld [vmem:[%s1982 + $0x18] sm:$0xff]
        %v1987 = vld [vmem:[%s1982 + $0x20] sm:$0xff]
        %v1988 = vld [vmem:[%s1982 + $0x28] sm:$0xff]
        %v1989 = vld [vmem:[%s1982 + $0x30] sm:$0xff]
        %v1990 = vld [vmem:[%s1982 + $0x38] sm:$0xff]
        %v1991 = vld [vmem:[%s1982 + $0x40] sm:$0xff]
        %v1992 = vld [vmem:[%s1982 + $0x48] sm:$0xff]
        %v1993 = vld [vmem:[%s1982 + $0x50] sm:$0xff]
        %v1994 = vld [vmem:[%s1982 + $0x58] sm:$0xff]
        %v1995 = vld [vmem:[%s1982 + $0x60] sm:$0xff]
        %v1996 = vld [vmem:[%s1982 + $0x68] sm:$0xff]
        %v1997 = vld [vmem:[%s1982 + $0x70] sm:$0xff]
        %v1998 = vld [vmem:[%s1982 + $0x78] sm:$0xff]
        %v1999 = vrot.slane %v1864, 3
        %v2017 = vunpack.c.l.b16 %v1983
        %v2018 = vunpack.c.h.b16 %v1983
        %v2019 = vunpack.c.l.b16 %v1984
        %v2020 = vunpack.c.h.b16 %v1984
        %v2021 = vunpack.c.l.b16 %v1985
        %v2022 = vunpack.c.h.b16 %v1985
        %v2023 = vunpack.c.l.b16 %v1986
        %v2024 = vunpack.c.h.b16 %v1986
        %v2025 = vunpack.c.l.b16 %v1987
        %v2026 = vunpack.c.h.b16 %v1987
        %v2027 = vunpack.c.l.b16 %v1988
        %v2028 = vunpack.c.h.b16 %v1988
        %v2029 = vunpack.c.l.b16 %v1989
        %v2030 = vunpack.c.h.b16 %v1989
        %v2031 = vunpack.c.l.b16 %v1990
        %v2032 = vunpack.c.h.b16 %v1990
        %v2033 = vunpack.c.l.b16 %v1991
        %v2034 = vunpack.c.h.b16 %v1991
        %v2035 = vunpack.c.l.b16 %v1992
        %v2036 = vunpack.c.h.b16 %v1992
        %v2037 = vunpack.c.l.b16 %v1993
        %v2038 = vunpack.c.h.b16 %v1993
        %v2039 = vunpack.c.l.b16 %v1994
        %v2040 = vunpack.c.h.b16 %v1994
        %v2041 = vunpack.c.l.b16 %v1995
        %v2042 = vunpack.c.h.b16 %v1995
        %v2043 = vunpack.c.l.b16 %v1996
        %v2044 = vunpack.c.h.b16 %v1996
        %v2045 = vunpack.c.l.b16 %v1997
        %v2046 = vunpack.c.h.b16 %v1997
        %v2047 = vunpack.c.l.b16 %v1998
        %v2048 = vunpack.c.h.b16 %v1998
        %v2049 = vpack.c.b16 %v2019, %v2017
        %v2050 = vpack.c.b16 %v2020, %v2018
        %v2051 = vpack.c.b16 %v2023, %v2021
        %v2052 = vpack.c.b16 %v2024, %v2022
        %v2053 = vpack.c.b16 %v2027, %v2025
        %v2054 = vpack.c.b16 %v2028, %v2026
        %v2055 = vpack.c.b16 %v2031, %v2029
        %v2056 = vpack.c.b16 %v2032, %v2030
        %v2057 = vpack.c.b16 %v2035, %v2033
        %v2058 = vpack.c.b16 %v2036, %v2034
        %v2059 = vpack.c.b16 %v2039, %v2037
        %v2060 = vpack.c.b16 %v2040, %v2038
        %v2061 = vpack.c.b16 %v2043, %v2041
        %v2062 = vpack.c.b16 %v2044, %v2042
        %v2063 = vpack.c.b16 %v2047, %v2045
        %v2064 = vpack.c.b16 %v2048, %v2046
        %2081 = vmatpush.bf16.msra.mxu0 %v2063
        %2082 = vmatpush.bf16.msra.mxu0 %v2061
        %2083 = vmatpush.bf16.msra.mxu0 %v2059
        %2084 = vmatpush.bf16.msra.mxu0 %v2057
        %2085 = vmatpush.bf16.msra.mxu0 %v2055
        %2086 = vmatpush.bf16.msra.mxu0 %v2053
        %2087 = vmatpush.bf16.msra.mxu0 %v2051
        %2088 = vmatpush.bf16.msra.mxu0 %v2049
        %2089 = vmatmul.bf16.gmra.mxu0 %v1999
        %v2090 = vpop.f32.mrf.mxu0
        %v2091 = vadd.f32 0.0, %v2090
        %v2092 = vpop.f32.mrf.mxu0
        %2093 = vdwg.mxu0
        %2094 = vmatpush.bf16.msra.mxu0 %v2064
        %2095 = vmatpush.bf16.msra.mxu0 %v2062
        %2096 = vmatpush.bf16.msra.mxu0 %v2060
        %2097 = vmatpush.bf16.msra.mxu0 %v2058
        %2098 = vmatpush.bf16.msra.mxu0 %v2056
        %2099 = vmatpush.bf16.msra.mxu0 %v2054
        %2100 = vmatpush.bf16.msra.mxu0 %v2052
        %2101 = vmatpush.bf16.msra.mxu0 %v2050
        %2102 = vmatmul.bf16.gmra.mxu0 %v1999
        %v2103 = vpop.f32.mrf.mxu0
        %v2104 = vadd.f32 0.0, %v2103
        %v2105 = vpop.f32.mrf.mxu0
        %2106 = vdwg.mxu0
        %v2107 = vadd.f32 %v1980, %v2091
        %v2108 = vadd.f32 %v1981, %v2104
        %v2109 = vld [vmem:[%s11] sm:$0x3]
        %v2111 = vperm.slane %v2109, 0
        %v2112 = vperm.slane %v2109, 1
        %v2115 = vadd.f32 %v2107, %v2111
        %v2116 = vadd.f32 %v2108, %v2112
        %vm2117 = vcmp.ge.f32.partialorder %v2115, 0.0
        %vm2118 = vcmp.ge.f32.partialorder %v2116, 0.0
        %v2119 = vmul.f32 %v2115, 0.2
        %v2120 = vmul.f32 %v2116, 0.2
        %v2121 = vsel %vm2117, %v2115, %v2119
        %v2122 = vsel %vm2118, %v2116, %v2120
        %v2123 = vld [vmem:[%s3] sm:$0xff]
        %v2124 = vld [vmem:[%s3 + $0x8] sm:$0x3]
        %vm2125 = vcmask 31744
        %v2127 = vsel %vm2125, %v2123, 0
        %v2130 = vsel %vm2125, %v2124, 0
        %vm2132 = vcmask 1043456
        %v2134 = vsel %vm2132, %v2121, 0
        %v2137 = vsel %vm2132, %v2122, 0
        %2139 = vmatpush.msra.mxu0 0.0
        %2140 = vmatpush.msra.mxu0 0.0
        %2141 = vmatpush.msra.mxu0 0.0
        %2142 = vmatpush.msra.mxu0 0.0
        %2143 = vmatpush.msra.mxu0 0.0
        %2144 = vmatpush.msra.mxu0 0.0
        %2145 = vmatpush.msra.mxu0 0.0
        %2146 = vmatpush.msra.mxu0 0.0
        %2147 = vmatpush.msra.mxu0 0.0
        %2148 = vmatpush.msra.mxu0 0.0
        %2149 = vmatpush.msra.mxu0 0.0
        %2150 = vmatpush.msra.mxu0 0.0
        %2151 = vmatpush.msra.mxu0 0.0
        %2152 = vmatpush.msra.mxu0 0.0
        %2153 = vmatpush.msra.mxu0 0.0
        %2154 = vmatpush.msra.mxu0 %v2134
        %2155 = vmatmul.f32.gmra.mxu0 %v2127
        %v2156 = vpop.f32.mrf.mxu0
        %v2157 = vadd.f32 0.0, %v2156
        %2158 = vmatmul.f32.gmra.mxu0 %v2130
        %v2159 = vpop.f32.mrf.mxu0
        %v2160 = vadd.f32 0.0, %v2159
        %2161 = vdwg.mxu0
        %2162 = vmatpush.msra.mxu0 0.0
        %2163 = vmatpush.msra.mxu0 0.0
        %2164 = vmatpush.msra.mxu0 0.0
        %2165 = vmatpush.msra.mxu0 0.0
        %2166 = vmatpush.msra.mxu0 0.0
        %2167 = vmatpush.msra.mxu0 0.0
        %2168 = vmatpush.msra.mxu0 0.0
        %2169 = vmatpush.msra.mxu0 0.0
        %2170 = vmatpush.msra.mxu0 0.0
        %2171 = vmatpush.msra.mxu0 0.0
        %2172 = vmatpush.msra.mxu0 0.0
        %2173 = vmatpush.msra.mxu0 0.0
        %2174 = vmatpush.msra.mxu0 0.0
        %2175 = vmatpush.msra.mxu0 0.0
        %2176 = vmatpush.msra.mxu0 0.0
        %2177 = vmatpush.msra.mxu0 %v2137
        %2178 = vmatmul.f32.gmra.mxu0 %v2127
        %v2179 = vpop.f32.mrf.mxu0
        %v2180 = vadd.f32 0.0, %v2179
        %2181 = vmatmul.f32.gmra.mxu0 %v2130
        %v2182 = vpop.f32.mrf.mxu0
        %v2183 = vadd.f32 0.0, %v2182
        %2184 = vdwg.mxu0
        %v2185 = vpack.c.bf16 %v2180, %v2157
        %v2186 = vpack.c.bf16 %v2183, %v2160
        %v2187 = vld [vmem:[#allocation2] sm:$0xff]
        %v2188 = vld [vmem:[#allocation2 + $0x8] sm:$0xff]
        %v2189 = vld [vmem:[#allocation2 + $0x10] sm:$0xff]
        %v2190 = vld [vmem:[#allocation2 + $0x18] sm:$0xff]
        %v2191 = vld [vmem:[#allocation2 + $0x20] sm:$0xff]
        %v2192 = vld [vmem:[#allocation2 + $0x28] sm:$0xff]
        %v2193 = vld [vmem:[#allocation2 + $0x30] sm:$0xff]
        %v2194 = vld [vmem:[#allocation2 + $0x38] sm:$0xff]
        %v2195 = vld [vmem:[#allocation2 + $0x40] sm:$0xff]
        %v2196 = vld [vmem:[#allocation2 + $0x48] sm:$0xff]
        %v2197 = vld [vmem:[#allocation2 + $0x50] sm:$0xff]
        %v2198 = vld [vmem:[#allocation2 + $0x58] sm:$0xff]
        %v2199 = vld [vmem:[#allocation2 + $0x60] sm:$0xff]
        %v2200 = vld [vmem:[#allocation2 + $0x68] sm:$0xff]
        %v2201 = vld [vmem:[#allocation2 + $0x70] sm:$0xff]
        %v2202 = vld [vmem:[#allocation2 + $0x78] sm:$0xff]
        %v2203 = vld [vmem:[#allocation2 + $0x80] sm:$0xff]
        %v2204 = vld [vmem:[#allocation2 + $0x88] sm:$0xff]
        %v2205 = vld [vmem:[#allocation2 + $0x90] sm:$0xff]
        %v2206 = vld [vmem:[#allocation2 + $0x98] sm:$0xff]
        %v2207 = vld [vmem:[#allocation2 + $0xa0] sm:$0xff]
        %v2208 = vld [vmem:[#allocation2 + $0xa8] sm:$0xff]
        %v2209 = vld [vmem:[#allocation2 + $0xb0] sm:$0xff]
        %v2210 = vld [vmem:[#allocation2 + $0xb8] sm:$0xff]
        %v2211 = vld [vmem:[#allocation2 + $0xc0] sm:$0xff]
        %v2212 = vld [vmem:[#allocation2 + $0xc8] sm:$0xff]
        %v2213 = vld [vmem:[#allocation2 + $0xd0] sm:$0xff]
        %v2214 = vld [vmem:[#allocation2 + $0xd8] sm:$0xff]
        %v2215 = vld [vmem:[#allocation2 + $0xe0] sm:$0xff]
        %v2216 = vld [vmem:[#allocation2 + $0xe8] sm:$0xff]
        %v2217 = vld [vmem:[#allocation2 + $0xf0] sm:$0xff]
        %v2218 = vld [vmem:[#allocation2 + $0xf8] sm:$0xff]
        %s2219 = scalar_lea.vmem [#allocation2], 256
        %v2220 = vld [vmem:[%s2219] sm:$0xff]
        %v2221 = vld [vmem:[%s2219 + $0x8] sm:$0xff]
        %v2222 = vld [vmem:[%s2219 + $0x10] sm:$0xff]
        %v2223 = vld [vmem:[%s2219 + $0x18] sm:$0xff]
        %v2224 = vld [vmem:[%s2219 + $0x20] sm:$0xff]
        %v2225 = vld [vmem:[%s2219 + $0x28] sm:$0xff]
        %v2226 = vld [vmem:[%s2219 + $0x30] sm:$0xff]
        %v2227 = vld [vmem:[%s2219 + $0x38] sm:$0xff]
        %v2228 = vld [vmem:[%s2219 + $0x40] sm:$0xff]
        %v2229 = vld [vmem:[%s2219 + $0x48] sm:$0xff]
        %v2230 = vld [vmem:[%s2219 + $0x50] sm:$0xff]
        %v2231 = vld [vmem:[%s2219 + $0x58] sm:$0xff]
        %v2232 = vld [vmem:[%s2219 + $0x60] sm:$0xff]
        %v2233 = vld [vmem:[%s2219 + $0x68] sm:$0xff]
        %v2234 = vld [vmem:[%s2219 + $0x70] sm:$0xff]
        %v2235 = vld [vmem:[%s2219 + $0x78] sm:$0xff]
        %v2236 = vld [vmem:[%s2219 + $0x80] sm:$0xff]
        %v2237 = vld [vmem:[%s2219 + $0x88] sm:$0xff]
        %v2238 = vld [vmem:[%s2219 + $0x90] sm:$0xff]
        %v2239 = vld [vmem:[%s2219 + $0x98] sm:$0xff]
        %v2240 = vld [vmem:[%s2219 + $0xa0] sm:$0xff]
        %v2241 = vld [vmem:[%s2219 + $0xa8] sm:$0xff]
        %v2242 = vld [vmem:[%s2219 + $0xb0] sm:$0xff]
        %v2243 = vld [vmem:[%s2219 + $0xb8] sm:$0xff]
        %v2244 = vld [vmem:[%s2219 + $0xc0] sm:$0xff]
        %v2245 = vld [vmem:[%s2219 + $0xc8] sm:$0xff]
        %v2246 = vld [vmem:[%s2219 + $0xd0] sm:$0xff]
        %v2247 = vld [vmem:[%s2219 + $0xd8] sm:$0xff]
        %v2248 = vld [vmem:[%s2219 + $0xe0] sm:$0xff]
        %v2249 = vld [vmem:[%s2219 + $0xe8] sm:$0xff]
        %v2250 = vld [vmem:[%s2219 + $0xf0] sm:$0xff]
        %v2251 = vld [vmem:[%s2219 + $0xf8] sm:$0xff]
        %v2253 = vunpack.c.l.b16 %v2185
        %v2254 = vunpack.c.h.b16 %v2185
        %v2255 = vpack.c.b16 %v2253, %v2253
        %v2256 = vpack.c.b16 %v2254, %v2254
        %v2258 = vshrl.u32 %v2255, 16
        %v2260 = vshll.u32 %v2255, 16
        %v2262 = vrot.slane %v2260, 1
        %v2263 = vor.u32 %v2258, %v2262
        %v2265 = vshrl.u32 %v2256, 16
        %v2267 = vshll.u32 %v2256, 16
        %v2269 = vrot.slane %v2267, 1
        %v2270 = vor.u32 %v2265, %v2269
        %v2305 = vunpack.c.l.b16 %v2220
        %v2306 = vunpack.c.h.b16 %v2220
        %v2307 = vunpack.c.l.b16 %v2221
        %v2308 = vunpack.c.h.b16 %v2221
        %v2309 = vunpack.c.l.b16 %v2222
        %v2310 = vunpack.c.h.b16 %v2222
        %v2311 = vunpack.c.l.b16 %v2223
        %v2312 = vunpack.c.h.b16 %v2223
        %v2313 = vunpack.c.l.b16 %v2224
        %v2314 = vunpack.c.h.b16 %v2224
        %v2315 = vunpack.c.l.b16 %v2225
        %v2316 = vunpack.c.h.b16 %v2225
        %v2317 = vunpack.c.l.b16 %v2226
        %v2318 = vunpack.c.h.b16 %v2226
        %v2319 = vunpack.c.l.b16 %v2227
        %v2320 = vunpack.c.h.b16 %v2227
        %v2321 = vunpack.c.l.b16 %v2228
        %v2322 = vunpack.c.h.b16 %v2228
        %v2323 = vunpack.c.l.b16 %v2229
        %v2324 = vunpack.c.h.b16 %v2229
        %v2325 = vunpack.c.l.b16 %v2230
        %v2326 = vunpack.c.h.b16 %v2230
        %v2327 = vunpack.c.l.b16 %v2231
        %v2328 = vunpack.c.h.b16 %v2231
        %v2329 = vunpack.c.l.b16 %v2232
        %v2330 = vunpack.c.h.b16 %v2232
        %v2331 = vunpack.c.l.b16 %v2233
        %v2332 = vunpack.c.h.b16 %v2233
        %v2333 = vunpack.c.l.b16 %v2234
        %v2334 = vunpack.c.h.b16 %v2234
        %v2335 = vunpack.c.l.b16 %v2235
        %v2336 = vunpack.c.h.b16 %v2235
        %v2337 = vunpack.c.l.b16 %v2236
        %v2338 = vunpack.c.h.b16 %v2236
        %v2339 = vunpack.c.l.b16 %v2237
        %v2340 = vunpack.c.h.b16 %v2237
        %v2341 = vunpack.c.l.b16 %v2238
        %v2342 = vunpack.c.h.b16 %v2238
        %v2343 = vunpack.c.l.b16 %v2239
        %v2344 = vunpack.c.h.b16 %v2239
        %v2345 = vunpack.c.l.b16 %v2240
        %v2346 = vunpack.c.h.b16 %v2240
        %v2347 = vunpack.c.l.b16 %v2241
        %v2348 = vunpack.c.h.b16 %v2241
        %v2349 = vunpack.c.l.b16 %v2242
        %v2350 = vunpack.c.h.b16 %v2242
        %v2351 = vunpack.c.l.b16 %v2243
        %v2352 = vunpack.c.h.b16 %v2243
        %v2353 = vunpack.c.l.b16 %v2244
        %v2354 = vunpack.c.h.b16 %v2244
        %v2355 = vunpack.c.l.b16 %v2245
        %v2356 = vunpack.c.h.b16 %v2245
        %v2357 = vunpack.c.l.b16 %v2246
        %v2358 = vunpack.c.h.b16 %v2246
        %v2359 = vunpack.c.l.b16 %v2247
        %v2360 = vunpack.c.h.b16 %v2247
        %v2361 = vunpack.c.l.b16 %v2248
        %v2362 = vunpack.c.h.b16 %v2248
        %v2363 = vunpack.c.l.b16 %v2249
        %v2364 = vunpack.c.h.b16 %v2249
        %v2365 = vunpack.c.l.b16 %v2250
        %v2366 = vunpack.c.h.b16 %v2250
        %v2367 = vunpack.c.l.b16 %v2251
        %v2368 = vunpack.c.h.b16 %v2251
        %v2369 = vpack.c.b16 %v2307, %v2305
        %v2370 = vpack.c.b16 %v2308, %v2306
        %v2371 = vpack.c.b16 %v2311, %v2309
        %v2372 = vpack.c.b16 %v2312, %v2310
        %v2373 = vpack.c.b16 %v2315, %v2313
        %v2374 = vpack.c.b16 %v2316, %v2314
        %v2375 = vpack.c.b16 %v2319, %v2317
        %v2376 = vpack.c.b16 %v2320, %v2318
        %v2377 = vpack.c.b16 %v2323, %v2321
        %v2378 = vpack.c.b16 %v2324, %v2322
        %v2379 = vpack.c.b16 %v2327, %v2325
        %v2380 = vpack.c.b16 %v2328, %v2326
        %v2381 = vpack.c.b16 %v2331, %v2329
        %v2382 = vpack.c.b16 %v2332, %v2330
        %v2383 = vpack.c.b16 %v2335, %v2333
        %v2384 = vpack.c.b16 %v2336, %v2334
        %v2385 = vpack.c.b16 %v2339, %v2337
        %v2386 = vpack.c.b16 %v2340, %v2338
        %v2387 = vpack.c.b16 %v2343, %v2341
        %v2388 = vpack.c.b16 %v2344, %v2342
        %v2389 = vpack.c.b16 %v2347, %v2345
        %v2390 = vpack.c.b16 %v2348, %v2346
        %v2391 = vpack.c.b16 %v2351, %v2349
        %v2392 = vpack.c.b16 %v2352, %v2350
        %v2393 = vpack.c.b16 %v2355, %v2353
        %v2394 = vpack.c.b16 %v2356, %v2354
        %v2395 = vpack.c.b16 %v2359, %v2357
        %v2396 = vpack.c.b16 %v2360, %v2358
        %v2397 = vpack.c.b16 %v2363, %v2361
        %v2398 = vpack.c.b16 %v2364, %v2362
        %v2399 = vpack.c.b16 %v2367, %v2365
        %v2400 = vpack.c.b16 %v2368, %v2366
        %2433 = vmatpush.bf16.msra.mxu0 %v2383
        %2434 = vmatpush.bf16.msra.mxu0 %v2381
        %2435 = vmatpush.bf16.msra.mxu0 %v2379
        %2436 = vmatpush.bf16.msra.mxu0 %v2377
        %2437 = vmatpush.bf16.msra.mxu0 %v2375
        %2438 = vmatpush.bf16.msra.mxu0 %v2373
        %2439 = vmatpush.bf16.msra.mxu0 %v2371
        %2440 = vmatpush.bf16.msra.mxu0 %v2369
        %2441 = vmatmul.bf16.gmra.mxu0 %v2263
        %v2442 = vpop.f32.mrf.mxu0
        %v2443 = vadd.f32 0.0, %v2442
        %v2444 = vpop.f32.mrf.mxu0
        %2445 = vdwg.mxu0
        %2446 = vmatpush.bf16.msra.mxu0 %v2399
        %2447 = vmatpush.bf16.msra.mxu0 %v2397
        %2448 = vmatpush.bf16.msra.mxu0 %v2395
        %2449 = vmatpush.bf16.msra.mxu0 %v2393
        %2450 = vmatpush.bf16.msra.mxu0 %v2391
        %2451 = vmatpush.bf16.msra.mxu0 %v2389
        %2452 = vmatpush.bf16.msra.mxu0 %v2387
        %2453 = vmatpush.bf16.msra.mxu0 %v2385
        %2454 = vmatmul.bf16.gmra.mxu0 %v2270
        %v2455 = vpop.f32.mrf.mxu0
        %v2456 = vadd.f32 %v2443, %v2455
        %v2457 = vpop.f32.mrf.mxu0
        %2458 = vdwg.mxu0
        %2459 = vmatpush.bf16.msra.mxu0 %v2384
        %2460 = vmatpush.bf16.msra.mxu0 %v2382
        %2461 = vmatpush.bf16.msra.mxu0 %v2380
        %2462 = vmatpush.bf16.msra.mxu0 %v2378
        %2463 = vmatpush.bf16.msra.mxu0 %v2376
        %2464 = vmatpush.bf16.msra.mxu0 %v2374
        %2465 = vmatpush.bf16.msra.mxu0 %v2372
        %2466 = vmatpush.bf16.msra.mxu0 %v2370
        %2467 = vmatmul.bf16.gmra.mxu0 %v2263
        %v2468 = vpop.f32.mrf.mxu0
        %v2469 = vadd.f32 0.0, %v2468
        %v2470 = vpop.f32.mrf.mxu0
        %2471 = vdwg.mxu0
        %2472 = vmatpush.bf16.msra.mxu0 %v2400
        %2473 = vmatpush.bf16.msra.mxu0 %v2398
        %2474 = vmatpush.bf16.msra.mxu0 %v2396
        %2475 = vmatpush.bf16.msra.mxu0 %v2394
        %2476 = vmatpush.bf16.msra.mxu0 %v2392
        %2477 = vmatpush.bf16.msra.mxu0 %v2390
        %2478 = vmatpush.bf16.msra.mxu0 %v2388
        %2479 = vmatpush.bf16.msra.mxu0 %v2386
        %2480 = vmatmul.bf16.gmra.mxu0 %v2270
        %v2481 = vpop.f32.mrf.mxu0
        %v2482 = vadd.f32 %v2469, %v2481
        %v2483 = vpop.f32.mrf.mxu0
        %2484 = vdwg.mxu0
        %v2519 = vunpack.c.l.b16 %v2187
        %v2520 = vunpack.c.h.b16 %v2187
        %v2521 = vunpack.c.l.b16 %v2188
        %v2522 = vunpack.c.h.b16 %v2188
        %v2523 = vunpack.c.l.b16 %v2189
        %v2524 = vunpack.c.h.b16 %v2189
        %v2525 = vunpack.c.l.b16 %v2190
        %v2526 = vunpack.c.h.b16 %v2190
        %v2527 = vunpack.c.l.b16 %v2191
        %v2528 = vunpack.c.h.b16 %v2191
        %v2529 = vunpack.c.l.b16 %v2192
        %v2530 = vunpack.c.h.b16 %v2192
        %v2531 = vunpack.c.l.b16 %v2193
        %v2532 = vunpack.c.h.b16 %v2193
        %v2533 = vunpack.c.l.b16 %v2194
        %v2534 = vunpack.c.h.b16 %v2194
        %v2535 = vunpack.c.l.b16 %v2195
        %v2536 = vunpack.c.h.b16 %v2195
        %v2537 = vunpack.c.l.b16 %v2196
        %v2538 = vunpack.c.h.b16 %v2196
        %v2539 = vunpack.c.l.b16 %v2197
        %v2540 = vunpack.c.h.b16 %v2197
        %v2541 = vunpack.c.l.b16 %v2198
        %v2542 = vunpack.c.h.b16 %v2198
        %v2543 = vunpack.c.l.b16 %v2199
        %v2544 = vunpack.c.h.b16 %v2199
        %v2545 = vunpack.c.l.b16 %v2200
        %v2546 = vunpack.c.h.b16 %v2200
        %v2547 = vunpack.c.l.b16 %v2201
        %v2548 = vunpack.c.h.b16 %v2201
        %v2549 = vunpack.c.l.b16 %v2202
        %v2550 = vunpack.c.h.b16 %v2202
        %v2551 = vunpack.c.l.b16 %v2203
        %v2552 = vunpack.c.h.b16 %v2203
        %v2553 = vunpack.c.l.b16 %v2204
        %v2554 = vunpack.c.h.b16 %v2204
        %v2555 = vunpack.c.l.b16 %v2205
        %v2556 = vunpack.c.h.b16 %v2205
        %v2557 = vunpack.c.l.b16 %v2206
        %v2558 = vunpack.c.h.b16 %v2206
        %v2559 = vunpack.c.l.b16 %v2207
        %v2560 = vunpack.c.h.b16 %v2207
        %v2561 = vunpack.c.l.b16 %v2208
        %v2562 = vunpack.c.h.b16 %v2208
        %v2563 = vunpack.c.l.b16 %v2209
        %v2564 = vunpack.c.h.b16 %v2209
        %v2565 = vunpack.c.l.b16 %v2210
        %v2566 = vunpack.c.h.b16 %v2210
        %v2567 = vunpack.c.l.b16 %v2211
        %v2568 = vunpack.c.h.b16 %v2211
        %v2569 = vunpack.c.l.b16 %v2212
        %v2570 = vunpack.c.h.b16 %v2212
        %v2571 = vunpack.c.l.b16 %v2213
        %v2572 = vunpack.c.h.b16 %v2213
        %v2573 = vunpack.c.l.b16 %v2214
        %v2574 = vunpack.c.h.b16 %v2214
        %v2575 = vunpack.c.l.b16 %v2215
        %v2576 = vunpack.c.h.b16 %v2215
        %v2577 = vunpack.c.l.b16 %v2216
        %v2578 = vunpack.c.h.b16 %v2216
        %v2579 = vunpack.c.l.b16 %v2217
        %v2580 = vunpack.c.h.b16 %v2217
        %v2581 = vunpack.c.l.b16 %v2218
        %v2582 = vunpack.c.h.b16 %v2218
        %v2583 = vpack.c.b16 %v2521, %v2519
        %v2584 = vpack.c.b16 %v2522, %v2520
        %v2585 = vpack.c.b16 %v2525, %v2523
        %v2586 = vpack.c.b16 %v2526, %v2524
        %v2587 = vpack.c.b16 %v2529, %v2527
        %v2588 = vpack.c.b16 %v2530, %v2528
        %v2589 = vpack.c.b16 %v2533, %v2531
        %v2590 = vpack.c.b16 %v2534, %v2532
        %v2591 = vpack.c.b16 %v2537, %v2535
        %v2592 = vpack.c.b16 %v2538, %v2536
        %v2593 = vpack.c.b16 %v2541, %v2539
        %v2594 = vpack.c.b16 %v2542, %v2540
        %v2595 = vpack.c.b16 %v2545, %v2543
        %v2596 = vpack.c.b16 %v2546, %v2544
        %v2597 = vpack.c.b16 %v2549, %v2547
        %v2598 = vpack.c.b16 %v2550, %v2548
        %v2599 = vpack.c.b16 %v2553, %v2551
        %v2600 = vpack.c.b16 %v2554, %v2552
        %v2601 = vpack.c.b16 %v2557, %v2555
        %v2602 = vpack.c.b16 %v2558, %v2556
        %v2603 = vpack.c.b16 %v2561, %v2559
        %v2604 = vpack.c.b16 %v2562, %v2560
        %v2605 = vpack.c.b16 %v2565, %v2563
        %v2606 = vpack.c.b16 %v2566, %v2564
        %v2607 = vpack.c.b16 %v2569, %v2567
        %v2608 = vpack.c.b16 %v2570, %v2568
        %v2609 = vpack.c.b16 %v2573, %v2571
        %v2610 = vpack.c.b16 %v2574, %v2572
        %v2611 = vpack.c.b16 %v2577, %v2575
        %v2612 = vpack.c.b16 %v2578, %v2576
        %v2613 = vpack.c.b16 %v2581, %v2579
        %v2614 = vpack.c.b16 %v2582, %v2580
        %2647 = vmatpush.bf16.msra.mxu0 %v2597
        %2648 = vmatpush.bf16.msra.mxu0 %v2595
        %2649 = vmatpush.bf16.msra.mxu0 %v2593
        %2650 = vmatpush.bf16.msra.mxu0 %v2591
        %2651 = vmatpush.bf16.msra.mxu0 %v2589
        %2652 = vmatpush.bf16.msra.mxu0 %v2587
        %2653 = vmatpush.bf16.msra.mxu0 %v2585
        %2654 = vmatpush.bf16.msra.mxu0 %v2583
        %2655 = vmatmul.bf16.gmra.mxu0 %v2255
        %v2656 = vpop.f32.mrf.mxu0
        %v2657 = vadd.f32 %v2456, %v2656
        %v2658 = vpop.f32.mrf.mxu0
        %2659 = vdwg.mxu0
        %2660 = vmatpush.bf16.msra.mxu0 %v2613
        %2661 = vmatpush.bf16.msra.mxu0 %v2611
        %2662 = vmatpush.bf16.msra.mxu0 %v2609
        %2663 = vmatpush.bf16.msra.mxu0 %v2607
        %2664 = vmatpush.bf16.msra.mxu0 %v2605
        %2665 = vmatpush.bf16.msra.mxu0 %v2603
        %2666 = vmatpush.bf16.msra.mxu0 %v2601
        %2667 = vmatpush.bf16.msra.mxu0 %v2599
        %2668 = vmatmul.bf16.gmra.mxu0 %v2256
        %v2669 = vpop.f32.mrf.mxu0
        %v2670 = vadd.f32 %v2657, %v2669
        %v2671 = vpop.f32.mrf.mxu0
        %2672 = vdwg.mxu0
        %2673 = vmatpush.bf16.msra.mxu0 %v2598
        %2674 = vmatpush.bf16.msra.mxu0 %v2596
        %2675 = vmatpush.bf16.msra.mxu0 %v2594
        %2676 = vmatpush.bf16.msra.mxu0 %v2592
        %2677 = vmatpush.bf16.msra.mxu0 %v2590
        %2678 = vmatpush.bf16.msra.mxu0 %v2588
        %2679 = vmatpush.bf16.msra.mxu0 %v2586
        %2680 = vmatpush.bf16.msra.mxu0 %v2584
        %2681 = vmatmul.bf16.gmra.mxu0 %v2255
        %v2682 = vpop.f32.mrf.mxu0
        %v2683 = vadd.f32 %v2482, %v2682
        %v2684 = vpop.f32.mrf.mxu0
        %2685 = vdwg.mxu0
        %2686 = vmatpush.bf16.msra.mxu0 %v2614
        %2687 = vmatpush.bf16.msra.mxu0 %v2612
        %2688 = vmatpush.bf16.msra.mxu0 %v2610
        %2689 = vmatpush.bf16.msra.mxu0 %v2608
        %2690 = vmatpush.bf16.msra.mxu0 %v2606
        %2691 = vmatpush.bf16.msra.mxu0 %v2604
        %2692 = vmatpush.bf16.msra.mxu0 %v2602
        %2693 = vmatpush.bf16.msra.mxu0 %v2600
        %2694 = vmatmul.bf16.gmra.mxu0 %v2256
        %v2695 = vpop.f32.mrf.mxu0
        %v2696 = vadd.f32 %v2683, %v2695
        %v2697 = vpop.f32.mrf.mxu0
        %2698 = vdwg.mxu0
        %s2699 = scalar_lea.vmem [#allocation2], 512
        %v2700 = vld [vmem:[%s2699] sm:$0xff]
        %v2701 = vld [vmem:[%s2699 + $0x8] sm:$0xff]
        %v2702 = vld [vmem:[%s2699 + $0x10] sm:$0xff]
        %v2703 = vld [vmem:[%s2699 + $0x18] sm:$0xff]
        %v2704 = vld [vmem:[%s2699 + $0x20] sm:$0xff]
        %v2705 = vld [vmem:[%s2699 + $0x28] sm:$0xff]
        %v2706 = vld [vmem:[%s2699 + $0x30] sm:$0xff]
        %v2707 = vld [vmem:[%s2699 + $0x38] sm:$0xff]
        %v2708 = vld [vmem:[%s2699 + $0x40] sm:$0xff]
        %v2709 = vld [vmem:[%s2699 + $0x48] sm:$0xff]
        %v2710 = vld [vmem:[%s2699 + $0x50] sm:$0xff]
        %v2711 = vld [vmem:[%s2699 + $0x58] sm:$0xff]
        %v2712 = vld [vmem:[%s2699 + $0x60] sm:$0xff]
        %v2713 = vld [vmem:[%s2699 + $0x68] sm:$0xff]
        %v2714 = vld [vmem:[%s2699 + $0x70] sm:$0xff]
        %v2715 = vld [vmem:[%s2699 + $0x78] sm:$0xff]
        %v2716 = vld [vmem:[%s2699 + $0x80] sm:$0xff]
        %v2717 = vld [vmem:[%s2699 + $0x88] sm:$0xff]
        %v2718 = vld [vmem:[%s2699 + $0x90] sm:$0xff]
        %v2719 = vld [vmem:[%s2699 + $0x98] sm:$0xff]
        %v2720 = vld [vmem:[%s2699 + $0xa0] sm:$0xff]
        %v2721 = vld [vmem:[%s2699 + $0xa8] sm:$0xff]
        %v2722 = vld [vmem:[%s2699 + $0xb0] sm:$0xff]
        %v2723 = vld [vmem:[%s2699 + $0xb8] sm:$0xff]
        %v2724 = vld [vmem:[%s2699 + $0xc0] sm:$0xff]
        %v2725 = vld [vmem:[%s2699 + $0xc8] sm:$0xff]
        %v2726 = vld [vmem:[%s2699 + $0xd0] sm:$0xff]
        %v2727 = vld [vmem:[%s2699 + $0xd8] sm:$0xff]
        %v2728 = vld [vmem:[%s2699 + $0xe0] sm:$0xff]
        %v2729 = vld [vmem:[%s2699 + $0xe8] sm:$0xff]
        %v2730 = vld [vmem:[%s2699 + $0xf0] sm:$0xff]
        %v2731 = vld [vmem:[%s2699 + $0xf8] sm:$0xff]
        %v2732 = vrot.slane %v2255, 1
        %v2733 = vrot.slane %v2256, 1
        %v2768 = vunpack.c.l.b16 %v2700
        %v2769 = vunpack.c.h.b16 %v2700
        %v2770 = vunpack.c.l.b16 %v2701
        %v2771 = vunpack.c.h.b16 %v2701
        %v2772 = vunpack.c.l.b16 %v2702
        %v2773 = vunpack.c.h.b16 %v2702
        %v2774 = vunpack.c.l.b16 %v2703
        %v2775 = vunpack.c.h.b16 %v2703
        %v2776 = vunpack.c.l.b16 %v2704
        %v2777 = vunpack.c.h.b16 %v2704
        %v2778 = vunpack.c.l.b16 %v2705
        %v2779 = vunpack.c.h.b16 %v2705
        %v2780 = vunpack.c.l.b16 %v2706
        %v2781 = vunpack.c.h.b16 %v2706
        %v2782 = vunpack.c.l.b16 %v2707
        %v2783 = vunpack.c.h.b16 %v2707
        %v2784 = vunpack.c.l.b16 %v2708
        %v2785 = vunpack.c.h.b16 %v2708
        %v2786 = vunpack.c.l.b16 %v2709
        %v2787 = vunpack.c.h.b16 %v2709
        %v2788 = vunpack.c.l.b16 %v2710
        %v2789 = vunpack.c.h.b16 %v2710
        %v2790 = vunpack.c.l.b16 %v2711
        %v2791 = vunpack.c.h.b16 %v2711
        %v2792 = vunpack.c.l.b16 %v2712
        %v2793 = vunpack.c.h.b16 %v2712
        %v2794 = vunpack.c.l.b16 %v2713
        %v2795 = vunpack.c.h.b16 %v2713
        %v2796 = vunpack.c.l.b16 %v2714
        %v2797 = vunpack.c.h.b16 %v2714
        %v2798 = vunpack.c.l.b16 %v2715
        %v2799 = vunpack.c.h.b16 %v2715
        %v2800 = vunpack.c.l.b16 %v2716
        %v2801 = vunpack.c.h.b16 %v2716
        %v2802 = vunpack.c.l.b16 %v2717
        %v2803 = vunpack.c.h.b16 %v2717
        %v2804 = vunpack.c.l.b16 %v2718
        %v2805 = vunpack.c.h.b16 %v2718
        %v2806 = vunpack.c.l.b16 %v2719
        %v2807 = vunpack.c.h.b16 %v2719
        %v2808 = vunpack.c.l.b16 %v2720
        %v2809 = vunpack.c.h.b16 %v2720
        %v2810 = vunpack.c.l.b16 %v2721
        %v2811 = vunpack.c.h.b16 %v2721
        %v2812 = vunpack.c.l.b16 %v2722
        %v2813 = vunpack.c.h.b16 %v2722
        %v2814 = vunpack.c.l.b16 %v2723
        %v2815 = vunpack.c.h.b16 %v2723
        %v2816 = vunpack.c.l.b16 %v2724
        %v2817 = vunpack.c.h.b16 %v2724
        %v2818 = vunpack.c.l.b16 %v2725
        %v2819 = vunpack.c.h.b16 %v2725
        %v2820 = vunpack.c.l.b16 %v2726
        %v2821 = vunpack.c.h.b16 %v2726
        %v2822 = vunpack.c.l.b16 %v2727
        %v2823 = vunpack.c.h.b16 %v2727
        %v2824 = vunpack.c.l.b16 %v2728
        %v2825 = vunpack.c.h.b16 %v2728
        %v2826 = vunpack.c.l.b16 %v2729
        %v2827 = vunpack.c.h.b16 %v2729
        %v2828 = vunpack.c.l.b16 %v2730
        %v2829 = vunpack.c.h.b16 %v2730
        %v2830 = vunpack.c.l.b16 %v2731
        %v2831 = vunpack.c.h.b16 %v2731
        %v2832 = vpack.c.b16 %v2770, %v2768
        %v2833 = vpack.c.b16 %v2771, %v2769
        %v2834 = vpack.c.b16 %v2774, %v2772
        %v2835 = vpack.c.b16 %v2775, %v2773
        %v2836 = vpack.c.b16 %v2778, %v2776
        %v2837 = vpack.c.b16 %v2779, %v2777
        %v2838 = vpack.c.b16 %v2782, %v2780
        %v2839 = vpack.c.b16 %v2783, %v2781
        %v2840 = vpack.c.b16 %v2786, %v2784
        %v2841 = vpack.c.b16 %v2787, %v2785
        %v2842 = vpack.c.b16 %v2790, %v2788
        %v2843 = vpack.c.b16 %v2791, %v2789
        %v2844 = vpack.c.b16 %v2794, %v2792
        %v2845 = vpack.c.b16 %v2795, %v2793
        %v2846 = vpack.c.b16 %v2798, %v2796
        %v2847 = vpack.c.b16 %v2799, %v2797
        %v2848 = vpack.c.b16 %v2802, %v2800
        %v2849 = vpack.c.b16 %v2803, %v2801
        %v2850 = vpack.c.b16 %v2806, %v2804
        %v2851 = vpack.c.b16 %v2807, %v2805
        %v2852 = vpack.c.b16 %v2810, %v2808
        %v2853 = vpack.c.b16 %v2811, %v2809
        %v2854 = vpack.c.b16 %v2814, %v2812
        %v2855 = vpack.c.b16 %v2815, %v2813
        %v2856 = vpack.c.b16 %v2818, %v2816
        %v2857 = vpack.c.b16 %v2819, %v2817
        %v2858 = vpack.c.b16 %v2822, %v2820
        %v2859 = vpack.c.b16 %v2823, %v2821
        %v2860 = vpack.c.b16 %v2826, %v2824
        %v2861 = vpack.c.b16 %v2827, %v2825
        %v2862 = vpack.c.b16 %v2830, %v2828
        %v2863 = vpack.c.b16 %v2831, %v2829
        %2896 = vmatpush.bf16.msra.mxu0 %v2846
        %2897 = vmatpush.bf16.msra.mxu0 %v2844
        %2898 = vmatpush.bf16.msra.mxu0 %v2842
        %2899 = vmatpush.bf16.msra.mxu0 %v2840
        %2900 = vmatpush.bf16.msra.mxu0 %v2838
        %2901 = vmatpush.bf16.msra.mxu0 %v2836
        %2902 = vmatpush.bf16.msra.mxu0 %v2834
        %2903 = vmatpush.bf16.msra.mxu0 %v2832
        %2904 = vmatmul.bf16.gmra.mxu0 %v2732
        %v2905 = vpop.f32.mrf.mxu0
        %v2906 = vadd.f32 0.0, %v2905
        %v2907 = vpop.f32.mrf.mxu0
        %2908 = vdwg.mxu0
        %2909 = vmatpush.bf16.msra.mxu0 %v2862
        %2910 = vmatpush.bf16.msra.mxu0 %v2860
        %2911 = vmatpush.bf16.msra.mxu0 %v2858
        %2912 = vmatpush.bf16.msra.mxu0 %v2856
        %2913 = vmatpush.bf16.msra.mxu0 %v2854
        %2914 = vmatpush.bf16.msra.mxu0 %v2852
        %2915 = vmatpush.bf16.msra.mxu0 %v2850
        %2916 = vmatpush.bf16.msra.mxu0 %v2848
        %2917 = vmatmul.bf16.gmra.mxu0 %v2733
        %v2918 = vpop.f32.mrf.mxu0
        %v2919 = vadd.f32 %v2906, %v2918
        %v2920 = vpop.f32.mrf.mxu0
        %2921 = vdwg.mxu0
        %2922 = vmatpush.bf16.msra.mxu0 %v2847
        %2923 = vmatpush.bf16.msra.mxu0 %v2845
        %2924 = vmatpush.bf16.msra.mxu0 %v2843
        %2925 = vmatpush.bf16.msra.mxu0 %v2841
        %2926 = vmatpush.bf16.msra.mxu0 %v2839
        %2927 = vmatpush.bf16.msra.mxu0 %v2837
        %2928 = vmatpush.bf16.msra.mxu0 %v2835
        %2929 = vmatpush.bf16.msra.mxu0 %v2833
        %2930 = vmatmul.bf16.gmra.mxu0 %v2732
        %v2931 = vpop.f32.mrf.mxu0
        %v2932 = vadd.f32 0.0, %v2931
        %v2933 = vpop.f32.mrf.mxu0
        %2934 = vdwg.mxu0
        %2935 = vmatpush.bf16.msra.mxu0 %v2863
        %2936 = vmatpush.bf16.msra.mxu0 %v2861
        %2937 = vmatpush.bf16.msra.mxu0 %v2859
        %2938 = vmatpush.bf16.msra.mxu0 %v2857
        %2939 = vmatpush.bf16.msra.mxu0 %v2855
        %2940 = vmatpush.bf16.msra.mxu0 %v2853
        %2941 = vmatpush.bf16.msra.mxu0 %v2851
        %2942 = vmatpush.bf16.msra.mxu0 %v2849
        %2943 = vmatmul.bf16.gmra.mxu0 %v2733
        %v2944 = vpop.f32.mrf.mxu0
        %v2945 = vadd.f32 %v2932, %v2944
        %v2946 = vpop.f32.mrf.mxu0
        %2947 = vdwg.mxu0
        %v2948 = vadd.f32 %v2670, %v2919
        %v2949 = vadd.f32 %v2696, %v2945
        %s2950 = scalar_lea.vmem [#allocation2], 768
        %v2951 = vld [vmem:[%s2950] sm:$0xff]
        %v2952 = vld [vmem:[%s2950 + $0x8] sm:$0xff]
        %v2953 = vld [vmem:[%s2950 + $0x10] sm:$0xff]
        %v2954 = vld [vmem:[%s2950 + $0x18] sm:$0xff]
        %v2955 = vld [vmem:[%s2950 + $0x20] sm:$0xff]
        %v2956 = vld [vmem:[%s2950 + $0x28] sm:$0xff]
        %v2957 = vld [vmem:[%s2950 + $0x30] sm:$0xff]
        %v2958 = vld [vmem:[%s2950 + $0x38] sm:$0xff]
        %v2959 = vld [vmem:[%s2950 + $0x40] sm:$0xff]
        %v2960 = vld [vmem:[%s2950 + $0x48] sm:$0xff]
        %v2961 = vld [vmem:[%s2950 + $0x50] sm:$0xff]
        %v2962 = vld [vmem:[%s2950 + $0x58] sm:$0xff]
        %v2963 = vld [vmem:[%s2950 + $0x60] sm:$0xff]
        %v2964 = vld [vmem:[%s2950 + $0x68] sm:$0xff]
        %v2965 = vld [vmem:[%s2950 + $0x70] sm:$0xff]
        %v2966 = vld [vmem:[%s2950 + $0x78] sm:$0xff]
        %v2967 = vld [vmem:[%s2950 + $0x80] sm:$0xff]
        %v2968 = vld [vmem:[%s2950 + $0x88] sm:$0xff]
        %v2969 = vld [vmem:[%s2950 + $0x90] sm:$0xff]
        %v2970 = vld [vmem:[%s2950 + $0x98] sm:$0xff]
        %v2971 = vld [vmem:[%s2950 + $0xa0] sm:$0xff]
        %v2972 = vld [vmem:[%s2950 + $0xa8] sm:$0xff]
        %v2973 = vld [vmem:[%s2950 + $0xb0] sm:$0xff]
        %v2974 = vld [vmem:[%s2950 + $0xb8] sm:$0xff]
        %v2975 = vld [vmem:[%s2950 + $0xc0] sm:$0xff]
        %v2976 = vld [vmem:[%s2950 + $0xc8] sm:$0xff]
        %v2977 = vld [vmem:[%s2950 + $0xd0] sm:$0xff]
        %v2978 = vld [vmem:[%s2950 + $0xd8] sm:$0xff]
        %v2979 = vld [vmem:[%s2950 + $0xe0] sm:$0xff]
        %v2980 = vld [vmem:[%s2950 + $0xe8] sm:$0xff]
        %v2981 = vld [vmem:[%s2950 + $0xf0] sm:$0xff]
        %v2982 = vld [vmem:[%s2950 + $0xf8] sm:$0xff]
        %v2983 = vrot.slane %v2258, 1
        %v2984 = vrot.slane %v2260, 2
        %v2985 = vor.u32 %v2983, %v2984
        %v2986 = vrot.slane %v2265, 1
        %v2987 = vrot.slane %v2267, 2
        %v2988 = vor.u32 %v2986, %v2987
        %v3023 = vunpack.c.l.b16 %v2951
        %v3024 = vunpack.c.h.b16 %v2951
        %v3025 = vunpack.c.l.b16 %v2952
        %v3026 = vunpack.c.h.b16 %v2952
        %v3027 = vunpack.c.l.b16 %v2953
        %v3028 = vunpack.c.h.b16 %v2953
        %v3029 = vunpack.c.l.b16 %v2954
        %v3030 = vunpack.c.h.b16 %v2954
        %v3031 = vunpack.c.l.b16 %v2955
        %v3032 = vunpack.c.h.b16 %v2955
        %v3033 = vunpack.c.l.b16 %v2956
        %v3034 = vunpack.c.h.b16 %v2956
        %v3035 = vunpack.c.l.b16 %v2957
        %v3036 = vunpack.c.h.b16 %v2957
        %v3037 = vunpack.c.l.b16 %v2958
        %v3038 = vunpack.c.h.b16 %v2958
        %v3039 = vunpack.c.l.b16 %v2959
        %v3040 = vunpack.c.h.b16 %v2959
        %v3041 = vunpack.c.l.b16 %v2960
        %v3042 = vunpack.c.h.b16 %v2960
        %v3043 = vunpack.c.l.b16 %v2961
        %v3044 = vunpack.c.h.b16 %v2961
        %v3045 = vunpack.c.l.b16 %v2962
        %v3046 = vunpack.c.h.b16 %v2962
        %v3047 = vunpack.c.l.b16 %v2963
        %v3048 = vunpack.c.h.b16 %v2963
        %v3049 = vunpack.c.l.b16 %v2964
        %v3050 = vunpack.c.h.b16 %v2964
        %v3051 = vunpack.c.l.b16 %v2965
        %v3052 = vunpack.c.h.b16 %v2965
        %v3053 = vunpack.c.l.b16 %v2966
        %v3054 = vunpack.c.h.b16 %v2966
        %v3055 = vunpack.c.l.b16 %v2967
        %v3056 = vunpack.c.h.b16 %v2967
        %v3057 = vunpack.c.l.b16 %v2968
        %v3058 = vunpack.c.h.b16 %v2968
        %v3059 = vunpack.c.l.b16 %v2969
        %v3060 = vunpack.c.h.b16 %v2969
        %v3061 = vunpack.c.l.b16 %v2970
        %v3062 = vunpack.c.h.b16 %v2970
        %v3063 = vunpack.c.l.b16 %v2971
        %v3064 = vunpack.c.h.b16 %v2971
        %v3065 = vunpack.c.l.b16 %v2972
        %v3066 = vunpack.c.h.b16 %v2972
        %v3067 = vunpack.c.l.b16 %v2973
        %v3068 = vunpack.c.h.b16 %v2973
        %v3069 = vunpack.c.l.b16 %v2974
        %v3070 = vunpack.c.h.b16 %v2974
        %v3071 = vunpack.c.l.b16 %v2975
        %v3072 = vunpack.c.h.b16 %v2975
        %v3073 = vunpack.c.l.b16 %v2976
        %v3074 = vunpack.c.h.b16 %v2976
        %v3075 = vunpack.c.l.b16 %v2977
        %v3076 = vunpack.c.h.b16 %v2977
        %v3077 = vunpack.c.l.b16 %v2978
        %v3078 = vunpack.c.h.b16 %v2978
        %v3079 = vunpack.c.l.b16 %v2979
        %v3080 = vunpack.c.h.b16 %v2979
        %v3081 = vunpack.c.l.b16 %v2980
        %v3082 = vunpack.c.h.b16 %v2980
        %v3083 = vunpack.c.l.b16 %v2981
        %v3084 = vunpack.c.h.b16 %v2981
        %v3085 = vunpack.c.l.b16 %v2982
        %v3086 = vunpack.c.h.b16 %v2982
        %v3087 = vpack.c.b16 %v3025, %v3023
        %v3088 = vpack.c.b16 %v3026, %v3024
        %v3089 = vpack.c.b16 %v3029, %v3027
        %v3090 = vpack.c.b16 %v3030, %v3028
        %v3091 = vpack.c.b16 %v3033, %v3031
        %v3092 = vpack.c.b16 %v3034, %v3032
        %v3093 = vpack.c.b16 %v3037, %v3035
        %v3094 = vpack.c.b16 %v3038, %v3036
        %v3095 = vpack.c.b16 %v3041, %v3039
        %v3096 = vpack.c.b16 %v3042, %v3040
        %v3097 = vpack.c.b16 %v3045, %v3043
        %v3098 = vpack.c.b16 %v3046, %v3044
        %v3099 = vpack.c.b16 %v3049, %v3047
        %v3100 = vpack.c.b16 %v3050, %v3048
        %v3101 = vpack.c.b16 %v3053, %v3051
        %v3102 = vpack.c.b16 %v3054, %v3052
        %v3103 = vpack.c.b16 %v3057, %v3055
        %v3104 = vpack.c.b16 %v3058, %v3056
        %v3105 = vpack.c.b16 %v3061, %v3059
        %v3106 = vpack.c.b16 %v3062, %v3060
        %v3107 = vpack.c.b16 %v3065, %v3063
        %v3108 = vpack.c.b16 %v3066, %v3064
        %v3109 = vpack.c.b16 %v3069, %v3067
        %v3110 = vpack.c.b16 %v3070, %v3068
        %v3111 = vpack.c.b16 %v3073, %v3071
        %v3112 = vpack.c.b16 %v3074, %v3072
        %v3113 = vpack.c.b16 %v3077, %v3075
        %v3114 = vpack.c.b16 %v3078, %v3076
        %v3115 = vpack.c.b16 %v3081, %v3079
        %v3116 = vpack.c.b16 %v3082, %v3080
        %v3117 = vpack.c.b16 %v3085, %v3083
        %v3118 = vpack.c.b16 %v3086, %v3084
        %3151 = vmatpush.bf16.msra.mxu0 %v3101
        %3152 = vmatpush.bf16.msra.mxu0 %v3099
        %3153 = vmatpush.bf16.msra.mxu0 %v3097
        %3154 = vmatpush.bf16.msra.mxu0 %v3095
        %3155 = vmatpush.bf16.msra.mxu0 %v3093
        %3156 = vmatpush.bf16.msra.mxu0 %v3091
        %3157 = vmatpush.bf16.msra.mxu0 %v3089
        %3158 = vmatpush.bf16.msra.mxu0 %v3087
        %3159 = vmatmul.bf16.gmra.mxu0 %v2985
        %v3160 = vpop.f32.mrf.mxu0
        %v3161 = vadd.f32 0.0, %v3160
        %v3162 = vpop.f32.mrf.mxu0
        %3163 = vdwg.mxu0
        %3164 = vmatpush.bf16.msra.mxu0 %v3117
        %3165 = vmatpush.bf16.msra.mxu0 %v3115
        %3166 = vmatpush.bf16.msra.mxu0 %v3113
        %3167 = vmatpush.bf16.msra.mxu0 %v3111
        %3168 = vmatpush.bf16.msra.mxu0 %v3109
        %3169 = vmatpush.bf16.msra.mxu0 %v3107
        %3170 = vmatpush.bf16.msra.mxu0 %v3105
        %3171 = vmatpush.bf16.msra.mxu0 %v3103
        %3172 = vmatmul.bf16.gmra.mxu0 %v2988
        %v3173 = vpop.f32.mrf.mxu0
        %v3174 = vadd.f32 %v3161, %v3173
        %v3175 = vpop.f32.mrf.mxu0
        %3176 = vdwg.mxu0
        %3177 = vmatpush.bf16.msra.mxu0 %v3102
        %3178 = vmatpush.bf16.msra.mxu0 %v3100
        %3179 = vmatpush.bf16.msra.mxu0 %v3098
        %3180 = vmatpush.bf16.msra.mxu0 %v3096
        %3181 = vmatpush.bf16.msra.mxu0 %v3094
        %3182 = vmatpush.bf16.msra.mxu0 %v3092
        %3183 = vmatpush.bf16.msra.mxu0 %v3090
        %3184 = vmatpush.bf16.msra.mxu0 %v3088
        %3185 = vmatmul.bf16.gmra.mxu0 %v2985
        %v3186 = vpop.f32.mrf.mxu0
        %v3187 = vadd.f32 0.0, %v3186
        %v3188 = vpop.f32.mrf.mxu0
        %3189 = vdwg.mxu0
        %3190 = vmatpush.bf16.msra.mxu0 %v3118
        %3191 = vmatpush.bf16.msra.mxu0 %v3116
        %3192 = vmatpush.bf16.msra.mxu0 %v3114
        %3193 = vmatpush.bf16.msra.mxu0 %v3112
        %3194 = vmatpush.bf16.msra.mxu0 %v3110
        %3195 = vmatpush.bf16.msra.mxu0 %v3108
        %3196 = vmatpush.bf16.msra.mxu0 %v3106
        %3197 = vmatpush.bf16.msra.mxu0 %v3104
        %3198 = vmatmul.bf16.gmra.mxu0 %v2988
        %v3199 = vpop.f32.mrf.mxu0
        %v3200 = vadd.f32 %v3187, %v3199
        %v3201 = vpop.f32.mrf.mxu0
        %3202 = vdwg.mxu0
        %v3203 = vadd.f32 %v2948, %v3174
        %v3204 = vadd.f32 %v2949, %v3200
        %s3205 = scalar_lea.vmem [#allocation2], 1024
        %v3206 = vld [vmem:[%s3205] sm:$0xff]
        %v3207 = vld [vmem:[%s3205 + $0x8] sm:$0xff]
        %v3208 = vld [vmem:[%s3205 + $0x10] sm:$0xff]
        %v3209 = vld [vmem:[%s3205 + $0x18] sm:$0xff]
        %v3210 = vld [vmem:[%s3205 + $0x20] sm:$0xff]
        %v3211 = vld [vmem:[%s3205 + $0x28] sm:$0xff]
        %v3212 = vld [vmem:[%s3205 + $0x30] sm:$0xff]
        %v3213 = vld [vmem:[%s3205 + $0x38] sm:$0xff]
        %v3214 = vld [vmem:[%s3205 + $0x40] sm:$0xff]
        %v3215 = vld [vmem:[%s3205 + $0x48] sm:$0xff]
        %v3216 = vld [vmem:[%s3205 + $0x50] sm:$0xff]
        %v3217 = vld [vmem:[%s3205 + $0x58] sm:$0xff]
        %v3218 = vld [vmem:[%s3205 + $0x60] sm:$0xff]
        %v3219 = vld [vmem:[%s3205 + $0x68] sm:$0xff]
        %v3220 = vld [vmem:[%s3205 + $0x70] sm:$0xff]
        %v3221 = vld [vmem:[%s3205 + $0x78] sm:$0xff]
        %v3222 = vld [vmem:[%s3205 + $0x80] sm:$0xff]
        %v3223 = vld [vmem:[%s3205 + $0x88] sm:$0xff]
        %v3224 = vld [vmem:[%s3205 + $0x90] sm:$0xff]
        %v3225 = vld [vmem:[%s3205 + $0x98] sm:$0xff]
        %v3226 = vld [vmem:[%s3205 + $0xa0] sm:$0xff]
        %v3227 = vld [vmem:[%s3205 + $0xa8] sm:$0xff]
        %v3228 = vld [vmem:[%s3205 + $0xb0] sm:$0xff]
        %v3229 = vld [vmem:[%s3205 + $0xb8] sm:$0xff]
        %v3230 = vld [vmem:[%s3205 + $0xc0] sm:$0xff]
        %v3231 = vld [vmem:[%s3205 + $0xc8] sm:$0xff]
        %v3232 = vld [vmem:[%s3205 + $0xd0] sm:$0xff]
        %v3233 = vld [vmem:[%s3205 + $0xd8] sm:$0xff]
        %v3234 = vld [vmem:[%s3205 + $0xe0] sm:$0xff]
        %v3235 = vld [vmem:[%s3205 + $0xe8] sm:$0xff]
        %v3236 = vld [vmem:[%s3205 + $0xf0] sm:$0xff]
        %v3237 = vld [vmem:[%s3205 + $0xf8] sm:$0xff]
        %v3238 = vrot.slane %v2255, 2
        %v3239 = vrot.slane %v2256, 2
        %v3274 = vunpack.c.l.b16 %v3206
        %v3275 = vunpack.c.h.b16 %v3206
        %v3276 = vunpack.c.l.b16 %v3207
        %v3277 = vunpack.c.h.b16 %v3207
        %v3278 = vunpack.c.l.b16 %v3208
        %v3279 = vunpack.c.h.b16 %v3208
        %v3280 = vunpack.c.l.b16 %v3209
        %v3281 = vunpack.c.h.b16 %v3209
        %v3282 = vunpack.c.l.b16 %v3210
        %v3283 = vunpack.c.h.b16 %v3210
        %v3284 = vunpack.c.l.b16 %v3211
        %v3285 = vunpack.c.h.b16 %v3211
        %v3286 = vunpack.c.l.b16 %v3212
        %v3287 = vunpack.c.h.b16 %v3212
        %v3288 = vunpack.c.l.b16 %v3213
        %v3289 = vunpack.c.h.b16 %v3213
        %v3290 = vunpack.c.l.b16 %v3214
        %v3291 = vunpack.c.h.b16 %v3214
        %v3292 = vunpack.c.l.b16 %v3215
        %v3293 = vunpack.c.h.b16 %v3215
        %v3294 = vunpack.c.l.b16 %v3216
        %v3295 = vunpack.c.h.b16 %v3216
        %v3296 = vunpack.c.l.b16 %v3217
        %v3297 = vunpack.c.h.b16 %v3217
        %v3298 = vunpack.c.l.b16 %v3218
        %v3299 = vunpack.c.h.b16 %v3218
        %v3300 = vunpack.c.l.b16 %v3219
        %v3301 = vunpack.c.h.b16 %v3219
        %v3302 = vunpack.c.l.b16 %v3220
        %v3303 = vunpack.c.h.b16 %v3220
        %v3304 = vunpack.c.l.b16 %v3221
        %v3305 = vunpack.c.h.b16 %v3221
        %v3306 = vunpack.c.l.b16 %v3222
        %v3307 = vunpack.c.h.b16 %v3222
        %v3308 = vunpack.c.l.b16 %v3223
        %v3309 = vunpack.c.h.b16 %v3223
        %v3310 = vunpack.c.l.b16 %v3224
        %v3311 = vunpack.c.h.b16 %v3224
        %v3312 = vunpack.c.l.b16 %v3225
        %v3313 = vunpack.c.h.b16 %v3225
        %v3314 = vunpack.c.l.b16 %v3226
        %v3315 = vunpack.c.h.b16 %v3226
        %v3316 = vunpack.c.l.b16 %v3227
        %v3317 = vunpack.c.h.b16 %v3227
        %v3318 = vunpack.c.l.b16 %v3228
        %v3319 = vunpack.c.h.b16 %v3228
        %v3320 = vunpack.c.l.b16 %v3229
        %v3321 = vunpack.c.h.b16 %v3229
        %v3322 = vunpack.c.l.b16 %v3230
        %v3323 = vunpack.c.h.b16 %v3230
        %v3324 = vunpack.c.l.b16 %v3231
        %v3325 = vunpack.c.h.b16 %v3231
        %v3326 = vunpack.c.l.b16 %v3232
        %v3327 = vunpack.c.h.b16 %v3232
        %v3328 = vunpack.c.l.b16 %v3233
        %v3329 = vunpack.c.h.b16 %v3233
        %v3330 = vunpack.c.l.b16 %v3234
        %v3331 = vunpack.c.h.b16 %v3234
        %v3332 = vunpack.c.l.b16 %v3235
        %v3333 = vunpack.c.h.b16 %v3235
        %v3334 = vunpack.c.l.b16 %v3236
        %v3335 = vunpack.c.h.b16 %v3236
        %v3336 = vunpack.c.l.b16 %v3237
        %v3337 = vunpack.c.h.b16 %v3237
        %v3338 = vpack.c.b16 %v3276, %v3274
        %v3339 = vpack.c.b16 %v3277, %v3275
        %v3340 = vpack.c.b16 %v3280, %v3278
        %v3341 = vpack.c.b16 %v3281, %v3279
        %v3342 = vpack.c.b16 %v3284, %v3282
        %v3343 = vpack.c.b16 %v3285, %v3283
        %v3344 = vpack.c.b16 %v3288, %v3286
        %v3345 = vpack.c.b16 %v3289, %v3287
        %v3346 = vpack.c.b16 %v3292, %v3290
        %v3347 = vpack.c.b16 %v3293, %v3291
        %v3348 = vpack.c.b16 %v3296, %v3294
        %v3349 = vpack.c.b16 %v3297, %v3295
        %v3350 = vpack.c.b16 %v3300, %v3298
        %v3351 = vpack.c.b16 %v3301, %v3299
        %v3352 = vpack.c.b16 %v3304, %v3302
        %v3353 = vpack.c.b16 %v3305, %v3303
        %v3354 = vpack.c.b16 %v3308, %v3306
        %v3355 = vpack.c.b16 %v3309, %v3307
        %v3356 = vpack.c.b16 %v3312, %v3310
        %v3357 = vpack.c.b16 %v3313, %v3311
        %v3358 = vpack.c.b16 %v3316, %v3314
        %v3359 = vpack.c.b16 %v3317, %v3315
        %v3360 = vpack.c.b16 %v3320, %v3318
        %v3361 = vpack.c.b16 %v3321, %v3319
        %v3362 = vpack.c.b16 %v3324, %v3322
        %v3363 = vpack.c.b16 %v3325, %v3323
        %v3364 = vpack.c.b16 %v3328, %v3326
        %v3365 = vpack.c.b16 %v3329, %v3327
        %v3366 = vpack.c.b16 %v3332, %v3330
        %v3367 = vpack.c.b16 %v3333, %v3331
        %v3368 = vpack.c.b16 %v3336, %v3334
        %v3369 = vpack.c.b16 %v3337, %v3335
        %3402 = vmatpush.bf16.msra.mxu0 %v3352
        %3403 = vmatpush.bf16.msra.mxu0 %v3350
        %3404 = vmatpush.bf16.msra.mxu0 %v3348
        %3405 = vmatpush.bf16.msra.mxu0 %v3346
        %3406 = vmatpush.bf16.msra.mxu0 %v3344
        %3407 = vmatpush.bf16.msra.mxu0 %v3342
        %3408 = vmatpush.bf16.msra.mxu0 %v3340
        %3409 = vmatpush.bf16.msra.mxu0 %v3338
        %3410 = vmatmul.bf16.gmra.mxu0 %v3238
        %v3411 = vpop.f32.mrf.mxu0
        %v3412 = vadd.f32 0.0, %v3411
        %v3413 = vpop.f32.mrf.mxu0
        %3414 = vdwg.mxu0
        %3415 = vmatpush.bf16.msra.mxu0 %v3368
        %3416 = vmatpush.bf16.msra.mxu0 %v3366
        %3417 = vmatpush.bf16.msra.mxu0 %v3364
        %3418 = vmatpush.bf16.msra.mxu0 %v3362
        %3419 = vmatpush.bf16.msra.mxu0 %v3360
        %3420 = vmatpush.bf16.msra.mxu0 %v3358
        %3421 = vmatpush.bf16.msra.mxu0 %v3356
        %3422 = vmatpush.bf16.msra.mxu0 %v3354
        %3423 = vmatmul.bf16.gmra.mxu0 %v3239
        %v3424 = vpop.f32.mrf.mxu0
        %v3425 = vadd.f32 %v3412, %v3424
        %v3426 = vpop.f32.mrf.mxu0
        %3427 = vdwg.mxu0
        %3428 = vmatpush.bf16.msra.mxu0 %v3353
        %3429 = vmatpush.bf16.msra.mxu0 %v3351
        %3430 = vmatpush.bf16.msra.mxu0 %v3349
        %3431 = vmatpush.bf16.msra.mxu0 %v3347
        %3432 = vmatpush.bf16.msra.mxu0 %v3345
        %3433 = vmatpush.bf16.msra.mxu0 %v3343
        %3434 = vmatpush.bf16.msra.mxu0 %v3341
        %3435 = vmatpush.bf16.msra.mxu0 %v3339
        %3436 = vmatmul.bf16.gmra.mxu0 %v3238
        %v3437 = vpop.f32.mrf.mxu0
        %v3438 = vadd.f32 0.0, %v3437
        %v3439 = vpop.f32.mrf.mxu0
        %3440 = vdwg.mxu0
        %3441 = vmatpush.bf16.msra.mxu0 %v3369
        %3442 = vmatpush.bf16.msra.mxu0 %v3367
        %3443 = vmatpush.bf16.msra.mxu0 %v3365
        %3444 = vmatpush.bf16.msra.mxu0 %v3363
        %3445 = vmatpush.bf16.msra.mxu0 %v3361
        %3446 = vmatpush.bf16.msra.mxu0 %v3359
        %3447 = vmatpush.bf16.msra.mxu0 %v3357
        %3448 = vmatpush.bf16.msra.mxu0 %v3355
        %3449 = vmatmul.bf16.gmra.mxu0 %v3239
        %v3450 = vpop.f32.mrf.mxu0
        %v3451 = vadd.f32 %v3438, %v3450
        %v3452 = vpop.f32.mrf.mxu0
        %3453 = vdwg.mxu0
        %v3454 = vadd.f32 %v3203, %v3425
        %v3455 = vadd.f32 %v3204, %v3451
        %s3456 = scalar_lea.vmem [#allocation2], 1280
        %v3457 = vld [vmem:[%s3456] sm:$0xff]
        %v3458 = vld [vmem:[%s3456 + $0x8] sm:$0xff]
        %v3459 = vld [vmem:[%s3456 + $0x10] sm:$0xff]
        %v3460 = vld [vmem:[%s3456 + $0x18] sm:$0xff]
        %v3461 = vld [vmem:[%s3456 + $0x20] sm:$0xff]
        %v3462 = vld [vmem:[%s3456 + $0x28] sm:$0xff]
        %v3463 = vld [vmem:[%s3456 + $0x30] sm:$0xff]
        %v3464 = vld [vmem:[%s3456 + $0x38] sm:$0xff]
        %v3465 = vld [vmem:[%s3456 + $0x40] sm:$0xff]
        %v3466 = vld [vmem:[%s3456 + $0x48] sm:$0xff]
        %v3467 = vld [vmem:[%s3456 + $0x50] sm:$0xff]
        %v3468 = vld [vmem:[%s3456 + $0x58] sm:$0xff]
        %v3469 = vld [vmem:[%s3456 + $0x60] sm:$0xff]
        %v3470 = vld [vmem:[%s3456 + $0x68] sm:$0xff]
        %v3471 = vld [vmem:[%s3456 + $0x70] sm:$0xff]
        %v3472 = vld [vmem:[%s3456 + $0x78] sm:$0xff]
        %v3473 = vld [vmem:[%s3456 + $0x80] sm:$0xff]
        %v3474 = vld [vmem:[%s3456 + $0x88] sm:$0xff]
        %v3475 = vld [vmem:[%s3456 + $0x90] sm:$0xff]
        %v3476 = vld [vmem:[%s3456 + $0x98] sm:$0xff]
        %v3477 = vld [vmem:[%s3456 + $0xa0] sm:$0xff]
        %v3478 = vld [vmem:[%s3456 + $0xa8] sm:$0xff]
        %v3479 = vld [vmem:[%s3456 + $0xb0] sm:$0xff]
        %v3480 = vld [vmem:[%s3456 + $0xb8] sm:$0xff]
        %v3481 = vld [vmem:[%s3456 + $0xc0] sm:$0xff]
        %v3482 = vld [vmem:[%s3456 + $0xc8] sm:$0xff]
        %v3483 = vld [vmem:[%s3456 + $0xd0] sm:$0xff]
        %v3484 = vld [vmem:[%s3456 + $0xd8] sm:$0xff]
        %v3485 = vld [vmem:[%s3456 + $0xe0] sm:$0xff]
        %v3486 = vld [vmem:[%s3456 + $0xe8] sm:$0xff]
        %v3487 = vld [vmem:[%s3456 + $0xf0] sm:$0xff]
        %v3488 = vld [vmem:[%s3456 + $0xf8] sm:$0xff]
        %v3490 = vunpack.c.l.b16 %v2186
        %v3491 = vunpack.c.h.b16 %v2186
        %v3492 = vpack.c.b16 %v3490, %v2253
        %v3493 = vpack.c.b16 %v3491, %v2254
        %v3495 = vshrl.u32 %v3492, 16
        %v3497 = vrot.slane %v3495, 2
        %v3498 = vshll.u32 %v3492, 16
        %v3500 = vrot.slane %v3498, 3
        %v3501 = vor.u32 %v3497, %v3500
        %v3503 = vshrl.u32 %v3493, 16
        %v3505 = vrot.slane %v3503, 2
        %v3506 = vshll.u32 %v3493, 16
        %v3508 = vrot.slane %v3506, 3
        %v3509 = vor.u32 %v3505, %v3508
        %v3544 = vunpack.c.l.b16 %v3457
        %v3545 = vunpack.c.h.b16 %v3457
        %v3546 = vunpack.c.l.b16 %v3458
        %v3547 = vunpack.c.h.b16 %v3458
        %v3548 = vunpack.c.l.b16 %v3459
        %v3549 = vunpack.c.h.b16 %v3459
        %v3550 = vunpack.c.l.b16 %v3460
        %v3551 = vunpack.c.h.b16 %v3460
        %v3552 = vunpack.c.l.b16 %v3461
        %v3553 = vunpack.c.h.b16 %v3461
        %v3554 = vunpack.c.l.b16 %v3462
        %v3555 = vunpack.c.h.b16 %v3462
        %v3556 = vunpack.c.l.b16 %v3463
        %v3557 = vunpack.c.h.b16 %v3463
        %v3558 = vunpack.c.l.b16 %v3464
        %v3559 = vunpack.c.h.b16 %v3464
        %v3560 = vunpack.c.l.b16 %v3465
        %v3561 = vunpack.c.h.b16 %v3465
        %v3562 = vunpack.c.l.b16 %v3466
        %v3563 = vunpack.c.h.b16 %v3466
        %v3564 = vunpack.c.l.b16 %v3467
        %v3565 = vunpack.c.h.b16 %v3467
        %v3566 = vunpack.c.l.b16 %v3468
        %v3567 = vunpack.c.h.b16 %v3468
        %v3568 = vunpack.c.l.b16 %v3469
        %v3569 = vunpack.c.h.b16 %v3469
        %v3570 = vunpack.c.l.b16 %v3470
        %v3571 = vunpack.c.h.b16 %v3470
        %v3572 = vunpack.c.l.b16 %v3471
        %v3573 = vunpack.c.h.b16 %v3471
        %v3574 = vunpack.c.l.b16 %v3472
        %v3575 = vunpack.c.h.b16 %v3472
        %v3576 = vunpack.c.l.b16 %v3473
        %v3577 = vunpack.c.h.b16 %v3473
        %v3578 = vunpack.c.l.b16 %v3474
        %v3579 = vunpack.c.h.b16 %v3474
        %v3580 = vunpack.c.l.b16 %v3475
        %v3581 = vunpack.c.h.b16 %v3475
        %v3582 = vunpack.c.l.b16 %v3476
        %v3583 = vunpack.c.h.b16 %v3476
        %v3584 = vunpack.c.l.b16 %v3477
        %v3585 = vunpack.c.h.b16 %v3477
        %v3586 = vunpack.c.l.b16 %v3478
        %v3587 = vunpack.c.h.b16 %v3478
        %v3588 = vunpack.c.l.b16 %v3479
        %v3589 = vunpack.c.h.b16 %v3479
        %v3590 = vunpack.c.l.b16 %v3480
        %v3591 = vunpack.c.h.b16 %v3480
        %v3592 = vunpack.c.l.b16 %v3481
        %v3593 = vunpack.c.h.b16 %v3481
        %v3594 = vunpack.c.l.b16 %v3482
        %v3595 = vunpack.c.h.b16 %v3482
        %v3596 = vunpack.c.l.b16 %v3483
        %v3597 = vunpack.c.h.b16 %v3483
        %v3598 = vunpack.c.l.b16 %v3484
        %v3599 = vunpack.c.h.b16 %v3484
        %v3600 = vunpack.c.l.b16 %v3485
        %v3601 = vunpack.c.h.b16 %v3485
        %v3602 = vunpack.c.l.b16 %v3486
        %v3603 = vunpack.c.h.b16 %v3486
        %v3604 = vunpack.c.l.b16 %v3487
        %v3605 = vunpack.c.h.b16 %v3487
        %v3606 = vunpack.c.l.b16 %v3488
        %v3607 = vunpack.c.h.b16 %v3488
        %v3608 = vpack.c.b16 %v3546, %v3544
        %v3609 = vpack.c.b16 %v3547, %v3545
        %v3610 = vpack.c.b16 %v3550, %v3548
        %v3611 = vpack.c.b16 %v3551, %v3549
        %v3612 = vpack.c.b16 %v3554, %v3552
        %v3613 = vpack.c.b16 %v3555, %v3553
        %v3614 = vpack.c.b16 %v3558, %v3556
        %v3615 = vpack.c.b16 %v3559, %v3557
        %v3616 = vpack.c.b16 %v3562, %v3560
        %v3617 = vpack.c.b16 %v3563, %v3561
        %v3618 = vpack.c.b16 %v3566, %v3564
        %v3619 = vpack.c.b16 %v3567, %v3565
        %v3620 = vpack.c.b16 %v3570, %v3568
        %v3621 = vpack.c.b16 %v3571, %v3569
        %v3622 = vpack.c.b16 %v3574, %v3572
        %v3623 = vpack.c.b16 %v3575, %v3573
        %v3624 = vpack.c.b16 %v3578, %v3576
        %v3625 = vpack.c.b16 %v3579, %v3577
        %v3626 = vpack.c.b16 %v3582, %v3580
        %v3627 = vpack.c.b16 %v3583, %v3581
        %v3628 = vpack.c.b16 %v3586, %v3584
        %v3629 = vpack.c.b16 %v3587, %v3585
        %v3630 = vpack.c.b16 %v3590, %v3588
        %v3631 = vpack.c.b16 %v3591, %v3589
        %v3632 = vpack.c.b16 %v3594, %v3592
        %v3633 = vpack.c.b16 %v3595, %v3593
        %v3634 = vpack.c.b16 %v3598, %v3596
        %v3635 = vpack.c.b16 %v3599, %v3597
        %v3636 = vpack.c.b16 %v3602, %v3600
        %v3637 = vpack.c.b16 %v3603, %v3601
        %v3638 = vpack.c.b16 %v3606, %v3604
        %v3639 = vpack.c.b16 %v3607, %v3605
        %3672 = vmatpush.bf16.msra.mxu0 %v3622
        %3673 = vmatpush.bf16.msra.mxu0 %v3620
        %3674 = vmatpush.bf16.msra.mxu0 %v3618
        %3675 = vmatpush.bf16.msra.mxu0 %v3616
        %3676 = vmatpush.bf16.msra.mxu0 %v3614
        %3677 = vmatpush.bf16.msra.mxu0 %v3612
        %3678 = vmatpush.bf16.msra.mxu0 %v3610
        %3679 = vmatpush.bf16.msra.mxu0 %v3608
        %3680 = vmatmul.bf16.gmra.mxu0 %v3501
        %v3681 = vpop.f32.mrf.mxu0
        %v3682 = vadd.f32 0.0, %v3681
        %v3683 = vpop.f32.mrf.mxu0
        %3684 = vdwg.mxu0
        %3685 = vmatpush.bf16.msra.mxu0 %v3638
        %3686 = vmatpush.bf16.msra.mxu0 %v3636
        %3687 = vmatpush.bf16.msra.mxu0 %v3634
        %3688 = vmatpush.bf16.msra.mxu0 %v3632
        %3689 = vmatpush.bf16.msra.mxu0 %v3630
        %3690 = vmatpush.bf16.msra.mxu0 %v3628
        %3691 = vmatpush.bf16.msra.mxu0 %v3626
        %3692 = vmatpush.bf16.msra.mxu0 %v3624
        %3693 = vmatmul.bf16.gmra.mxu0 %v3509
        %v3694 = vpop.f32.mrf.mxu0
        %v3695 = vadd.f32 %v3682, %v3694
        %v3696 = vpop.f32.mrf.mxu0
        %3697 = vdwg.mxu0
        %3698 = vmatpush.bf16.msra.mxu0 %v3623
        %3699 = vmatpush.bf16.msra.mxu0 %v3621
        %3700 = vmatpush.bf16.msra.mxu0 %v3619
        %3701 = vmatpush.bf16.msra.mxu0 %v3617
        %3702 = vmatpush.bf16.msra.mxu0 %v3615
        %3703 = vmatpush.bf16.msra.mxu0 %v3613
        %3704 = vmatpush.bf16.msra.mxu0 %v3611
        %3705 = vmatpush.bf16.msra.mxu0 %v3609
        %3706 = vmatmul.bf16.gmra.mxu0 %v3501
        %v3707 = vpop.f32.mrf.mxu0
        %v3708 = vadd.f32 0.0, %v3707
        %v3709 = vpop.f32.mrf.mxu0
        %3710 = vdwg.mxu0
        %3711 = vmatpush.bf16.msra.mxu0 %v3639
        %3712 = vmatpush.bf16.msra.mxu0 %v3637
        %3713 = vmatpush.bf16.msra.mxu0 %v3635
        %3714 = vmatpush.bf16.msra.mxu0 %v3633
        %3715 = vmatpush.bf16.msra.mxu0 %v3631
        %3716 = vmatpush.bf16.msra.mxu0 %v3629
        %3717 = vmatpush.bf16.msra.mxu0 %v3627
        %3718 = vmatpush.bf16.msra.mxu0 %v3625
        %3719 = vmatmul.bf16.gmra.mxu0 %v3509
        %v3720 = vpop.f32.mrf.mxu0
        %v3721 = vadd.f32 %v3708, %v3720
        %v3722 = vpop.f32.mrf.mxu0
        %3723 = vdwg.mxu0
        %v3724 = vadd.f32 %v3454, %v3695
        %v3725 = vadd.f32 %v3455, %v3721
        %s3726 = scalar_lea.vmem [#allocation2], 1536
        %v3727 = vld [vmem:[%s3726] sm:$0xff]
        %v3728 = vld [vmem:[%s3726 + $0x8] sm:$0xff]
        %v3729 = vld [vmem:[%s3726 + $0x10] sm:$0xff]
        %v3730 = vld [vmem:[%s3726 + $0x18] sm:$0xff]
        %v3731 = vld [vmem:[%s3726 + $0x20] sm:$0xff]
        %v3732 = vld [vmem:[%s3726 + $0x28] sm:$0xff]
        %v3733 = vld [vmem:[%s3726 + $0x30] sm:$0xff]
        %v3734 = vld [vmem:[%s3726 + $0x38] sm:$0xff]
        %v3735 = vld [vmem:[%s3726 + $0x40] sm:$0xff]
        %v3736 = vld [vmem:[%s3726 + $0x48] sm:$0xff]
        %v3737 = vld [vmem:[%s3726 + $0x50] sm:$0xff]
        %v3738 = vld [vmem:[%s3726 + $0x58] sm:$0xff]
        %v3739 = vld [vmem:[%s3726 + $0x60] sm:$0xff]
        %v3740 = vld [vmem:[%s3726 + $0x68] sm:$0xff]
        %v3741 = vld [vmem:[%s3726 + $0x70] sm:$0xff]
        %v3742 = vld [vmem:[%s3726 + $0x78] sm:$0xff]
        %v3743 = vld [vmem:[%s3726 + $0x80] sm:$0xff]
        %v3744 = vld [vmem:[%s3726 + $0x88] sm:$0xff]
        %v3745 = vld [vmem:[%s3726 + $0x90] sm:$0xff]
        %v3746 = vld [vmem:[%s3726 + $0x98] sm:$0xff]
        %v3747 = vld [vmem:[%s3726 + $0xa0] sm:$0xff]
        %v3748 = vld [vmem:[%s3726 + $0xa8] sm:$0xff]
        %v3749 = vld [vmem:[%s3726 + $0xb0] sm:$0xff]
        %v3750 = vld [vmem:[%s3726 + $0xb8] sm:$0xff]
        %v3751 = vld [vmem:[%s3726 + $0xc0] sm:$0xff]
        %v3752 = vld [vmem:[%s3726 + $0xc8] sm:$0xff]
        %v3753 = vld [vmem:[%s3726 + $0xd0] sm:$0xff]
        %v3754 = vld [vmem:[%s3726 + $0xd8] sm:$0xff]
        %v3755 = vld [vmem:[%s3726 + $0xe0] sm:$0xff]
        %v3756 = vld [vmem:[%s3726 + $0xe8] sm:$0xff]
        %v3757 = vld [vmem:[%s3726 + $0xf0] sm:$0xff]
        %v3758 = vld [vmem:[%s3726 + $0xf8] sm:$0xff]
        %v3759 = vrot.slane %v3492, 3
        %v3760 = vrot.slane %v3493, 3
        %v3795 = vunpack.c.l.b16 %v3727
        %v3796 = vunpack.c.h.b16 %v3727
        %v3797 = vunpack.c.l.b16 %v3728
        %v3798 = vunpack.c.h.b16 %v3728
        %v3799 = vunpack.c.l.b16 %v3729
        %v3800 = vunpack.c.h.b16 %v3729
        %v3801 = vunpack.c.l.b16 %v3730
        %v3802 = vunpack.c.h.b16 %v3730
        %v3803 = vunpack.c.l.b16 %v3731
        %v3804 = vunpack.c.h.b16 %v3731
        %v3805 = vunpack.c.l.b16 %v3732
        %v3806 = vunpack.c.h.b16 %v3732
        %v3807 = vunpack.c.l.b16 %v3733
        %v3808 = vunpack.c.h.b16 %v3733
        %v3809 = vunpack.c.l.b16 %v3734
        %v3810 = vunpack.c.h.b16 %v3734
        %v3811 = vunpack.c.l.b16 %v3735
        %v3812 = vunpack.c.h.b16 %v3735
        %v3813 = vunpack.c.l.b16 %v3736
        %v3814 = vunpack.c.h.b16 %v3736
        %v3815 = vunpack.c.l.b16 %v3737
        %v3816 = vunpack.c.h.b16 %v3737
        %v3817 = vunpack.c.l.b16 %v3738
        %v3818 = vunpack.c.h.b16 %v3738
        %v3819 = vunpack.c.l.b16 %v3739
        %v3820 = vunpack.c.h.b16 %v3739
        %v3821 = vunpack.c.l.b16 %v3740
        %v3822 = vunpack.c.h.b16 %v3740
        %v3823 = vunpack.c.l.b16 %v3741
        %v3824 = vunpack.c.h.b16 %v3741
        %v3825 = vunpack.c.l.b16 %v3742
        %v3826 = vunpack.c.h.b16 %v3742
        %v3827 = vunpack.c.l.b16 %v3743
        %v3828 = vunpack.c.h.b16 %v3743
        %v3829 = vunpack.c.l.b16 %v3744
        %v3830 = vunpack.c.h.b16 %v3744
        %v3831 = vunpack.c.l.b16 %v3745
        %v3832 = vunpack.c.h.b16 %v3745
        %v3833 = vunpack.c.l.b16 %v3746
        %v3834 = vunpack.c.h.b16 %v3746
        %v3835 = vunpack.c.l.b16 %v3747
        %v3836 = vunpack.c.h.b16 %v3747
        %v3837 = vunpack.c.l.b16 %v3748
        %v3838 = vunpack.c.h.b16 %v3748
        %v3839 = vunpack.c.l.b16 %v3749
        %v3840 = vunpack.c.h.b16 %v3749
        %v3841 = vunpack.c.l.b16 %v3750
        %v3842 = vunpack.c.h.b16 %v3750
        %v3843 = vunpack.c.l.b16 %v3751
        %v3844 = vunpack.c.h.b16 %v3751
        %v3845 = vunpack.c.l.b16 %v3752
        %v3846 = vunpack.c.h.b16 %v3752
        %v3847 = vunpack.c.l.b16 %v3753
        %v3848 = vunpack.c.h.b16 %v3753
        %v3849 = vunpack.c.l.b16 %v3754
        %v3850 = vunpack.c.h.b16 %v3754
        %v3851 = vunpack.c.l.b16 %v3755
        %v3852 = vunpack.c.h.b16 %v3755
        %v3853 = vunpack.c.l.b16 %v3756
        %v3854 = vunpack.c.h.b16 %v3756
        %v3855 = vunpack.c.l.b16 %v3757
        %v3856 = vunpack.c.h.b16 %v3757
        %v3857 = vunpack.c.l.b16 %v3758
        %v3858 = vunpack.c.h.b16 %v3758
        %v3859 = vpack.c.b16 %v3797, %v3795
        %v3860 = vpack.c.b16 %v3798, %v3796
        %v3861 = vpack.c.b16 %v3801, %v3799
        %v3862 = vpack.c.b16 %v3802, %v3800
        %v3863 = vpack.c.b16 %v3805, %v3803
        %v3864 = vpack.c.b16 %v3806, %v3804
        %v3865 = vpack.c.b16 %v3809, %v3807
        %v3866 = vpack.c.b16 %v3810, %v3808
        %v3867 = vpack.c.b16 %v3813, %v3811
        %v3868 = vpack.c.b16 %v3814, %v3812
        %v3869 = vpack.c.b16 %v3817, %v3815
        %v3870 = vpack.c.b16 %v3818, %v3816
        %v3871 = vpack.c.b16 %v3821, %v3819
        %v3872 = vpack.c.b16 %v3822, %v3820
        %v3873 = vpack.c.b16 %v3825, %v3823
        %v3874 = vpack.c.b16 %v3826, %v3824
        %v3875 = vpack.c.b16 %v3829, %v3827
        %v3876 = vpack.c.b16 %v3830, %v3828
        %v3877 = vpack.c.b16 %v3833, %v3831
        %v3878 = vpack.c.b16 %v3834, %v3832
        %v3879 = vpack.c.b16 %v3837, %v3835
        %v3880 = vpack.c.b16 %v3838, %v3836
        %v3881 = vpack.c.b16 %v3841, %v3839
        %v3882 = vpack.c.b16 %v3842, %v3840
        %v3883 = vpack.c.b16 %v3845, %v3843
        %v3884 = vpack.c.b16 %v3846, %v3844
        %v3885 = vpack.c.b16 %v3849, %v3847
        %v3886 = vpack.c.b16 %v3850, %v3848
        %v3887 = vpack.c.b16 %v3853, %v3851
        %v3888 = vpack.c.b16 %v3854, %v3852
        %v3889 = vpack.c.b16 %v3857, %v3855
        %v3890 = vpack.c.b16 %v3858, %v3856
        %3923 = vmatpush.bf16.msra.mxu0 %v3873
        %3924 = vmatpush.bf16.msra.mxu0 %v3871
        %3925 = vmatpush.bf16.msra.mxu0 %v3869
        %3926 = vmatpush.bf16.msra.mxu0 %v3867
        %3927 = vmatpush.bf16.msra.mxu0 %v3865
        %3928 = vmatpush.bf16.msra.mxu0 %v3863
        %3929 = vmatpush.bf16.msra.mxu0 %v3861
        %3930 = vmatpush.bf16.msra.mxu0 %v3859
        %3931 = vmatmul.bf16.gmra.mxu0 %v3759
        %v3932 = vpop.f32.mrf.mxu0
        %v3933 = vadd.f32 0.0, %v3932
        %v3934 = vpop.f32.mrf.mxu0
        %3935 = vdwg.mxu0
        %3936 = vmatpush.bf16.msra.mxu0 %v3889
        %3937 = vmatpush.bf16.msra.mxu0 %v3887
        %3938 = vmatpush.bf16.msra.mxu0 %v3885
        %3939 = vmatpush.bf16.msra.mxu0 %v3883
        %3940 = vmatpush.bf16.msra.mxu0 %v3881
        %3941 = vmatpush.bf16.msra.mxu0 %v3879
        %3942 = vmatpush.bf16.msra.mxu0 %v3877
        %3943 = vmatpush.bf16.msra.mxu0 %v3875
        %3944 = vmatmul.bf16.gmra.mxu0 %v3760
        %v3945 = vpop.f32.mrf.mxu0
        %v3946 = vadd.f32 %v3933, %v3945
        %v3947 = vpop.f32.mrf.mxu0
        %3948 = vdwg.mxu0
        %3949 = vmatpush.bf16.msra.mxu0 %v3874
        %3950 = vmatpush.bf16.msra.mxu0 %v3872
        %3951 = vmatpush.bf16.msra.mxu0 %v3870
        %3952 = vmatpush.bf16.msra.mxu0 %v3868
        %3953 = vmatpush.bf16.msra.mxu0 %v3866
        %3954 = vmatpush.bf16.msra.mxu0 %v3864
        %3955 = vmatpush.bf16.msra.mxu0 %v3862
        %3956 = vmatpush.bf16.msra.mxu0 %v3860
        %3957 = vmatmul.bf16.gmra.mxu0 %v3759
        %v3958 = vpop.f32.mrf.mxu0
        %v3959 = vadd.f32 0.0, %v3958
        %v3960 = vpop.f32.mrf.mxu0
        %3961 = vdwg.mxu0
        %3962 = vmatpush.bf16.msra.mxu0 %v3890
        %3963 = vmatpush.bf16.msra.mxu0 %v3888
        %3964 = vmatpush.bf16.msra.mxu0 %v3886
        %3965 = vmatpush.bf16.msra.mxu0 %v3884
        %3966 = vmatpush.bf16.msra.mxu0 %v3882
        %3967 = vmatpush.bf16.msra.mxu0 %v3880
        %3968 = vmatpush.bf16.msra.mxu0 %v3878
        %3969 = vmatpush.bf16.msra.mxu0 %v3876
        %3970 = vmatmul.bf16.gmra.mxu0 %v3760
        %v3971 = vpop.f32.mrf.mxu0
        %v3972 = vadd.f32 %v3959, %v3971
        %v3973 = vpop.f32.mrf.mxu0
        %3974 = vdwg.mxu0
        %v3975 = vadd.f32 %v3724, %v3946
        %v3976 = vadd.f32 %v3725, %v3972
        %v3977 = vld [vmem:[%s13] sm:$0x3]
        %v3979 = vperm.slane %v3977, 0
        %v3980 = vperm.slane %v3977, 1
        %v3983 = vadd.f32 %v3975, %v3979
        %v3984 = vadd.f32 %v3976, %v3980
        %vm3985 = vcmp.ge.f32.partialorder %v3983, 0.0
        %vm3986 = vcmp.ge.f32.partialorder %v3984, 0.0
        %v3987 = vmul.f32 %v3983, 0.2
        %v3988 = vmul.f32 %v3984, 0.2
        %v3989 = vsel %vm3985, %v3983, %v3987
        %v3990 = vsel %vm3986, %v3984, %v3988
        %v3991 = vld [vmem:[%s4] sm:$0xff]
        %v3992 = vld [vmem:[%s4 + $0x8] sm:$0x3f]
        %v3994 = vsel %vm2125, %v3991, 0
        %v3997 = vsel %vm2125, %v3992, 0
        %v4000 = vsel %vm2132, %v3989, 0
        %v4003 = vsel %vm2132, %v3990, 0
        %4005 = vmatpush.msra.mxu0 0.0
        %4006 = vmatpush.msra.mxu0 0.0
        %4007 = vmatpush.msra.mxu0 0.0
        %4008 = vmatpush.msra.mxu0 0.0
        %4009 = vmatpush.msra.mxu0 0.0
        %4010 = vmatpush.msra.mxu0 0.0
        %4011 = vmatpush.msra.mxu0 0.0
        %4012 = vmatpush.msra.mxu0 0.0
        %4013 = vmatpush.msra.mxu0 0.0
        %4014 = vmatpush.msra.mxu0 0.0
        %4015 = vmatpush.msra.mxu0 0.0
        %4016 = vmatpush.msra.mxu0 0.0
        %4017 = vmatpush.msra.mxu0 0.0
        %4018 = vmatpush.msra.mxu0 0.0
        %4019 = vmatpush.msra.mxu0 0.0
        %4020 = vmatpush.msra.mxu0 %v4000
        %4021 = vmatmul.f32.gmra.mxu0 %v3994
        %v4022 = vpop.f32.mrf.mxu0
        %v4023 = vadd.f32 0.0, %v4022
        %4024 = vmatmul.f32.gmra.mxu0 %v3997
        %v4025 = vpop.f32.mrf.mxu0
        %v4026 = vadd.f32 0.0, %v4025
        %4027 = vdwg.mxu0
        %4028 = vmatpush.msra.mxu0 0.0
        %4029 = vmatpush.msra.mxu0 0.0
        %4030 = vmatpush.msra.mxu0 0.0
        %4031 = vmatpush.msra.mxu0 0.0
        %4032 = vmatpush.msra.mxu0 0.0
        %4033 = vmatpush.msra.mxu0 0.0
        %4034 = vmatpush.msra.mxu0 0.0
        %4035 = vmatpush.msra.mxu0 0.0
        %4036 = vmatpush.msra.mxu0 0.0
        %4037 = vmatpush.msra.mxu0 0.0
        %4038 = vmatpush.msra.mxu0 0.0
        %4039 = vmatpush.msra.mxu0 0.0
        %4040 = vmatpush.msra.mxu0 0.0
        %4041 = vmatpush.msra.mxu0 0.0
        %4042 = vmatpush.msra.mxu0 0.0
        %4043 = vmatpush.msra.mxu0 %v4003
        %4044 = vmatmul.f32.gmra.mxu0 %v3994
        %v4045 = vpop.f32.mrf.mxu0
        %v4046 = vadd.f32 0.0, %v4045
        %4047 = vmatmul.f32.gmra.mxu0 %v3997
        %v4048 = vpop.f32.mrf.mxu0
        %v4049 = vadd.f32 0.0, %v4048
        %4050 = vdwg.mxu0
        %v4051 = vpack.c.bf16 %v4046, %v4023
        %v4052 = vpack.c.bf16 %v4049, %v4026
        %v4053 = vld [vmem:[#allocation4] sm:$0xf]
        %v4054 = vld [vmem:[#allocation4 + $0x4] sm:$0xf]
        %v4055 = vld [vmem:[#allocation4 + $0x8] sm:$0xf]
        %v4056 = vld [vmem:[#allocation4 + $0xc] sm:$0xf]
        %v4057 = vld [vmem:[#allocation4 + $0x10] sm:$0xf]
        %v4058 = vld [vmem:[#allocation4 + $0x14] sm:$0xf]
        %v4059 = vld [vmem:[#allocation4 + $0x18] sm:$0xf]
        %v4060 = vld [vmem:[#allocation4 + $0x1c] sm:$0xf]
        %v4061 = vld [vmem:[#allocation4 + $0x20] sm:$0xf]
        %v4062 = vld [vmem:[#allocation4 + $0x24] sm:$0xf]
        %v4063 = vld [vmem:[#allocation4 + $0x28] sm:$0xf]
        %v4064 = vld [vmem:[#allocation4 + $0x2c] sm:$0xf]
        %v4065 = vld [vmem:[#allocation4 + $0x30] sm:$0xf]
        %v4066 = vld [vmem:[#allocation4 + $0x34] sm:$0xf]
        %v4067 = vld [vmem:[#allocation4 + $0x38] sm:$0xf]
        %v4068 = vld [vmem:[#allocation4 + $0x3c] sm:$0xf]
        %v4069 = vld [vmem:[#allocation4 + $0x40] sm:$0xf]
        %v4070 = vld [vmem:[#allocation4 + $0x44] sm:$0xf]
        %v4071 = vld [vmem:[#allocation4 + $0x48] sm:$0xf]
        %v4072 = vld [vmem:[#allocation4 + $0x4c] sm:$0xf]
        %v4073 = vld [vmem:[#allocation4 + $0x50] sm:$0xf]
        %v4074 = vld [vmem:[#allocation4 + $0x54] sm:$0xf]
        %v4075 = vld [vmem:[#allocation4 + $0x58] sm:$0xf]
        %v4076 = vld [vmem:[#allocation4 + $0x5c] sm:$0xf]
        %v4077 = vld [vmem:[#allocation4 + $0x60] sm:$0xf]
        %v4078 = vld [vmem:[#allocation4 + $0x64] sm:$0xf]
        %v4079 = vld [vmem:[#allocation4 + $0x68] sm:$0xf]
        %v4080 = vld [vmem:[#allocation4 + $0x6c] sm:$0xf]
        %v4081 = vld [vmem:[#allocation4 + $0x70] sm:$0xf]
        %v4082 = vld [vmem:[#allocation4 + $0x74] sm:$0xf]
        %v4083 = vld [vmem:[#allocation4 + $0x78] sm:$0xf]
        %v4084 = vld [vmem:[#allocation4 + $0x7c] sm:$0xf]
        %s4085 = scalar_lea.vmem [#allocation4], 128
        %v4086 = vld [vmem:[%s4085] sm:$0xf]
        %v4087 = vld [vmem:[%s4085 + $0x4] sm:$0xf]
        %v4088 = vld [vmem:[%s4085 + $0x8] sm:$0xf]
        %v4089 = vld [vmem:[%s4085 + $0xc] sm:$0xf]
        %v4090 = vld [vmem:[%s4085 + $0x10] sm:$0xf]
        %v4091 = vld [vmem:[%s4085 + $0x14] sm:$0xf]
        %v4092 = vld [vmem:[%s4085 + $0x18] sm:$0xf]
        %v4093 = vld [vmem:[%s4085 + $0x1c] sm:$0xf]
        %v4094 = vld [vmem:[%s4085 + $0x20] sm:$0xf]
        %v4095 = vld [vmem:[%s4085 + $0x24] sm:$0xf]
        %v4096 = vld [vmem:[%s4085 + $0x28] sm:$0xf]
        %v4097 = vld [vmem:[%s4085 + $0x2c] sm:$0xf]
        %v4098 = vld [vmem:[%s4085 + $0x30] sm:$0xf]
        %v4099 = vld [vmem:[%s4085 + $0x34] sm:$0xf]
        %v4100 = vld [vmem:[%s4085 + $0x38] sm:$0xf]
        %v4101 = vld [vmem:[%s4085 + $0x3c] sm:$0xf]
        %v4102 = vld [vmem:[%s4085 + $0x40] sm:$0xf]
        %v4103 = vld [vmem:[%s4085 + $0x44] sm:$0xf]
        %v4104 = vld [vmem:[%s4085 + $0x48] sm:$0xf]
        %v4105 = vld [vmem:[%s4085 + $0x4c] sm:$0xf]
        %v4106 = vld [vmem:[%s4085 + $0x50] sm:$0xf]
        %v4107 = vld [vmem:[%s4085 + $0x54] sm:$0xf]
        %v4108 = vld [vmem:[%s4085 + $0x58] sm:$0xf]
        %v4109 = vld [vmem:[%s4085 + $0x5c] sm:$0xf]
        %v4110 = vld [vmem:[%s4085 + $0x60] sm:$0xf]
        %v4111 = vld [vmem:[%s4085 + $0x64] sm:$0xf]
        %v4112 = vld [vmem:[%s4085 + $0x68] sm:$0xf]
        %v4113 = vld [vmem:[%s4085 + $0x6c] sm:$0xf]
        %v4114 = vld [vmem:[%s4085 + $0x70] sm:$0xf]
        %v4115 = vld [vmem:[%s4085 + $0x74] sm:$0xf]
        %v4116 = vld [vmem:[%s4085 + $0x78] sm:$0xf]
        %v4117 = vld [vmem:[%s4085 + $0x7c] sm:$0xf]
        %v4120 = vunpack.c.l.b16 %v4051
        %v4121 = vunpack.c.h.b16 %v4051
        %v4122 = vunpack.c.l.b16 %v4052
        %v4123 = vunpack.c.h.b16 %v4052
        %v4124 = vpack.c.b16 %v4122, %v4120
        %v4125 = vpack.c.b16 %v4123, %v4121
        %v4127 = vshrl.u32 %v4124, 16
        %v4129 = vshll.u32 %v4124, 16
        %v4131 = vrot.slane %v4129, 1
        %v4132 = vor.u32 %v4127, %v4131
        %v4134 = vshrl.u32 %v4125, 16
        %v4136 = vshll.u32 %v4125, 16
        %v4138 = vrot.slane %v4136, 1
        %v4139 = vor.u32 %v4134, %v4138
        %v4174 = vunpack.c.l.b16 %v4086
        %v4175 = vunpack.c.l.b16 %v4087
        %v4176 = vunpack.c.l.b16 %v4088
        %v4177 = vunpack.c.l.b16 %v4089
        %v4178 = vunpack.c.l.b16 %v4090
        %v4179 = vunpack.c.l.b16 %v4091
        %v4180 = vunpack.c.l.b16 %v4092
        %v4181 = vunpack.c.l.b16 %v4093
        %v4182 = vunpack.c.l.b16 %v4094
        %v4183 = vunpack.c.l.b16 %v4095
        %v4184 = vunpack.c.l.b16 %v4096
        %v4185 = vunpack.c.l.b16 %v4097
        %v4186 = vunpack.c.l.b16 %v4098
        %v4187 = vunpack.c.l.b16 %v4099
        %v4188 = vunpack.c.l.b16 %v4100
        %v4189 = vunpack.c.l.b16 %v4101
        %v4190 = vunpack.c.l.b16 %v4102
        %v4191 = vunpack.c.l.b16 %v4103
        %v4192 = vunpack.c.l.b16 %v4104
        %v4193 = vunpack.c.l.b16 %v4105
        %v4194 = vunpack.c.l.b16 %v4106
        %v4195 = vunpack.c.l.b16 %v4107
        %v4196 = vunpack.c.l.b16 %v4108
        %v4197 = vunpack.c.l.b16 %v4109
        %v4198 = vunpack.c.l.b16 %v4110
        %v4199 = vunpack.c.l.b16 %v4111
        %v4200 = vunpack.c.l.b16 %v4112
        %v4201 = vunpack.c.l.b16 %v4113
        %v4202 = vunpack.c.l.b16 %v4114
        %v4203 = vunpack.c.l.b16 %v4115
        %v4204 = vunpack.c.l.b16 %v4116
        %v4205 = vunpack.c.l.b16 %v4117
        %v4206 = vpack.c.b16 %v4175, %v4174
        %v4207 = vpack.c.b16 %v4177, %v4176
        %v4208 = vpack.c.b16 %v4179, %v4178
        %v4209 = vpack.c.b16 %v4181, %v4180
        %v4210 = vpack.c.b16 %v4183, %v4182
        %v4211 = vpack.c.b16 %v4185, %v4184
        %v4212 = vpack.c.b16 %v4187, %v4186
        %v4213 = vpack.c.b16 %v4189, %v4188
        %v4214 = vpack.c.b16 %v4191, %v4190
        %v4215 = vpack.c.b16 %v4193, %v4192
        %v4216 = vpack.c.b16 %v4195, %v4194
        %v4217 = vpack.c.b16 %v4197, %v4196
        %v4218 = vpack.c.b16 %v4199, %v4198
        %v4219 = vpack.c.b16 %v4201, %v4200
        %v4220 = vpack.c.b16 %v4203, %v4202
        %v4221 = vpack.c.b16 %v4205, %v4204
        %4238 = vmatpush.bf16.msra.mxu0 %v4213
        %4239 = vmatpush.bf16.msra.mxu0 %v4212
        %4240 = vmatpush.bf16.msra.mxu0 %v4211
        %4241 = vmatpush.bf16.msra.mxu0 %v4210
        %4242 = vmatpush.bf16.msra.mxu0 %v4209
        %4243 = vmatpush.bf16.msra.mxu0 %v4208
        %4244 = vmatpush.bf16.msra.mxu0 %v4207
        %4245 = vmatpush.bf16.msra.mxu0 %v4206
        %4246 = vmatmul.bf16.gmra.mxu0 %v4132
        %v4247 = vpop.f32.mrf.mxu0
        %v4248 = vadd.f32 0.0, %v4247
        %v4249 = vpop.f32.mrf.mxu0
        %4250 = vdwg.mxu0
        %4251 = vmatpush.bf16.msra.mxu0 %v4221
        %4252 = vmatpush.bf16.msra.mxu0 %v4220
        %4253 = vmatpush.bf16.msra.mxu0 %v4219
        %4254 = vmatpush.bf16.msra.mxu0 %v4218
        %4255 = vmatpush.bf16.msra.mxu0 %v4217
        %4256 = vmatpush.bf16.msra.mxu0 %v4216
        %4257 = vmatpush.bf16.msra.mxu0 %v4215
        %4258 = vmatpush.bf16.msra.mxu0 %v4214
        %4259 = vmatmul.bf16.gmra.mxu0 %v4139
        %v4260 = vpop.f32.mrf.mxu0
        %v4261 = vadd.f32 %v4248, %v4260
        %v4262 = vpop.f32.mrf.mxu0
        %4263 = vdwg.mxu0
        %v4264 = vpack.c.b16 %v4120, %v4120
        %v4265 = vpack.c.b16 %v4121, %v4121
        %v4300 = vunpack.c.l.b16 %v4053
        %v4301 = vunpack.c.l.b16 %v4054
        %v4302 = vunpack.c.l.b16 %v4055
        %v4303 = vunpack.c.l.b16 %v4056
        %v4304 = vunpack.c.l.b16 %v4057
        %v4305 = vunpack.c.l.b16 %v4058
        %v4306 = vunpack.c.l.b16 %v4059
        %v4307 = vunpack.c.l.b16 %v4060
        %v4308 = vunpack.c.l.b16 %v4061
        %v4309 = vunpack.c.l.b16 %v4062
        %v4310 = vunpack.c.l.b16 %v4063
        %v4311 = vunpack.c.l.b16 %v4064
        %v4312 = vunpack.c.l.b16 %v4065
        %v4313 = vunpack.c.l.b16 %v4066
        %v4314 = vunpack.c.l.b16 %v4067
        %v4315 = vunpack.c.l.b16 %v4068
        %v4316 = vunpack.c.l.b16 %v4069
        %v4317 = vunpack.c.l.b16 %v4070
        %v4318 = vunpack.c.l.b16 %v4071
        %v4319 = vunpack.c.l.b16 %v4072
        %v4320 = vunpack.c.l.b16 %v4073
        %v4321 = vunpack.c.l.b16 %v4074
        %v4322 = vunpack.c.l.b16 %v4075
        %v4323 = vunpack.c.l.b16 %v4076
        %v4324 = vunpack.c.l.b16 %v4077
        %v4325 = vunpack.c.l.b16 %v4078
        %v4326 = vunpack.c.l.b16 %v4079
        %v4327 = vunpack.c.l.b16 %v4080
        %v4328 = vunpack.c.l.b16 %v4081
        %v4329 = vunpack.c.l.b16 %v4082
        %v4330 = vunpack.c.l.b16 %v4083
        %v4331 = vunpack.c.l.b16 %v4084
        %v4332 = vpack.c.b16 %v4301, %v4300
        %v4333 = vpack.c.b16 %v4303, %v4302
        %v4334 = vpack.c.b16 %v4305, %v4304
        %v4335 = vpack.c.b16 %v4307, %v4306
        %v4336 = vpack.c.b16 %v4309, %v4308
        %v4337 = vpack.c.b16 %v4311, %v4310
        %v4338 = vpack.c.b16 %v4313, %v4312
        %v4339 = vpack.c.b16 %v4315, %v4314
        %v4340 = vpack.c.b16 %v4317, %v4316
        %v4341 = vpack.c.b16 %v4319, %v4318
        %v4342 = vpack.c.b16 %v4321, %v4320
        %v4343 = vpack.c.b16 %v4323, %v4322
        %v4344 = vpack.c.b16 %v4325, %v4324
        %v4345 = vpack.c.b16 %v4327, %v4326
        %v4346 = vpack.c.b16 %v4329, %v4328
        %v4347 = vpack.c.b16 %v4331, %v4330
        %4364 = vmatpush.bf16.msra.mxu0 %v4339
        %4365 = vmatpush.bf16.msra.mxu0 %v4338
        %4366 = vmatpush.bf16.msra.mxu0 %v4337
        %4367 = vmatpush.bf16.msra.mxu0 %v4336
        %4368 = vmatpush.bf16.msra.mxu0 %v4335
        %4369 = vmatpush.bf16.msra.mxu0 %v4334
        %4370 = vmatpush.bf16.msra.mxu0 %v4333
        %4371 = vmatpush.bf16.msra.mxu0 %v4332
        %4372 = vmatmul.bf16.gmra.mxu0 %v4264
        %v4373 = vpop.f32.mrf.mxu0
        %v4374 = vadd.f32 %v4261, %v4373
        %v4375 = vpop.f32.mrf.mxu0
        %4376 = vdwg.mxu0
        %4377 = vmatpush.bf16.msra.mxu0 %v4347
        %4378 = vmatpush.bf16.msra.mxu0 %v4346
        %4379 = vmatpush.bf16.msra.mxu0 %v4345
        %4380 = vmatpush.bf16.msra.mxu0 %v4344
        %4381 = vmatpush.bf16.msra.mxu0 %v4343
        %4382 = vmatpush.bf16.msra.mxu0 %v4342
        %4383 = vmatpush.bf16.msra.mxu0 %v4341
        %4384 = vmatpush.bf16.msra.mxu0 %v4340
        %4385 = vmatmul.bf16.gmra.mxu0 %v4265
        %v4386 = vpop.f32.mrf.mxu0
        %v4387 = vadd.f32 %v4374, %v4386
        %v4388 = vpop.f32.mrf.mxu0
        %4389 = vdwg.mxu0
        %s4390 = scalar_lea.vmem [#allocation4], 256
        %v4391 = vld [vmem:[%s4390] sm:$0xf]
        %v4392 = vld [vmem:[%s4390 + $0x4] sm:$0xf]
        %v4393 = vld [vmem:[%s4390 + $0x8] sm:$0xf]
        %v4394 = vld [vmem:[%s4390 + $0xc] sm:$0xf]
        %v4395 = vld [vmem:[%s4390 + $0x10] sm:$0xf]
        %v4396 = vld [vmem:[%s4390 + $0x14] sm:$0xf]
        %v4397 = vld [vmem:[%s4390 + $0x18] sm:$0xf]
        %v4398 = vld [vmem:[%s4390 + $0x1c] sm:$0xf]
        %v4399 = vld [vmem:[%s4390 + $0x20] sm:$0xf]
        %v4400 = vld [vmem:[%s4390 + $0x24] sm:$0xf]
        %v4401 = vld [vmem:[%s4390 + $0x28] sm:$0xf]
        %v4402 = vld [vmem:[%s4390 + $0x2c] sm:$0xf]
        %v4403 = vld [vmem:[%s4390 + $0x30] sm:$0xf]
        %v4404 = vld [vmem:[%s4390 + $0x34] sm:$0xf]
        %v4405 = vld [vmem:[%s4390 + $0x38] sm:$0xf]
        %v4406 = vld [vmem:[%s4390 + $0x3c] sm:$0xf]
        %v4407 = vld [vmem:[%s4390 + $0x40] sm:$0xf]
        %v4408 = vld [vmem:[%s4390 + $0x44] sm:$0xf]
        %v4409 = vld [vmem:[%s4390 + $0x48] sm:$0xf]
        %v4410 = vld [vmem:[%s4390 + $0x4c] sm:$0xf]
        %v4411 = vld [vmem:[%s4390 + $0x50] sm:$0xf]
        %v4412 = vld [vmem:[%s4390 + $0x54] sm:$0xf]
        %v4413 = vld [vmem:[%s4390 + $0x58] sm:$0xf]
        %v4414 = vld [vmem:[%s4390 + $0x5c] sm:$0xf]
        %v4415 = vld [vmem:[%s4390 + $0x60] sm:$0xf]
        %v4416 = vld [vmem:[%s4390 + $0x64] sm:$0xf]
        %v4417 = vld [vmem:[%s4390 + $0x68] sm:$0xf]
        %v4418 = vld [vmem:[%s4390 + $0x6c] sm:$0xf]
        %v4419 = vld [vmem:[%s4390 + $0x70] sm:$0xf]
        %v4420 = vld [vmem:[%s4390 + $0x74] sm:$0xf]
        %v4421 = vld [vmem:[%s4390 + $0x78] sm:$0xf]
        %v4422 = vld [vmem:[%s4390 + $0x7c] sm:$0xf]
        %v4423 = vrot.slane %v4124, 1
        %v4424 = vrot.slane %v4125, 1
        %v4459 = vunpack.c.l.b16 %v4391
        %v4460 = vunpack.c.l.b16 %v4392
        %v4461 = vunpack.c.l.b16 %v4393
        %v4462 = vunpack.c.l.b16 %v4394
        %v4463 = vunpack.c.l.b16 %v4395
        %v4464 = vunpack.c.l.b16 %v4396
        %v4465 = vunpack.c.l.b16 %v4397
        %v4466 = vunpack.c.l.b16 %v4398
        %v4467 = vunpack.c.l.b16 %v4399
        %v4468 = vunpack.c.l.b16 %v4400
        %v4469 = vunpack.c.l.b16 %v4401
        %v4470 = vunpack.c.l.b16 %v4402
        %v4471 = vunpack.c.l.b16 %v4403
        %v4472 = vunpack.c.l.b16 %v4404
        %v4473 = vunpack.c.l.b16 %v4405
        %v4474 = vunpack.c.l.b16 %v4406
        %v4475 = vunpack.c.l.b16 %v4407
        %v4476 = vunpack.c.l.b16 %v4408
        %v4477 = vunpack.c.l.b16 %v4409
        %v4478 = vunpack.c.l.b16 %v4410
        %v4479 = vunpack.c.l.b16 %v4411
        %v4480 = vunpack.c.l.b16 %v4412
        %v4481 = vunpack.c.l.b16 %v4413
        %v4482 = vunpack.c.l.b16 %v4414
        %v4483 = vunpack.c.l.b16 %v4415
        %v4484 = vunpack.c.l.b16 %v4416
        %v4485 = vunpack.c.l.b16 %v4417
        %v4486 = vunpack.c.l.b16 %v4418
        %v4487 = vunpack.c.l.b16 %v4419
        %v4488 = vunpack.c.l.b16 %v4420
        %v4489 = vunpack.c.l.b16 %v4421
        %v4490 = vunpack.c.l.b16 %v4422
        %v4491 = vpack.c.b16 %v4460, %v4459
        %v4492 = vpack.c.b16 %v4462, %v4461
        %v4493 = vpack.c.b16 %v4464, %v4463
        %v4494 = vpack.c.b16 %v4466, %v4465
        %v4495 = vpack.c.b16 %v4468, %v4467
        %v4496 = vpack.c.b16 %v4470, %v4469
        %v4497 = vpack.c.b16 %v4472, %v4471
        %v4498 = vpack.c.b16 %v4474, %v4473
        %v4499 = vpack.c.b16 %v4476, %v4475
        %v4500 = vpack.c.b16 %v4478, %v4477
        %v4501 = vpack.c.b16 %v4480, %v4479
        %v4502 = vpack.c.b16 %v4482, %v4481
        %v4503 = vpack.c.b16 %v4484, %v4483
        %v4504 = vpack.c.b16 %v4486, %v4485
        %v4505 = vpack.c.b16 %v4488, %v4487
        %v4506 = vpack.c.b16 %v4490, %v4489
        %4523 = vmatpush.bf16.msra.mxu0 %v4498
        %4524 = vmatpush.bf16.msra.mxu0 %v4497
        %4525 = vmatpush.bf16.msra.mxu0 %v4496
        %4526 = vmatpush.bf16.msra.mxu0 %v4495
        %4527 = vmatpush.bf16.msra.mxu0 %v4494
        %4528 = vmatpush.bf16.msra.mxu0 %v4493
        %4529 = vmatpush.bf16.msra.mxu0 %v4492
        %4530 = vmatpush.bf16.msra.mxu0 %v4491
        %4531 = vmatmul.bf16.gmra.mxu0 %v4423
        %v4532 = vpop.f32.mrf.mxu0
        %v4533 = vadd.f32 0.0, %v4532
        %v4534 = vpop.f32.mrf.mxu0
        %4535 = vdwg.mxu0
        %4536 = vmatpush.bf16.msra.mxu0 %v4506
        %4537 = vmatpush.bf16.msra.mxu0 %v4505
        %4538 = vmatpush.bf16.msra.mxu0 %v4504
        %4539 = vmatpush.bf16.msra.mxu0 %v4503
        %4540 = vmatpush.bf16.msra.mxu0 %v4502
        %4541 = vmatpush.bf16.msra.mxu0 %v4501
        %4542 = vmatpush.bf16.msra.mxu0 %v4500
        %4543 = vmatpush.bf16.msra.mxu0 %v4499
        %4544 = vmatmul.bf16.gmra.mxu0 %v4424
        %v4545 = vpop.f32.mrf.mxu0
        %v4546 = vadd.f32 %v4533, %v4545
        %v4547 = vpop.f32.mrf.mxu0
        %4548 = vdwg.mxu0
        %v4549 = vadd.f32 %v4387, %v4546
        %s4550 = scalar_lea.vmem [#allocation4], 384
        %v4551 = vld [vmem:[%s4550] sm:$0xf]
        %v4552 = vld [vmem:[%s4550 + $0x4] sm:$0xf]
        %v4553 = vld [vmem:[%s4550 + $0x8] sm:$0xf]
        %v4554 = vld [vmem:[%s4550 + $0xc] sm:$0xf]
        %v4555 = vld [vmem:[%s4550 + $0x10] sm:$0xf]
        %v4556 = vld [vmem:[%s4550 + $0x14] sm:$0xf]
        %v4557 = vld [vmem:[%s4550 + $0x18] sm:$0xf]
        %v4558 = vld [vmem:[%s4550 + $0x1c] sm:$0xf]
        %v4559 = vld [vmem:[%s4550 + $0x20] sm:$0xf]
        %v4560 = vld [vmem:[%s4550 + $0x24] sm:$0xf]
        %v4561 = vld [vmem:[%s4550 + $0x28] sm:$0xf]
        %v4562 = vld [vmem:[%s4550 + $0x2c] sm:$0xf]
        %v4563 = vld [vmem:[%s4550 + $0x30] sm:$0xf]
        %v4564 = vld [vmem:[%s4550 + $0x34] sm:$0xf]
        %v4565 = vld [vmem:[%s4550 + $0x38] sm:$0xf]
        %v4566 = vld [vmem:[%s4550 + $0x3c] sm:$0xf]
        %v4567 = vld [vmem:[%s4550 + $0x40] sm:$0xf]
        %v4568 = vld [vmem:[%s4550 + $0x44] sm:$0xf]
        %v4569 = vld [vmem:[%s4550 + $0x48] sm:$0xf]
        %v4570 = vld [vmem:[%s4550 + $0x4c] sm:$0xf]
        %v4571 = vld [vmem:[%s4550 + $0x50] sm:$0xf]
        %v4572 = vld [vmem:[%s4550 + $0x54] sm:$0xf]
        %v4573 = vld [vmem:[%s4550 + $0x58] sm:$0xf]
        %v4574 = vld [vmem:[%s4550 + $0x5c] sm:$0xf]
        %v4575 = vld [vmem:[%s4550 + $0x60] sm:$0xf]
        %v4576 = vld [vmem:[%s4550 + $0x64] sm:$0xf]
        %v4577 = vld [vmem:[%s4550 + $0x68] sm:$0xf]
        %v4578 = vld [vmem:[%s4550 + $0x6c] sm:$0xf]
        %v4579 = vld [vmem:[%s4550 + $0x70] sm:$0xf]
        %v4580 = vld [vmem:[%s4550 + $0x74] sm:$0xf]
        %v4581 = vld [vmem:[%s4550 + $0x78] sm:$0xf]
        %v4582 = vld [vmem:[%s4550 + $0x7c] sm:$0xf]
        %v4583 = vrot.slane %v4127, 1
        %v4584 = vrot.slane %v4129, 2
        %v4585 = vor.u32 %v4583, %v4584
        %v4586 = vrot.slane %v4134, 1
        %v4587 = vrot.slane %v4136, 2
        %v4588 = vor.u32 %v4586, %v4587
        %v4623 = vunpack.c.l.b16 %v4551
        %v4624 = vunpack.c.l.b16 %v4552
        %v4625 = vunpack.c.l.b16 %v4553
        %v4626 = vunpack.c.l.b16 %v4554
        %v4627 = vunpack.c.l.b16 %v4555
        %v4628 = vunpack.c.l.b16 %v4556
        %v4629 = vunpack.c.l.b16 %v4557
        %v4630 = vunpack.c.l.b16 %v4558
        %v4631 = vunpack.c.l.b16 %v4559
        %v4632 = vunpack.c.l.b16 %v4560
        %v4633 = vunpack.c.l.b16 %v4561
        %v4634 = vunpack.c.l.b16 %v4562
        %v4635 = vunpack.c.l.b16 %v4563
        %v4636 = vunpack.c.l.b16 %v4564
        %v4637 = vunpack.c.l.b16 %v4565
        %v4638 = vunpack.c.l.b16 %v4566
        %v4639 = vunpack.c.l.b16 %v4567
        %v4640 = vunpack.c.l.b16 %v4568
        %v4641 = vunpack.c.l.b16 %v4569
        %v4642 = vunpack.c.l.b16 %v4570
        %v4643 = vunpack.c.l.b16 %v4571
        %v4644 = vunpack.c.l.b16 %v4572
        %v4645 = vunpack.c.l.b16 %v4573
        %v4646 = vunpack.c.l.b16 %v4574
        %v4647 = vunpack.c.l.b16 %v4575
        %v4648 = vunpack.c.l.b16 %v4576
        %v4649 = vunpack.c.l.b16 %v4577
        %v4650 = vunpack.c.l.b16 %v4578
        %v4651 = vunpack.c.l.b16 %v4579
        %v4652 = vunpack.c.l.b16 %v4580
        %v4653 = vunpack.c.l.b16 %v4581
        %v4654 = vunpack.c.l.b16 %v4582
        %v4655 = vpack.c.b16 %v4624, %v4623
        %v4656 = vpack.c.b16 %v4626, %v4625
        %v4657 = vpack.c.b16 %v4628, %v4627
        %v4658 = vpack.c.b16 %v4630, %v4629
        %v4659 = vpack.c.b16 %v4632, %v4631
        %v4660 = vpack.c.b16 %v4634, %v4633
        %v4661 = vpack.c.b16 %v4636, %v4635
        %v4662 = vpack.c.b16 %v4638, %v4637
        %v4663 = vpack.c.b16 %v4640, %v4639
        %v4664 = vpack.c.b16 %v4642, %v4641
        %v4665 = vpack.c.b16 %v4644, %v4643
        %v4666 = vpack.c.b16 %v4646, %v4645
        %v4667 = vpack.c.b16 %v4648, %v4647
        %v4668 = vpack.c.b16 %v4650, %v4649
        %v4669 = vpack.c.b16 %v4652, %v4651
        %v4670 = vpack.c.b16 %v4654, %v4653
        %4687 = vmatpush.bf16.msra.mxu0 %v4662
        %4688 = vmatpush.bf16.msra.mxu0 %v4661
        %4689 = vmatpush.bf16.msra.mxu0 %v4660
        %4690 = vmatpush.bf16.msra.mxu0 %v4659
        %4691 = vmatpush.bf16.msra.mxu0 %v4658
        %4692 = vmatpush.bf16.msra.mxu0 %v4657
        %4693 = vmatpush.bf16.msra.mxu0 %v4656
        %4694 = vmatpush.bf16.msra.mxu0 %v4655
        %4695 = vmatmul.bf16.gmra.mxu0 %v4585
        %v4696 = vpop.f32.mrf.mxu0
        %v4697 = vadd.f32 0.0, %v4696
        %v4698 = vpop.f32.mrf.mxu0
        %4699 = vdwg.mxu0
        %4700 = vmatpush.bf16.msra.mxu0 %v4670
        %4701 = vmatpush.bf16.msra.mxu0 %v4669
        %4702 = vmatpush.bf16.msra.mxu0 %v4668
        %4703 = vmatpush.bf16.msra.mxu0 %v4667
        %4704 = vmatpush.bf16.msra.mxu0 %v4666
        %4705 = vmatpush.bf16.msra.mxu0 %v4665
        %4706 = vmatpush.bf16.msra.mxu0 %v4664
        %4707 = vmatpush.bf16.msra.mxu0 %v4663
        %4708 = vmatmul.bf16.gmra.mxu0 %v4588
        %v4709 = vpop.f32.mrf.mxu0
        %v4710 = vadd.f32 %v4697, %v4709
        %v4711 = vpop.f32.mrf.mxu0
        %4712 = vdwg.mxu0
        %v4713 = vadd.f32 %v4549, %v4710
        %s4714 = scalar_lea.vmem [#allocation4], 512
        %v4715 = vld [vmem:[%s4714] sm:$0xf]
        %v4716 = vld [vmem:[%s4714 + $0x4] sm:$0xf]
        %v4717 = vld [vmem:[%s4714 + $0x8] sm:$0xf]
        %v4718 = vld [vmem:[%s4714 + $0xc] sm:$0xf]
        %v4719 = vld [vmem:[%s4714 + $0x10] sm:$0xf]
        %v4720 = vld [vmem:[%s4714 + $0x14] sm:$0xf]
        %v4721 = vld [vmem:[%s4714 + $0x18] sm:$0xf]
        %v4722 = vld [vmem:[%s4714 + $0x1c] sm:$0xf]
        %v4723 = vld [vmem:[%s4714 + $0x20] sm:$0xf]
        %v4724 = vld [vmem:[%s4714 + $0x24] sm:$0xf]
        %v4725 = vld [vmem:[%s4714 + $0x28] sm:$0xf]
        %v4726 = vld [vmem:[%s4714 + $0x2c] sm:$0xf]
        %v4727 = vld [vmem:[%s4714 + $0x30] sm:$0xf]
        %v4728 = vld [vmem:[%s4714 + $0x34] sm:$0xf]
        %v4729 = vld [vmem:[%s4714 + $0x38] sm:$0xf]
        %v4730 = vld [vmem:[%s4714 + $0x3c] sm:$0xf]
        %v4731 = vld [vmem:[%s4714 + $0x40] sm:$0xf]
        %v4732 = vld [vmem:[%s4714 + $0x44] sm:$0xf]
        %v4733 = vld [vmem:[%s4714 + $0x48] sm:$0xf]
        %v4734 = vld [vmem:[%s4714 + $0x4c] sm:$0xf]
        %v4735 = vld [vmem:[%s4714 + $0x50] sm:$0xf]
        %v4736 = vld [vmem:[%s4714 + $0x54] sm:$0xf]
        %v4737 = vld [vmem:[%s4714 + $0x58] sm:$0xf]
        %v4738 = vld [vmem:[%s4714 + $0x5c] sm:$0xf]
        %v4739 = vld [vmem:[%s4714 + $0x60] sm:$0xf]
        %v4740 = vld [vmem:[%s4714 + $0x64] sm:$0xf]
        %v4741 = vld [vmem:[%s4714 + $0x68] sm:$0xf]
        %v4742 = vld [vmem:[%s4714 + $0x6c] sm:$0xf]
        %v4743 = vld [vmem:[%s4714 + $0x70] sm:$0xf]
        %v4744 = vld [vmem:[%s4714 + $0x74] sm:$0xf]
        %v4745 = vld [vmem:[%s4714 + $0x78] sm:$0xf]
        %v4746 = vld [vmem:[%s4714 + $0x7c] sm:$0xf]
        %v4747 = vrot.slane %v4124, 2
        %v4748 = vrot.slane %v4125, 2
        %v4783 = vunpack.c.l.b16 %v4715
        %v4784 = vunpack.c.l.b16 %v4716
        %v4785 = vunpack.c.l.b16 %v4717
        %v4786 = vunpack.c.l.b16 %v4718
        %v4787 = vunpack.c.l.b16 %v4719
        %v4788 = vunpack.c.l.b16 %v4720
        %v4789 = vunpack.c.l.b16 %v4721
        %v4790 = vunpack.c.l.b16 %v4722
        %v4791 = vunpack.c.l.b16 %v4723
        %v4792 = vunpack.c.l.b16 %v4724
        %v4793 = vunpack.c.l.b16 %v4725
        %v4794 = vunpack.c.l.b16 %v4726
        %v4795 = vunpack.c.l.b16 %v4727
        %v4796 = vunpack.c.l.b16 %v4728
        %v4797 = vunpack.c.l.b16 %v4729
        %v4798 = vunpack.c.l.b16 %v4730
        %v4799 = vunpack.c.l.b16 %v4731
        %v4800 = vunpack.c.l.b16 %v4732
        %v4801 = vunpack.c.l.b16 %v4733
        %v4802 = vunpack.c.l.b16 %v4734
        %v4803 = vunpack.c.l.b16 %v4735
        %v4804 = vunpack.c.l.b16 %v4736
        %v4805 = vunpack.c.l.b16 %v4737
        %v4806 = vunpack.c.l.b16 %v4738
        %v4807 = vunpack.c.l.b16 %v4739
        %v4808 = vunpack.c.l.b16 %v4740
        %v4809 = vunpack.c.l.b16 %v4741
        %v4810 = vunpack.c.l.b16 %v4742
        %v4811 = vunpack.c.l.b16 %v4743
        %v4812 = vunpack.c.l.b16 %v4744
        %v4813 = vunpack.c.l.b16 %v4745
        %v4814 = vunpack.c.l.b16 %v4746
        %v4815 = vpack.c.b16 %v4784, %v4783
        %v4816 = vpack.c.b16 %v4786, %v4785
        %v4817 = vpack.c.b16 %v4788, %v4787
        %v4818 = vpack.c.b16 %v4790, %v4789
        %v4819 = vpack.c.b16 %v4792, %v4791
        %v4820 = vpack.c.b16 %v4794, %v4793
        %v4821 = vpack.c.b16 %v4796, %v4795
        %v4822 = vpack.c.b16 %v4798, %v4797
        %v4823 = vpack.c.b16 %v4800, %v4799
        %v4824 = vpack.c.b16 %v4802, %v4801
        %v4825 = vpack.c.b16 %v4804, %v4803
        %v4826 = vpack.c.b16 %v4806, %v4805
        %v4827 = vpack.c.b16 %v4808, %v4807
        %v4828 = vpack.c.b16 %v4810, %v4809
        %v4829 = vpack.c.b16 %v4812, %v4811
        %v4830 = vpack.c.b16 %v4814, %v4813
        %4847 = vmatpush.bf16.msra.mxu0 %v4822
        %4848 = vmatpush.bf16.msra.mxu0 %v4821
        %4849 = vmatpush.bf16.msra.mxu0 %v4820
        %4850 = vmatpush.bf16.msra.mxu0 %v4819
        %4851 = vmatpush.bf16.msra.mxu0 %v4818
        %4852 = vmatpush.bf16.msra.mxu0 %v4817
        %4853 = vmatpush.bf16.msra.mxu0 %v4816
        %4854 = vmatpush.bf16.msra.mxu0 %v4815
        %4855 = vmatmul.bf16.gmra.mxu0 %v4747
        %v4856 = vpop.f32.mrf.mxu0
        %v4857 = vadd.f32 0.0, %v4856
        %v4858 = vpop.f32.mrf.mxu0
        %4859 = vdwg.mxu0
        %4860 = vmatpush.bf16.msra.mxu0 %v4830
        %4861 = vmatpush.bf16.msra.mxu0 %v4829
        %4862 = vmatpush.bf16.msra.mxu0 %v4828
        %4863 = vmatpush.bf16.msra.mxu0 %v4827
        %4864 = vmatpush.bf16.msra.mxu0 %v4826
        %4865 = vmatpush.bf16.msra.mxu0 %v4825
        %4866 = vmatpush.bf16.msra.mxu0 %v4824
        %4867 = vmatpush.bf16.msra.mxu0 %v4823
        %4868 = vmatmul.bf16.gmra.mxu0 %v4748
        %v4869 = vpop.f32.mrf.mxu0
        %v4870 = vadd.f32 %v4857, %v4869
        %v4871 = vpop.f32.mrf.mxu0
        %4872 = vdwg.mxu0
        %v4873 = vadd.f32 %v4713, %v4870
        %s4874 = scalar_lea.vmem [#allocation4], 640
        %v4875 = vld [vmem:[%s4874] sm:$0xf]
        %v4876 = vld [vmem:[%s4874 + $0x4] sm:$0xf]
        %v4877 = vld [vmem:[%s4874 + $0x8] sm:$0xf]
        %v4878 = vld [vmem:[%s4874 + $0xc] sm:$0xf]
        %v4879 = vld [vmem:[%s4874 + $0x10] sm:$0xf]
        %v4880 = vld [vmem:[%s4874 + $0x14] sm:$0xf]
        %v4881 = vld [vmem:[%s4874 + $0x18] sm:$0xf]
        %v4882 = vld [vmem:[%s4874 + $0x1c] sm:$0xf]
        %v4883 = vld [vmem:[%s4874 + $0x20] sm:$0xf]
        %v4884 = vld [vmem:[%s4874 + $0x24] sm:$0xf]
        %v4885 = vld [vmem:[%s4874 + $0x28] sm:$0xf]
        %v4886 = vld [vmem:[%s4874 + $0x2c] sm:$0xf]
        %v4887 = vld [vmem:[%s4874 + $0x30] sm:$0xf]
        %v4888 = vld [vmem:[%s4874 + $0x34] sm:$0xf]
        %v4889 = vld [vmem:[%s4874 + $0x38] sm:$0xf]
        %v4890 = vld [vmem:[%s4874 + $0x3c] sm:$0xf]
        %v4891 = vld [vmem:[%s4874 + $0x40] sm:$0xf]
        %v4892 = vld [vmem:[%s4874 + $0x44] sm:$0xf]
        %v4893 = vld [vmem:[%s4874 + $0x48] sm:$0xf]
        %v4894 = vld [vmem:[%s4874 + $0x4c] sm:$0xf]
        %v4895 = vld [vmem:[%s4874 + $0x50] sm:$0xf]
        %v4896 = vld [vmem:[%s4874 + $0x54] sm:$0xf]
        %v4897 = vld [vmem:[%s4874 + $0x58] sm:$0xf]
        %v4898 = vld [vmem:[%s4874 + $0x5c] sm:$0xf]
        %v4899 = vld [vmem:[%s4874 + $0x60] sm:$0xf]
        %v4900 = vld [vmem:[%s4874 + $0x64] sm:$0xf]
        %v4901 = vld [vmem:[%s4874 + $0x68] sm:$0xf]
        %v4902 = vld [vmem:[%s4874 + $0x6c] sm:$0xf]
        %v4903 = vld [vmem:[%s4874 + $0x70] sm:$0xf]
        %v4904 = vld [vmem:[%s4874 + $0x74] sm:$0xf]
        %v4905 = vld [vmem:[%s4874 + $0x78] sm:$0xf]
        %v4906 = vld [vmem:[%s4874 + $0x7c] sm:$0xf]
        %v4907 = vrot.slane %v4127, 2
        %v4908 = vrot.slane %v4129, 3
        %v4909 = vor.u32 %v4907, %v4908
        %v4910 = vrot.slane %v4134, 2
        %v4911 = vrot.slane %v4136, 3
        %v4912 = vor.u32 %v4910, %v4911
        %v4947 = vunpack.c.l.b16 %v4875
        %v4948 = vunpack.c.l.b16 %v4876
        %v4949 = vunpack.c.l.b16 %v4877
        %v4950 = vunpack.c.l.b16 %v4878
        %v4951 = vunpack.c.l.b16 %v4879
        %v4952 = vunpack.c.l.b16 %v4880
        %v4953 = vunpack.c.l.b16 %v4881
        %v4954 = vunpack.c.l.b16 %v4882
        %v4955 = vunpack.c.l.b16 %v4883
        %v4956 = vunpack.c.l.b16 %v4884
        %v4957 = vunpack.c.l.b16 %v4885
        %v4958 = vunpack.c.l.b16 %v4886
        %v4959 = vunpack.c.l.b16 %v4887
        %v4960 = vunpack.c.l.b16 %v4888
        %v4961 = vunpack.c.l.b16 %v4889
        %v4962 = vunpack.c.l.b16 %v4890
        %v4963 = vunpack.c.l.b16 %v4891
        %v4964 = vunpack.c.l.b16 %v4892
        %v4965 = vunpack.c.l.b16 %v4893
        %v4966 = vunpack.c.l.b16 %v4894
        %v4967 = vunpack.c.l.b16 %v4895
        %v4968 = vunpack.c.l.b16 %v4896
        %v4969 = vunpack.c.l.b16 %v4897
        %v4970 = vunpack.c.l.b16 %v4898
        %v4971 = vunpack.c.l.b16 %v4899
        %v4972 = vunpack.c.l.b16 %v4900
        %v4973 = vunpack.c.l.b16 %v4901
        %v4974 = vunpack.c.l.b16 %v4902
        %v4975 = vunpack.c.l.b16 %v4903
        %v4976 = vunpack.c.l.b16 %v4904
        %v4977 = vunpack.c.l.b16 %v4905
        %v4978 = vunpack.c.l.b16 %v4906
        %v4979 = vpack.c.b16 %v4948, %v4947
        %v4980 = vpack.c.b16 %v4950, %v4949
        %v4981 = vpack.c.b16 %v4952, %v4951
        %v4982 = vpack.c.b16 %v4954, %v4953
        %v4983 = vpack.c.b16 %v4956, %v4955
        %v4984 = vpack.c.b16 %v4958, %v4957
        %v4985 = vpack.c.b16 %v4960, %v4959
        %v4986 = vpack.c.b16 %v4962, %v4961
        %v4987 = vpack.c.b16 %v4964, %v4963
        %v4988 = vpack.c.b16 %v4966, %v4965
        %v4989 = vpack.c.b16 %v4968, %v4967
        %v4990 = vpack.c.b16 %v4970, %v4969
        %v4991 = vpack.c.b16 %v4972, %v4971
        %v4992 = vpack.c.b16 %v4974, %v4973
        %v4993 = vpack.c.b16 %v4976, %v4975
        %v4994 = vpack.c.b16 %v4978, %v4977
        %5011 = vmatpush.bf16.msra.mxu0 %v4986
        %5012 = vmatpush.bf16.msra.mxu0 %v4985
        %5013 = vmatpush.bf16.msra.mxu0 %v4984
        %5014 = vmatpush.bf16.msra.mxu0 %v4983
        %5015 = vmatpush.bf16.msra.mxu0 %v4982
        %5016 = vmatpush.bf16.msra.mxu0 %v4981
        %5017 = vmatpush.bf16.msra.mxu0 %v4980
        %5018 = vmatpush.bf16.msra.mxu0 %v4979
        %5019 = vmatmul.bf16.gmra.mxu0 %v4909
        %v5020 = vpop.f32.mrf.mxu0
        %v5021 = vadd.f32 0.0, %v5020
        %v5022 = vpop.f32.mrf.mxu0
        %5023 = vdwg.mxu0
        %5024 = vmatpush.bf16.msra.mxu0 %v4994
        %5025 = vmatpush.bf16.msra.mxu0 %v4993
        %5026 = vmatpush.bf16.msra.mxu0 %v4992
        %5027 = vmatpush.bf16.msra.mxu0 %v4991
        %5028 = vmatpush.bf16.msra.mxu0 %v4990
        %5029 = vmatpush.bf16.msra.mxu0 %v4989
        %5030 = vmatpush.bf16.msra.mxu0 %v4988
        %5031 = vmatpush.bf16.msra.mxu0 %v4987
        %5032 = vmatmul.bf16.gmra.mxu0 %v4912
        %v5033 = vpop.f32.mrf.mxu0
        %v5034 = vadd.f32 %v5021, %v5033
        %v5035 = vpop.f32.mrf.mxu0
        %5036 = vdwg.mxu0
        %v5037 = vadd.f32 %v4873, %v5034
        %s5038 = scalar_lea.vmem [#allocation4], 768
        %v5039 = vld [vmem:[%s5038] sm:$0xf]
        %v5040 = vld [vmem:[%s5038 + $0x4] sm:$0xf]
        %v5041 = vld [vmem:[%s5038 + $0x8] sm:$0xf]
        %v5042 = vld [vmem:[%s5038 + $0xc] sm:$0xf]
        %v5043 = vld [vmem:[%s5038 + $0x10] sm:$0xf]
        %v5044 = vld [vmem:[%s5038 + $0x14] sm:$0xf]
        %v5045 = vld [vmem:[%s5038 + $0x18] sm:$0xf]
        %v5046 = vld [vmem:[%s5038 + $0x1c] sm:$0xf]
        %v5047 = vld [vmem:[%s5038 + $0x20] sm:$0xf]
        %v5048 = vld [vmem:[%s5038 + $0x24] sm:$0xf]
        %v5049 = vld [vmem:[%s5038 + $0x28] sm:$0xf]
        %v5050 = vld [vmem:[%s5038 + $0x2c] sm:$0xf]
        %v5051 = vld [vmem:[%s5038 + $0x30] sm:$0xf]
        %v5052 = vld [vmem:[%s5038 + $0x34] sm:$0xf]
        %v5053 = vld [vmem:[%s5038 + $0x38] sm:$0xf]
        %v5054 = vld [vmem:[%s5038 + $0x3c] sm:$0xf]
        %v5055 = vld [vmem:[%s5038 + $0x40] sm:$0xf]
        %v5056 = vld [vmem:[%s5038 + $0x44] sm:$0xf]
        %v5057 = vld [vmem:[%s5038 + $0x48] sm:$0xf]
        %v5058 = vld [vmem:[%s5038 + $0x4c] sm:$0xf]
        %v5059 = vld [vmem:[%s5038 + $0x50] sm:$0xf]
        %v5060 = vld [vmem:[%s5038 + $0x54] sm:$0xf]
        %v5061 = vld [vmem:[%s5038 + $0x58] sm:$0xf]
        %v5062 = vld [vmem:[%s5038 + $0x5c] sm:$0xf]
        %v5063 = vld [vmem:[%s5038 + $0x60] sm:$0xf]
        %v5064 = vld [vmem:[%s5038 + $0x64] sm:$0xf]
        %v5065 = vld [vmem:[%s5038 + $0x68] sm:$0xf]
        %v5066 = vld [vmem:[%s5038 + $0x6c] sm:$0xf]
        %v5067 = vld [vmem:[%s5038 + $0x70] sm:$0xf]
        %v5068 = vld [vmem:[%s5038 + $0x74] sm:$0xf]
        %v5069 = vld [vmem:[%s5038 + $0x78] sm:$0xf]
        %v5070 = vld [vmem:[%s5038 + $0x7c] sm:$0xf]
        %v5071 = vrot.slane %v4124, 3
        %v5072 = vrot.slane %v4125, 3
        %v5107 = vunpack.c.l.b16 %v5039
        %v5108 = vunpack.c.l.b16 %v5040
        %v5109 = vunpack.c.l.b16 %v5041
        %v5110 = vunpack.c.l.b16 %v5042
        %v5111 = vunpack.c.l.b16 %v5043
        %v5112 = vunpack.c.l.b16 %v5044
        %v5113 = vunpack.c.l.b16 %v5045
        %v5114 = vunpack.c.l.b16 %v5046
        %v5115 = vunpack.c.l.b16 %v5047
        %v5116 = vunpack.c.l.b16 %v5048
        %v5117 = vunpack.c.l.b16 %v5049
        %v5118 = vunpack.c.l.b16 %v5050
        %v5119 = vunpack.c.l.b16 %v5051
        %v5120 = vunpack.c.l.b16 %v5052
        %v5121 = vunpack.c.l.b16 %v5053
        %v5122 = vunpack.c.l.b16 %v5054
        %v5123 = vunpack.c.l.b16 %v5055
        %v5124 = vunpack.c.l.b16 %v5056
        %v5125 = vunpack.c.l.b16 %v5057
        %v5126 = vunpack.c.l.b16 %v5058
        %v5127 = vunpack.c.l.b16 %v5059
        %v5128 = vunpack.c.l.b16 %v5060
        %v5129 = vunpack.c.l.b16 %v5061
        %v5130 = vunpack.c.l.b16 %v5062
        %v5131 = vunpack.c.l.b16 %v5063
        %v5132 = vunpack.c.l.b16 %v5064
        %v5133 = vunpack.c.l.b16 %v5065
        %v5134 = vunpack.c.l.b16 %v5066
        %v5135 = vunpack.c.l.b16 %v5067
        %v5136 = vunpack.c.l.b16 %v5068
        %v5137 = vunpack.c.l.b16 %v5069
        %v5138 = vunpack.c.l.b16 %v5070
        %v5139 = vpack.c.b16 %v5108, %v5107
        %v5140 = vpack.c.b16 %v5110, %v5109
        %v5141 = vpack.c.b16 %v5112, %v5111
        %v5142 = vpack.c.b16 %v5114, %v5113
        %v5143 = vpack.c.b16 %v5116, %v5115
        %v5144 = vpack.c.b16 %v5118, %v5117
        %v5145 = vpack.c.b16 %v5120, %v5119
        %v5146 = vpack.c.b16 %v5122, %v5121
        %v5147 = vpack.c.b16 %v5124, %v5123
        %v5148 = vpack.c.b16 %v5126, %v5125
        %v5149 = vpack.c.b16 %v5128, %v5127
        %v5150 = vpack.c.b16 %v5130, %v5129
        %v5151 = vpack.c.b16 %v5132, %v5131
        %v5152 = vpack.c.b16 %v5134, %v5133
        %v5153 = vpack.c.b16 %v5136, %v5135
        %v5154 = vpack.c.b16 %v5138, %v5137
        %5171 = vmatpush.bf16.msra.mxu0 %v5146
        %5172 = vmatpush.bf16.msra.mxu0 %v5145
        %5173 = vmatpush.bf16.msra.mxu0 %v5144
        %5174 = vmatpush.bf16.msra.mxu0 %v5143
        %5175 = vmatpush.bf16.msra.mxu0 %v5142
        %5176 = vmatpush.bf16.msra.mxu0 %v5141
        %5177 = vmatpush.bf16.msra.mxu0 %v5140
        %5178 = vmatpush.bf16.msra.mxu0 %v5139
        %5179 = vmatmul.bf16.gmra.mxu0 %v5071
        %v5180 = vpop.f32.mrf.mxu0
        %v5181 = vadd.f32 0.0, %v5180
        %v5182 = vpop.f32.mrf.mxu0
        %5183 = vdwg.mxu0
        %5184 = vmatpush.bf16.msra.mxu0 %v5154
        %5185 = vmatpush.bf16.msra.mxu0 %v5153
        %5186 = vmatpush.bf16.msra.mxu0 %v5152
        %5187 = vmatpush.bf16.msra.mxu0 %v5151
        %5188 = vmatpush.bf16.msra.mxu0 %v5150
        %5189 = vmatpush.bf16.msra.mxu0 %v5149
        %5190 = vmatpush.bf16.msra.mxu0 %v5148
        %5191 = vmatpush.bf16.msra.mxu0 %v5147
        %5192 = vmatmul.bf16.gmra.mxu0 %v5072
        %v5193 = vpop.f32.mrf.mxu0
        %v5194 = vadd.f32 %v5181, %v5193
        %v5195 = vpop.f32.mrf.mxu0
        %5196 = vdwg.mxu0
        %v5197 = vadd.f32 %v5037, %v5194
        %v5198 = vld [vmem:[%s15] sm:$0x1]
        %v5200 = vperm.slane %v5198, 0
        %v5202 = vadd.f32 %v5197, %v5200
        %vm5203 = vcmp.ge.f32.partialorder %v5202, 0.0
        %v5204 = vmul.f32 %v5202, 0.2
        %v5205 = vsel %vm5203, %v5202, %v5204
        %v5206 = vld [vmem:[%s5] sm:$0xff]
        %v5207 = vld [vmem:[%s5 + $0x8] sm:$0xff]
        %v5208 = vld [vmem:[%s5 + $0x10] sm:$0xff]
        %v5209 = vld [vmem:[%s5 + $0x18] sm:$0x7f]
        %vm5210 = vcmask 64512
        %v5212 = vsel %vm5210, %v5206, 0
        %v5215 = vsel %vm5210, %v5207, 0
        %v5218 = vsel %vm5210, %v5208, 0
        %v5221 = vsel %vm5210, %v5209, 0
        %5223 = vmatpush.msra.mxu0 0.0
        %5224 = vmatpush.msra.mxu0 0.0
        %5225 = vmatpush.msra.mxu0 0.0
        %5226 = vmatpush.msra.mxu0 0.0
        %5227 = vmatpush.msra.mxu0 0.0
        %5228 = vmatpush.msra.mxu0 0.0
        %5229 = vmatpush.msra.mxu0 0.0
        %5230 = vmatpush.msra.mxu0 0.0
        %5231 = vmatpush.msra.mxu0 0.0
        %5232 = vmatpush.msra.mxu0 0.0
        %5233 = vmatpush.msra.mxu0 0.0
        %5234 = vmatpush.msra.mxu0 0.0
        %5235 = vmatpush.msra.mxu0 0.0
        %5236 = vmatpush.msra.mxu0 0.0
        %5237 = vmatpush.msra.mxu0 0.0
        %5238 = vmatpush.msra.mxu0 %v5205
        %5239 = vmatmul.f32.gmra.mxu0 %v5212
        %v5240 = vpop.f32.mrf.mxu0
        %v5241 = vadd.f32 0.0, %v5240
        %5242 = vmatmul.f32.gmra.mxu0 %v5215
        %v5243 = vpop.f32.mrf.mxu0
        %v5244 = vadd.f32 0.0, %v5243
        %5245 = vmatmul.f32.gmra.mxu0 %v5218
        %v5246 = vpop.f32.mrf.mxu0
        %v5247 = vadd.f32 0.0, %v5246
        %5248 = vmatmul.f32.gmra.mxu0 %v5221
        %v5249 = vpop.f32.mrf.mxu0
        %v5250 = vadd.f32 0.0, %v5249
        %5251 = vdwg.mxu0
        %v5252 = vpack.c.bf16 %v5241, %v5241
        %v5253 = vpack.c.bf16 %v5244, %v5244
        %v5254 = vpack.c.bf16 %v5247, %v5247
        %v5255 = vpack.c.bf16 %v5250, %v5250
        %v5256 = vld [vmem:[%s16] sm:$0xf]
        %v5257 = vld [vmem:[%s16 + $0x4] sm:$0xf]
        %v5258 = vld [vmem:[%s16 + $0x8] sm:$0xf]
        %v5259 = vld [vmem:[%s16 + $0xc] sm:$0xf]
        %v5260 = vld [vmem:[%s16 + $0x10] sm:$0xf]
        %v5261 = vld [vmem:[%s16 + $0x14] sm:$0xf]
        %v5262 = vld [vmem:[%s16 + $0x18] sm:$0xf]
        %v5263 = vld [vmem:[%s16 + $0x1c] sm:$0xf]
        %v5264 = vld [vmem:[%s16 + $0x20] sm:$0xf]
        %v5265 = vld [vmem:[%s16 + $0x24] sm:$0xf]
        %v5266 = vld [vmem:[%s16 + $0x28] sm:$0xf]
        %v5267 = vld [vmem:[%s16 + $0x2c] sm:$0xf]
        %v5268 = vld [vmem:[%s16 + $0x30] sm:$0xf]
        %v5269 = vld [vmem:[%s16 + $0x34] sm:$0xf]
        %v5270 = vld [vmem:[%s16 + $0x38] sm:$0xf]
        %v5271 = vld [vmem:[%s16 + $0x3c] sm:$0xf]
        %s5272 = scalar_lea.vmem %s16, 64
        %v5273 = vld [vmem:[%s5272] sm:$0xf]
        %v5274 = vld [vmem:[%s5272 + $0x4] sm:$0xf]
        %v5275 = vld [vmem:[%s5272 + $0x8] sm:$0xf]
        %v5276 = vld [vmem:[%s5272 + $0xc] sm:$0xf]
        %v5277 = vld [vmem:[%s5272 + $0x10] sm:$0xf]
        %v5278 = vld [vmem:[%s5272 + $0x14] sm:$0xf]
        %v5279 = vld [vmem:[%s5272 + $0x18] sm:$0xf]
        %v5280 = vld [vmem:[%s5272 + $0x1c] sm:$0xf]
        %v5281 = vld [vmem:[%s5272 + $0x20] sm:$0xf]
        %v5282 = vld [vmem:[%s5272 + $0x24] sm:$0xf]
        %v5283 = vld [vmem:[%s5272 + $0x28] sm:$0xf]
        %v5284 = vld [vmem:[%s5272 + $0x2c] sm:$0xf]
        %v5285 = vld [vmem:[%s5272 + $0x30] sm:$0xf]
        %v5286 = vld [vmem:[%s5272 + $0x34] sm:$0xf]
        %v5287 = vld [vmem:[%s5272 + $0x38] sm:$0xf]
        %v5288 = vld [vmem:[%s5272 + $0x3c] sm:$0xf]
        %v5293 = vunpack.c.l.b16 %v5252
        %v5294 = vunpack.c.l.b16 %v5253
        %v5295 = vunpack.c.l.b16 %v5254
        %v5296 = vunpack.c.l.b16 %v5255
        %v5297 = vpack.c.b16 %v5294, %v5293
        %v5298 = vpack.c.b16 %v5296, %v5295
        %vm5299 = vsmask.f32 7424
        %v5301 = vshrl.u32 %v5297, 16
        %v5303 = vshll.u32 %v5297, 16
        %v5305 = vrot.slane %v5303, 1
        %v5306 = vor.u32 %v5301, %v5305
        %v5308 = vshll.u32 %v5298, 16
        %v5310 = vrot.slane %v5308, 1
        %v5311 = vsel %vm5299, %v5306, %v5310
        %v5312 = vshrl.u32 %v5298, 16
        %v5314 = vor.u32 %v5312, %v5310
        %v5333 = vunpack.c.l.b16 %v5273
        %v5334 = vunpack.c.l.b16 %v5274
        %v5335 = vunpack.c.l.b16 %v5275
        %v5336 = vunpack.c.l.b16 %v5276
        %v5337 = vunpack.c.l.b16 %v5277
        %v5338 = vunpack.c.l.b16 %v5278
        %v5339 = vunpack.c.l.b16 %v5279
        %v5340 = vunpack.c.l.b16 %v5280
        %v5341 = vunpack.c.l.b16 %v5281
        %v5342 = vunpack.c.l.b16 %v5282
        %v5343 = vunpack.c.l.b16 %v5283
        %v5344 = vunpack.c.l.b16 %v5284
        %v5345 = vunpack.c.l.b16 %v5285
        %v5346 = vunpack.c.l.b16 %v5286
        %v5347 = vunpack.c.l.b16 %v5287
        %v5348 = vunpack.c.l.b16 %v5288
        %v5349 = vpack.c.b16 %v5334, %v5333
        %v5350 = vpack.c.b16 %v5336, %v5335
        %v5351 = vpack.c.b16 %v5338, %v5337
        %v5352 = vpack.c.b16 %v5340, %v5339
        %v5353 = vpack.c.b16 %v5342, %v5341
        %v5354 = vpack.c.b16 %v5344, %v5343
        %v5355 = vpack.c.b16 %v5346, %v5345
        %v5356 = vpack.c.b16 %v5348, %v5347
        %5365 = vmatpush.bf16.msra.mxu0 %v5356
        %5366 = vmatpush.bf16.msra.mxu0 %v5355
        %5367 = vmatpush.bf16.msra.mxu0 %v5354
        %5368 = vmatpush.bf16.msra.mxu0 %v5353
        %5369 = vmatpush.bf16.msra.mxu0 %v5352
        %5370 = vmatpush.bf16.msra.mxu0 %v5351
        %5371 = vmatpush.bf16.msra.mxu0 %v5350
        %5372 = vmatpush.bf16.msra.mxu0 %v5349
        %5373 = vmatmul.bf16.gmra.mxu0 %v5311
        %v5374 = vpop.f32.mrf.mxu0
        %v5375 = vadd.f32 0.0, %v5374
        %v5376 = vpop.f32.mrf.mxu0
        %v5377 = vadd.f32 0.0, %v5376
        %5378 = vmatmul.bf16.gmra.mxu0 %v5314
        %v5379 = vpop.f32.mrf.mxu0
        %v5380 = vadd.f32 0.0, %v5379
        %v5381 = vpop.f32.mrf.mxu0
        %v5382 = vadd.f32 0.0, %v5381
        %5383 = vdwg.mxu0
        %v5402 = vunpack.c.l.b16 %v5256
        %v5403 = vunpack.c.l.b16 %v5257
        %v5404 = vunpack.c.l.b16 %v5258
        %v5405 = vunpack.c.l.b16 %v5259
        %v5406 = vunpack.c.l.b16 %v5260
        %v5407 = vunpack.c.l.b16 %v5261
        %v5408 = vunpack.c.l.b16 %v5262
        %v5409 = vunpack.c.l.b16 %v5263
        %v5410 = vunpack.c.l.b16 %v5264
        %v5411 = vunpack.c.l.b16 %v5265
        %v5412 = vunpack.c.l.b16 %v5266
        %v5413 = vunpack.c.l.b16 %v5267
        %v5414 = vunpack.c.l.b16 %v5268
        %v5415 = vunpack.c.l.b16 %v5269
        %v5416 = vunpack.c.l.b16 %v5270
        %v5417 = vunpack.c.l.b16 %v5271
        %v5418 = vpack.c.b16 %v5403, %v5402
        %v5419 = vpack.c.b16 %v5405, %v5404
        %v5420 = vpack.c.b16 %v5407, %v5406
        %v5421 = vpack.c.b16 %v5409, %v5408
        %v5422 = vpack.c.b16 %v5411, %v5410
        %v5423 = vpack.c.b16 %v5413, %v5412
        %v5424 = vpack.c.b16 %v5415, %v5414
        %v5425 = vpack.c.b16 %v5417, %v5416
        %5434 = vmatpush.bf16.msra.mxu0 %v5425
        %5435 = vmatpush.bf16.msra.mxu0 %v5424
        %5436 = vmatpush.bf16.msra.mxu0 %v5423
        %5437 = vmatpush.bf16.msra.mxu0 %v5422
        %5438 = vmatpush.bf16.msra.mxu0 %v5421
        %5439 = vmatpush.bf16.msra.mxu0 %v5420
        %5440 = vmatpush.bf16.msra.mxu0 %v5419
        %5441 = vmatpush.bf16.msra.mxu0 %v5418
        %5442 = vmatmul.bf16.gmra.mxu0 %v5297
        %v5443 = vpop.f32.mrf.mxu0
        %v5444 = vadd.f32 %v5375, %v5443
        %v5445 = vpop.f32.mrf.mxu0
        %v5446 = vadd.f32 %v5377, %v5445
        %5447 = vmatmul.bf16.gmra.mxu0 %v5298
        %v5448 = vpop.f32.mrf.mxu0
        %v5449 = vadd.f32 %v5380, %v5448
        %v5450 = vpop.f32.mrf.mxu0
        %v5451 = vadd.f32 %v5382, %v5450
        %5452 = vdwg.mxu0
        %s5453 = scalar_lea.vmem %s16, 128
        %v5454 = vld [vmem:[%s5453] sm:$0xf]
        %v5455 = vld [vmem:[%s5453 + $0x4] sm:$0xf]
        %v5456 = vld [vmem:[%s5453 + $0x8] sm:$0xf]
        %v5457 = vld [vmem:[%s5453 + $0xc] sm:$0xf]
        %v5458 = vld [vmem:[%s5453 + $0x10] sm:$0xf]
        %v5459 = vld [vmem:[%s5453 + $0x14] sm:$0xf]
        %v5460 = vld [vmem:[%s5453 + $0x18] sm:$0xf]
        %v5461 = vld [vmem:[%s5453 + $0x1c] sm:$0xf]
        %v5462 = vld [vmem:[%s5453 + $0x20] sm:$0xf]
        %v5463 = vld [vmem:[%s5453 + $0x24] sm:$0xf]
        %v5464 = vld [vmem:[%s5453 + $0x28] sm:$0xf]
        %v5465 = vld [vmem:[%s5453 + $0x2c] sm:$0xf]
        %v5466 = vld [vmem:[%s5453 + $0x30] sm:$0xf]
        %v5467 = vld [vmem:[%s5453 + $0x34] sm:$0xf]
        %v5468 = vld [vmem:[%s5453 + $0x38] sm:$0xf]
        %v5469 = vld [vmem:[%s5453 + $0x3c] sm:$0xf]
        %vm5470 = vcmask 1046528
        %v5471 = vrot.slane %v5297, 1
        %v5472 = vrot.slane %v5298, 1
        %v5473 = vsel %vm5470, %v5471, %v5472
        %v5492 = vunpack.c.l.b16 %v5454
        %v5493 = vunpack.c.l.b16 %v5455
        %v5494 = vunpack.c.l.b16 %v5456
        %v5495 = vunpack.c.l.b16 %v5457
        %v5496 = vunpack.c.l.b16 %v5458
        %v5497 = vunpack.c.l.b16 %v5459
        %v5498 = vunpack.c.l.b16 %v5460
        %v5499 = vunpack.c.l.b16 %v5461
        %v5500 = vunpack.c.l.b16 %v5462
        %v5501 = vunpack.c.l.b16 %v5463
        %v5502 = vunpack.c.l.b16 %v5464
        %v5503 = vunpack.c.l.b16 %v5465
        %v5504 = vunpack.c.l.b16 %v5466
        %v5505 = vunpack.c.l.b16 %v5467
        %v5506 = vunpack.c.l.b16 %v5468
        %v5507 = vunpack.c.l.b16 %v5469
        %v5508 = vpack.c.b16 %v5493, %v5492
        %v5509 = vpack.c.b16 %v5495, %v5494
        %v5510 = vpack.c.b16 %v5497, %v5496
        %v5511 = vpack.c.b16 %v5499, %v5498
        %v5512 = vpack.c.b16 %v5501, %v5500
        %v5513 = vpack.c.b16 %v5503, %v5502
        %v5514 = vpack.c.b16 %v5505, %v5504
        %v5515 = vpack.c.b16 %v5507, %v5506
        %5524 = vmatpush.bf16.msra.mxu0 %v5515
        %5525 = vmatpush.bf16.msra.mxu0 %v5514
        %5526 = vmatpush.bf16.msra.mxu0 %v5513
        %5527 = vmatpush.bf16.msra.mxu0 %v5512
        %5528 = vmatpush.bf16.msra.mxu0 %v5511
        %5529 = vmatpush.bf16.msra.mxu0 %v5510
        %5530 = vmatpush.bf16.msra.mxu0 %v5509
        %5531 = vmatpush.bf16.msra.mxu0 %v5508
        %5532 = vmatmul.bf16.gmra.mxu0 %v5473
        %v5533 = vpop.f32.mrf.mxu0
        %v5534 = vadd.f32 0.0, %v5533
        %v5535 = vpop.f32.mrf.mxu0
        %v5536 = vadd.f32 0.0, %v5535
        %5537 = vmatmul.bf16.gmra.mxu0 %v5472
        %v5538 = vpop.f32.mrf.mxu0
        %v5539 = vadd.f32 0.0, %v5538
        %v5540 = vpop.f32.mrf.mxu0
        %v5541 = vadd.f32 0.0, %v5540
        %5542 = vdwg.mxu0
        %v5543 = vadd.f32 %v5444, %v5534
        %v5544 = vadd.f32 %v5446, %v5536
        %v5545 = vadd.f32 %v5449, %v5539
        %v5546 = vadd.f32 %v5451, %v5541
        %s5547 = scalar_lea.vmem %s16, 192
        %v5548 = vld [vmem:[%s5547] sm:$0xf]
        %v5549 = vld [vmem:[%s5547 + $0x4] sm:$0xf]
        %v5550 = vld [vmem:[%s5547 + $0x8] sm:$0xf]
        %v5551 = vld [vmem:[%s5547 + $0xc] sm:$0xf]
        %v5552 = vld [vmem:[%s5547 + $0x10] sm:$0xf]
        %v5553 = vld [vmem:[%s5547 + $0x14] sm:$0xf]
        %v5554 = vld [vmem:[%s5547 + $0x18] sm:$0xf]
        %v5555 = vld [vmem:[%s5547 + $0x1c] sm:$0xf]
        %v5556 = vld [vmem:[%s5547 + $0x20] sm:$0xf]
        %v5557 = vld [vmem:[%s5547 + $0x24] sm:$0xf]
        %v5558 = vld [vmem:[%s5547 + $0x28] sm:$0xf]
        %v5559 = vld [vmem:[%s5547 + $0x2c] sm:$0xf]
        %v5560 = vld [vmem:[%s5547 + $0x30] sm:$0xf]
        %v5561 = vld [vmem:[%s5547 + $0x34] sm:$0xf]
        %v5562 = vld [vmem:[%s5547 + $0x38] sm:$0xf]
        %v5563 = vld [vmem:[%s5547 + $0x3c] sm:$0xf]
        %vm5564 = vsmask.f32 6400
        %v5565 = vrot.slane %v5301, 1
        %v5566 = vrot.slane %v5303, 2
        %v5567 = vor.u32 %v5565, %v5566
        %v5568 = vrot.slane %v5312, 1
        %v5569 = vrot.slane %v5308, 2
        %v5570 = vor.u32 %v5568, %v5569
        %v5571 = vsel %vm5564, %v5567, %v5570
        %v5590 = vunpack.c.l.b16 %v5548
        %v5591 = vunpack.c.l.b16 %v5549
        %v5592 = vunpack.c.l.b16 %v5550
        %v5593 = vunpack.c.l.b16 %v5551
        %v5594 = vunpack.c.l.b16 %v5552
        %v5595 = vunpack.c.l.b16 %v5553
        %v5596 = vunpack.c.l.b16 %v5554
        %v5597 = vunpack.c.l.b16 %v5555
        %v5598 = vunpack.c.l.b16 %v5556
        %v5599 = vunpack.c.l.b16 %v5557
        %v5600 = vunpack.c.l.b16 %v5558
        %v5601 = vunpack.c.l.b16 %v5559
        %v5602 = vunpack.c.l.b16 %v5560
        %v5603 = vunpack.c.l.b16 %v5561
        %v5604 = vunpack.c.l.b16 %v5562
        %v5605 = vunpack.c.l.b16 %v5563
        %v5606 = vpack.c.b16 %v5591, %v5590
        %v5607 = vpack.c.b16 %v5593, %v5592
        %v5608 = vpack.c.b16 %v5595, %v5594
        %v5609 = vpack.c.b16 %v5597, %v5596
        %v5610 = vpack.c.b16 %v5599, %v5598
        %v5611 = vpack.c.b16 %v5601, %v5600
        %v5612 = vpack.c.b16 %v5603, %v5602
        %v5613 = vpack.c.b16 %v5605, %v5604
        %5622 = vmatpush.bf16.msra.mxu0 %v5613
        %5623 = vmatpush.bf16.msra.mxu0 %v5612
        %5624 = vmatpush.bf16.msra.mxu0 %v5611
        %5625 = vmatpush.bf16.msra.mxu0 %v5610
        %5626 = vmatpush.bf16.msra.mxu0 %v5609
        %5627 = vmatpush.bf16.msra.mxu0 %v5608
        %5628 = vmatpush.bf16.msra.mxu0 %v5607
        %5629 = vmatpush.bf16.msra.mxu0 %v5606
        %5630 = vmatmul.bf16.gmra.mxu0 %v5571
        %v5631 = vpop.f32.mrf.mxu0
        %v5632 = vadd.f32 0.0, %v5631
        %v5633 = vpop.f32.mrf.mxu0
        %v5634 = vadd.f32 0.0, %v5633
        %5635 = vmatmul.bf16.gmra.mxu0 %v5570
        %v5636 = vpop.f32.mrf.mxu0
        %v5637 = vadd.f32 0.0, %v5636
        %v5638 = vpop.f32.mrf.mxu0
        %v5639 = vadd.f32 0.0, %v5638
        %5640 = vdwg.mxu0
        %v5641 = vadd.f32 %v5543, %v5632
        %v5642 = vadd.f32 %v5544, %v5634
        %v5643 = vadd.f32 %v5545, %v5637
        %v5644 = vadd.f32 %v5546, %v5639
        %s5645 = scalar_lea.vmem %s16, 256
        %v5646 = vld [vmem:[%s5645] sm:$0xf]
        %v5647 = vld [vmem:[%s5645 + $0x4] sm:$0xf]
        %v5648 = vld [vmem:[%s5645 + $0x8] sm:$0xf]
        %v5649 = vld [vmem:[%s5645 + $0xc] sm:$0xf]
        %v5650 = vld [vmem:[%s5645 + $0x10] sm:$0xf]
        %v5651 = vld [vmem:[%s5645 + $0x14] sm:$0xf]
        %v5652 = vld [vmem:[%s5645 + $0x18] sm:$0xf]
        %v5653 = vld [vmem:[%s5645 + $0x1c] sm:$0xf]
        %v5654 = vld [vmem:[%s5645 + $0x20] sm:$0xf]
        %v5655 = vld [vmem:[%s5645 + $0x24] sm:$0xf]
        %v5656 = vld [vmem:[%s5645 + $0x28] sm:$0xf]
        %v5657 = vld [vmem:[%s5645 + $0x2c] sm:$0xf]
        %v5658 = vld [vmem:[%s5645 + $0x30] sm:$0xf]
        %v5659 = vld [vmem:[%s5645 + $0x34] sm:$0xf]
        %v5660 = vld [vmem:[%s5645 + $0x38] sm:$0xf]
        %v5661 = vld [vmem:[%s5645 + $0x3c] sm:$0xf]
        %v5662 = vrot.slane %v5297, 2
        %v5663 = vrot.slane %v5298, 2
        %v5664 = vsel %vm989, %v5662, %v5663
        %v5683 = vunpack.c.l.b16 %v5646
        %v5684 = vunpack.c.l.b16 %v5647
        %v5685 = vunpack.c.l.b16 %v5648
        %v5686 = vunpack.c.l.b16 %v5649
        %v5687 = vunpack.c.l.b16 %v5650
        %v5688 = vunpack.c.l.b16 %v5651
        %v5689 = vunpack.c.l.b16 %v5652
        %v5690 = vunpack.c.l.b16 %v5653
        %v5691 = vunpack.c.l.b16 %v5654
        %v5692 = vunpack.c.l.b16 %v5655
        %v5693 = vunpack.c.l.b16 %v5656
        %v5694 = vunpack.c.l.b16 %v5657
        %v5695 = vunpack.c.l.b16 %v5658
        %v5696 = vunpack.c.l.b16 %v5659
        %v5697 = vunpack.c.l.b16 %v5660
        %v5698 = vunpack.c.l.b16 %v5661
        %v5699 = vpack.c.b16 %v5684, %v5683
        %v5700 = vpack.c.b16 %v5686, %v5685
        %v5701 = vpack.c.b16 %v5688, %v5687
        %v5702 = vpack.c.b16 %v5690, %v5689
        %v5703 = vpack.c.b16 %v5692, %v5691
        %v5704 = vpack.c.b16 %v5694, %v5693
        %v5705 = vpack.c.b16 %v5696, %v5695
        %v5706 = vpack.c.b16 %v5698, %v5697
        %5715 = vmatpush.bf16.msra.mxu0 %v5706
        %5716 = vmatpush.bf16.msra.mxu0 %v5705
        %5717 = vmatpush.bf16.msra.mxu0 %v5704
        %5718 = vmatpush.bf16.msra.mxu0 %v5703
        %5719 = vmatpush.bf16.msra.mxu0 %v5702
        %5720 = vmatpush.bf16.msra.mxu0 %v5701
        %5721 = vmatpush.bf16.msra.mxu0 %v5700
        %5722 = vmatpush.bf16.msra.mxu0 %v5699
        %5723 = vmatmul.bf16.gmra.mxu0 %v5664
        %v5724 = vpop.f32.mrf.mxu0
        %v5725 = vadd.f32 0.0, %v5724
        %v5726 = vpop.f32.mrf.mxu0
        %v5727 = vadd.f32 0.0, %v5726
        %5728 = vmatmul.bf16.gmra.mxu0 %v5663
        %v5729 = vpop.f32.mrf.mxu0
        %v5730 = vadd.f32 0.0, %v5729
        %v5731 = vpop.f32.mrf.mxu0
        %v5732 = vadd.f32 0.0, %v5731
        %5733 = vdwg.mxu0
        %v5734 = vadd.f32 %v5641, %v5725
        %v5735 = vadd.f32 %v5642, %v5727
        %v5736 = vadd.f32 %v5643, %v5730
        %v5737 = vadd.f32 %v5644, %v5732
        %s5738 = scalar_lea.vmem %s16, 320
        %v5739 = vld [vmem:[%s5738] sm:$0xf]
        %v5740 = vld [vmem:[%s5738 + $0x4] sm:$0xf]
        %v5741 = vld [vmem:[%s5738 + $0x8] sm:$0xf]
        %v5742 = vld [vmem:[%s5738 + $0xc] sm:$0xf]
        %v5743 = vld [vmem:[%s5738 + $0x10] sm:$0xf]
        %v5744 = vld [vmem:[%s5738 + $0x14] sm:$0xf]
        %v5745 = vld [vmem:[%s5738 + $0x18] sm:$0xf]
        %v5746 = vld [vmem:[%s5738 + $0x1c] sm:$0xf]
        %v5747 = vld [vmem:[%s5738 + $0x20] sm:$0xf]
        %v5748 = vld [vmem:[%s5738 + $0x24] sm:$0xf]
        %v5749 = vld [vmem:[%s5738 + $0x28] sm:$0xf]
        %v5750 = vld [vmem:[%s5738 + $0x2c] sm:$0xf]
        %v5751 = vld [vmem:[%s5738 + $0x30] sm:$0xf]
        %v5752 = vld [vmem:[%s5738 + $0x34] sm:$0xf]
        %v5753 = vld [vmem:[%s5738 + $0x38] sm:$0xf]
        %v5754 = vld [vmem:[%s5738 + $0x3c] sm:$0xf]
        %v5755 = vrot.slane %v5301, 2
        %v5756 = vrot.slane %v5303, 3
        %v5757 = vor.u32 %v5755, %v5756
        %v5758 = vrot.slane %v5312, 2
        %v5759 = vrot.slane %v5308, 3
        %v5760 = vor.u32 %v5758, %v5759
        %v5761 = vsel %vm1045, %v5757, %v5760
        %v5780 = vunpack.c.l.b16 %v5739
        %v5781 = vunpack.c.l.b16 %v5740
        %v5782 = vunpack.c.l.b16 %v5741
        %v5783 = vunpack.c.l.b16 %v5742
        %v5784 = vunpack.c.l.b16 %v5743
        %v5785 = vunpack.c.l.b16 %v5744
        %v5786 = vunpack.c.l.b16 %v5745
        %v5787 = vunpack.c.l.b16 %v5746
        %v5788 = vunpack.c.l.b16 %v5747
        %v5789 = vunpack.c.l.b16 %v5748
        %v5790 = vunpack.c.l.b16 %v5749
        %v5791 = vunpack.c.l.b16 %v5750
        %v5792 = vunpack.c.l.b16 %v5751
        %v5793 = vunpack.c.l.b16 %v5752
        %v5794 = vunpack.c.l.b16 %v5753
        %v5795 = vunpack.c.l.b16 %v5754
        %v5796 = vpack.c.b16 %v5781, %v5780
        %v5797 = vpack.c.b16 %v5783, %v5782
        %v5798 = vpack.c.b16 %v5785, %v5784
        %v5799 = vpack.c.b16 %v5787, %v5786
        %v5800 = vpack.c.b16 %v5789, %v5788
        %v5801 = vpack.c.b16 %v5791, %v5790
        %v5802 = vpack.c.b16 %v5793, %v5792
        %v5803 = vpack.c.b16 %v5795, %v5794
        %5812 = vmatpush.bf16.msra.mxu0 %v5803
        %5813 = vmatpush.bf16.msra.mxu0 %v5802
        %5814 = vmatpush.bf16.msra.mxu0 %v5801
        %5815 = vmatpush.bf16.msra.mxu0 %v5800
        %5816 = vmatpush.bf16.msra.mxu0 %v5799
        %5817 = vmatpush.bf16.msra.mxu0 %v5798
        %5818 = vmatpush.bf16.msra.mxu0 %v5797
        %5819 = vmatpush.bf16.msra.mxu0 %v5796
        %5820 = vmatmul.bf16.gmra.mxu0 %v5761
        %v5821 = vpop.f32.mrf.mxu0
        %v5822 = vadd.f32 0.0, %v5821
        %v5823 = vpop.f32.mrf.mxu0
        %v5824 = vadd.f32 0.0, %v5823
        %5825 = vmatmul.bf16.gmra.mxu0 %v5760
        %v5826 = vpop.f32.mrf.mxu0
        %v5827 = vadd.f32 0.0, %v5826
        %v5828 = vpop.f32.mrf.mxu0
        %v5829 = vadd.f32 0.0, %v5828
        %5830 = vdwg.mxu0
        %v5831 = vadd.f32 %v5734, %v5822
        %v5832 = vadd.f32 %v5735, %v5824
        %v5833 = vadd.f32 %v5736, %v5827
        %v5834 = vadd.f32 %v5737, %v5829
        %s5835 = scalar_lea.vmem %s16, 384
        %v5836 = vld [vmem:[%s5835] sm:$0xf]
        %v5837 = vld [vmem:[%s5835 + $0x4] sm:$0xf]
        %v5838 = vld [vmem:[%s5835 + $0x8] sm:$0xf]
        %v5839 = vld [vmem:[%s5835 + $0xc] sm:$0xf]
        %v5840 = vld [vmem:[%s5835 + $0x10] sm:$0xf]
        %v5841 = vld [vmem:[%s5835 + $0x14] sm:$0xf]
        %v5842 = vld [vmem:[%s5835 + $0x18] sm:$0xf]
        %v5843 = vld [vmem:[%s5835 + $0x1c] sm:$0xf]
        %v5844 = vld [vmem:[%s5835 + $0x20] sm:$0xf]
        %v5845 = vld [vmem:[%s5835 + $0x24] sm:$0xf]
        %v5846 = vld [vmem:[%s5835 + $0x28] sm:$0xf]
        %v5847 = vld [vmem:[%s5835 + $0x2c] sm:$0xf]
        %v5848 = vld [vmem:[%s5835 + $0x30] sm:$0xf]
        %v5849 = vld [vmem:[%s5835 + $0x34] sm:$0xf]
        %v5850 = vld [vmem:[%s5835 + $0x38] sm:$0xf]
        %v5851 = vld [vmem:[%s5835 + $0x3c] sm:$0xf]
        %v5852 = vrot.slane %v5297, 3
        %v5853 = vrot.slane %v5298, 3
        %v5854 = vsel %vm1110, %v5852, %v5853
        %v5873 = vunpack.c.l.b16 %v5836
        %v5874 = vunpack.c.l.b16 %v5837
        %v5875 = vunpack.c.l.b16 %v5838
        %v5876 = vunpack.c.l.b16 %v5839
        %v5877 = vunpack.c.l.b16 %v5840
        %v5878 = vunpack.c.l.b16 %v5841
        %v5879 = vunpack.c.l.b16 %v5842
        %v5880 = vunpack.c.l.b16 %v5843
        %v5881 = vunpack.c.l.b16 %v5844
        %v5882 = vunpack.c.l.b16 %v5845
        %v5883 = vunpack.c.l.b16 %v5846
        %v5884 = vunpack.c.l.b16 %v5847
        %v5885 = vunpack.c.l.b16 %v5848
        %v5886 = vunpack.c.l.b16 %v5849
        %v5887 = vunpack.c.l.b16 %v5850
        %v5888 = vunpack.c.l.b16 %v5851
        %v5889 = vpack.c.b16 %v5874, %v5873
        %v5890 = vpack.c.b16 %v5876, %v5875
        %v5891 = vpack.c.b16 %v5878, %v5877
        %v5892 = vpack.c.b16 %v5880, %v5879
        %v5893 = vpack.c.b16 %v5882, %v5881
        %v5894 = vpack.c.b16 %v5884, %v5883
        %v5895 = vpack.c.b16 %v5886, %v5885
        %v5896 = vpack.c.b16 %v5888, %v5887
        %5905 = vmatpush.bf16.msra.mxu0 %v5896
        %5906 = vmatpush.bf16.msra.mxu0 %v5895
        %5907 = vmatpush.bf16.msra.mxu0 %v5894
        %5908 = vmatpush.bf16.msra.mxu0 %v5893
        %5909 = vmatpush.bf16.msra.mxu0 %v5892
        %5910 = vmatpush.bf16.msra.mxu0 %v5891
        %5911 = vmatpush.bf16.msra.mxu0 %v5890
        %5912 = vmatpush.bf16.msra.mxu0 %v5889
        %5913 = vmatmul.bf16.gmra.mxu0 %v5854
        %v5914 = vpop.f32.mrf.mxu0
        %v5915 = vadd.f32 0.0, %v5914
        %v5916 = vpop.f32.mrf.mxu0
        %v5917 = vadd.f32 0.0, %v5916
        %5918 = vmatmul.bf16.gmra.mxu0 %v5853
        %v5919 = vpop.f32.mrf.mxu0
        %v5920 = vadd.f32 0.0, %v5919
        %v5921 = vpop.f32.mrf.mxu0
        %v5922 = vadd.f32 0.0, %v5921
        %5923 = vdwg.mxu0
        %v5924 = vadd.f32 %v5831, %v5915
        %v5925 = vadd.f32 %v5832, %v5917
        %v5926 = vadd.f32 %v5833, %v5920
        %v5927 = vadd.f32 %v5834, %v5922
        %v5928 = vld [vmem:[%s17] sm:$0x1]
        %v5930 = vperm.slane %v5928, 0
        %v5932 = vadd.f32 %v5924, %v5930
        %v5933 = vadd.f32 %v5925, %v5930
        %v5934 = vadd.f32 %v5926, %v5930
        %v5935 = vadd.f32 %v5927, %v5930
        %vm5936 = vcmask 195584
        %5937 = vst.msk [vmem:[%s609] sm:$0xff] %vm5936, %v5932
        %5938 = vst.msk [vmem:[%s609 + $0x8] sm:$0xff] %vm5936, %v5933
        %5939 = vst.msk [vmem:[%s609 + $0x10] sm:$0xff] %vm5936, %v5934
        %vm5940 = vcmask 188416
        %5941 = vst.msk [vmem:[%s609 + $0x18] sm:$0x1] %vm5940, %v5935
        %p5942 = scmp.lt.s32.totalorder %s31, 1
        %s5943 = scalar_select %p5942, %s31, 1
        %s5944 = smul.addr %s5943, 4
        %s5945 = smul.addr %s5944, 8
        %s5946 = scalar_lea.vmem %s18, %s5945
        // Predicated region
        $region101: #{audio2pose_forward.1} parent=91 // pred_check
          %p5947 = pneg %p432
        $region102: #{audio2pose_forward.1} parent=91 // pred_check_branch
          %5949 = sbr.rel (%p5947) target = $region104
        $region103: #{audio2pose_forward.1} parent=91 // pred_region
          _
        $region104: #{audio2pose_forward.1} parent=91 // pred_fallthru
          _
      $region92: #{audio2pose_forward.1} parent=5 // pred_fallthru
        _
      %p5950 = scmp.le.s32.totalorder 2, %s26
      // Predicated region
      $region105: #{audio2pose_forward.1} parent=5 // pred_check
        %p5951 = pneg %p5950
      $region106: #{audio2pose_forward.1} parent=5 // pred_check_branch
        %5953 = sbr.rel (%p5951) target = $region108
      $region107: #{audio2pose_forward.1} parent=5 // pred_region
        %s5954 = ssub.s32 %s26, 2
        // Predicated region
        $region109: #{audio2pose_forward.1} parent=107 // pred_check
          %p5955 = pneg %p438
        $region110: #{audio2pose_forward.1} parent=107 // pred_check_branch
          %5957 = sbr.rel (%p5955) target = $region112
        $region111: #{audio2pose_forward.1} parent=107 // pred_region
          %p5958 = scmp.lt.s32.totalorder %s32, 1
          %s5959 = scalar_select %p5958, %s32, 1
          %s5960 = smul.addr %s5959, 4
          %s5961 = smul.addr %s5960, 8
          %s5962 = scalar_lea.vmem %s18, %s5961
        $region112: #{audio2pose_forward.1} parent=107 // pred_fallthru
          _
      $region108: #{audio2pose_forward.1} parent=5 // pred_fallthru
        _
    $region6: #{audio2pose_forward.1} parent=1 // loop_footer
      %s30 = sadd.s32 1, %s26
    $region7: #{audio2pose_forward.1} parent=1 // loop_footer_branch
      %25 = sbr.rel target = $region3
    $region8: #{audio2pose_forward.1} parent=1 // loop_exit
      _
    %5963 = vsyncpa [#allocation3], 1
    %s5964 = scalar_lea.sflag [#allocation3], 1
    %5965 = vsyncpa %s5964, 1
    %5966 = vsyncpa [#allocation5], 1

</llo_original>
